<compile_context>
chip_gen: v7x
topology: tpu7x:2x2x1
jax: 0.10.0
libtpu: 0.0.40
codegen_flags: <defaults>
</compile_context>

<pallas_src>
import jax
import jax.numpy as jnp
from jax import lax
from jax.experimental import pallas as pl
from jax.experimental.pallas import tpu as pltpu

# ----------------------------- problem sizes ------------------------------
C_IN = 4          # input channels
C0 = 8            # branch-0 output channels (1x1 conv)
C1 = 8            # branch-1 output channels (3x3 conv)
C_OUT = C0 + C1   # 16
H, W = 16, 16     # input spatial size
KH, KW = 3, 3     # branch-1 kernel size
HO, WO = H - KH + 1, W - KW + 1   # 14, 14 (valid conv / min spatial shape)
D2 = (H - HO) // 2                # center-crop offsets for branch 0
D3 = (W - WO) // 2
KTAPS = KH * KW                   # 9
KDIM = KTAPS * C_IN               # 36  : fused im2col contraction dim
PIX = HO * WO                     # 196 : lane-dense output width

# The fused weight places the 1x1 branch on the CENTER tap of the 3x3 im2col
# patch; that reproduces the module's center crop exactly because the crop
# offset equals (K-1)//2 for this branch combination.
assert D2 == (KH - 1) // 2 and D3 == (KW - 1) // 2

MAX_BATCH_BLOCK = 8   # cap per-step batch block (VMEM headroom on v7x, unroll size)


# ------------------------------- kernel -----------------------------------
def _make_kernel(batch_block):
    def kernel(x_ref, w_ref, b_ref, o_ref):
        """Process `batch_block` images per grid step.

        x_ref : (B, H, W, C_IN)      input block (NHWC)
        w_ref : (C_OUT, KDIM)        fused, crop-aware weight (channel-major)
        b_ref : (C_OUT, 1)           fused bias
        o_ref : (B, C_OUT, HO*WO)    channel-major, lane-dense output block
        """
        w = w_ref[...]
        bias = b_ref[...]
        for b in range(batch_block):            # static unroll, block is small
            x = x_ref[b]                         # (H, W, C_IN)
            # im2col: 9 shifted valid patches, concatenated on the lane axis.
            taps = [x[ky:ky + HO, kx:kx + WO, :].reshape(PIX, C_IN)
                    for ky in range(KH) for kx in range(KW)]
            patches = jnp.concatenate(taps, axis=-1)         # (PIX, KDIM)
            # One fused MXU matmul = both branches + crop + channel concat,
            # emitted channel-major so the store is lane-dense (196 lanes).
            y = jnp.einsum('ck,pk->cp', w, patches,
                           preferred_element_type=jnp.float32)
            o_ref[b] = y + bias                               # (C_OUT, PIX)
    return kernel


# --------------------------- fused parameters ------------------------------
def _fuse_params(w0, b0, w1, b1):
    """Build the fused (C_OUT, KDIM) weight and (C_OUT, 1) bias.

    Column layout of the im2col patch: (ky*KW + kx)*C_IN + c.
    Branch 0 (1x1 conv, then center crop) lives only on the center tap.
    Branch 1 (3x3 valid conv) fills all taps.
    """
    center = (D2 * KW + D3) * C_IN                       # columns [16:20)
    wf0 = jnp.zeros((C0, KDIM), jnp.float32)
    wf0 = wf0.at[:, center:center + C_IN].set(jnp.transpose(w0))   # (C0, KDIM)
    wf1 = jnp.transpose(w1.reshape(KDIM, C1))                       # (C1, KDIM)
    w_fused = jnp.concatenate([wf0, wf1], axis=0)                   # (C_OUT, KDIM)
    b_fused = jnp.concatenate([b0, b1]).reshape(C_OUT, 1)           # (C_OUT, 1)
    return w_fused, b_fused


def _choose_batch_block(n):
    """Images per grid step: keep >=2 steps (v7x has 2 TCs), cap the block."""
    if n <= 1:
        return 1
    b = min(max(n // 2, 1), MAX_BATCH_BLOCK)
    while n % b:           # require an exact tiling of the batch
        b -= 1
    return b


# ------------------------------- wrapper -----------------------------------
def concat_forward(x_nchw, w0, b0, w1, b1):
    """x_nchw: (N, C_IN, H, W) float32 -> (N, C0+C1, HO, WO) float32."""
    n = x_nchw.shape[0]
    bsz = _choose_batch_block(n)
    w_fused, b_fused = _fuse_params(w0, b0, w1, b1)

    # NCHW -> NHWC on the (small) input; the output needs NO transpose.
    x_nhwc = jnp.transpose(x_nchw, (0, 2, 3, 1))

    out_flat = pl.pallas_call(
        _make_kernel(bsz),
        out_shape=jax.ShapeDtypeStruct((n, C_OUT, PIX), jnp.float32),
        grid_spec=pltpu.PrefetchScalarGridSpec(
            num_scalar_prefetch=0,
            grid=(n // bsz,),
            in_specs=[
                pl.BlockSpec((bsz, H, W, C_IN), lambda i: (i, 0, 0, 0)),
                pl.BlockSpec((C_OUT, KDIM), lambda i: (0, 0)),
                pl.BlockSpec((C_OUT, 1), lambda i: (0, 0)),
            ],
            out_specs=pl.BlockSpec((bsz, C_OUT, PIX), lambda i: (i, 0, 0)),
        ),
        compiler_params=pltpu.CompilerParams(
            dimension_semantics=("parallel",)),
    )(x_nhwc, w_fused, b_fused)

    # Channel-major flat spatial -> NCHW is a pure (free) reshape.
    return out_flat.reshape(n, C_OUT, HO, WO)


# --------------------------- pure-JAX reference -----------------------------
def concat_reference(x_nchw, w0, b0, w1, b1):
    x_nhwc = jnp.transpose(x_nchw, (0, 2, 3, 1))
    # branch 0: 1x1 conv
    y0 = lax.conv_general_dilated(
        x_nhwc, w0.reshape(1, 1, C_IN, C0), (1, 1), "VALID",
        dimension_numbers=("NHWC", "HWIO", "NHWC")) + b0
    # branch 1: 3x3 valid conv
    y1 = lax.conv_general_dilated(
        x_nhwc, w1, (1, 1), "VALID",
        dimension_numbers=("NHWC", "HWIO", "NHWC")) + b1
    # Concat-module semantics: center-crop to min spatial, concat on channels
    y0c = y0[:, D2:D2 + HO, D3:D3 + WO, :]
    out = jnp.concatenate([y0c, y1], axis=-1)
    return jnp.transpose(out, (0, 3, 1, 2))


# --------------------------------- main -------------------------------------
if __name__ == "__main__":
    key = jax.random.PRNGKey(0)
    kx, k0w, k0b, k1w, k1b = jax.random.split(key, 5)

    N = 2
    x = jax.random.normal(kx, (N, C_IN, H, W), dtype=jnp.float32)

    # deterministic synthetic "checkpoint"
    w0 = jax.random.normal(k0w, (C_IN, C0), dtype=jnp.float32) * 0.1
    b0 = jax.random.normal(k0b, (C0,), dtype=jnp.float32) * 0.1
    w1 = jax.random.normal(k1w, (KH, KW, C_IN, C1), dtype=jnp.float32) * 0.1
    b1 = jax.random.normal(k1b, (C1,), dtype=jnp.float32) * 0.1

    out = concat_forward(x, w0, b0, w1, b1)
    out = jax.block_until_ready(out)

    ref = concat_reference(x, w0, b0, w1, b1)
    assert out.shape == (N, C_OUT, HO, WO), out.shape
    assert jnp.allclose(out, ref, atol=1e-4, rtol=1e-4), "mismatch vs reference"

    print("KERNEL_OK")
</pallas_src>

<mosaic_0001>
module attributes {stable_mosaic.version = 11 : i64} {
  func.func @kernel(%arg0: i32, %arg1: memref<1x16x16x4xf32, #tpu.memory_space<vmem>>, %arg2: memref<16x36xf32, #tpu.memory_space<vmem>>, %arg3: memref<16x1xf32, #tpu.memory_space<vmem>>, %arg4: memref<1x16x196xf32, #tpu.memory_space<vmem>>) attributes {dimension_semantics = [#tpu.dimension_semantics<parallel>], iteration_bounds = array<i64: 2>, scalar_prefetch = 0 : i64, scratch_operands = 0 : i64, tpu.core_type = #tpu.core_type<tc>, window_params = [{transform_indices = @transform_0, window_bounds = array<i64: 1, 16, 16, 4>}, {pipeline_mode = #tpu.pipeline_mode<synchronous>, transform_indices = @transform_1, window_bounds = array<i64: 16, 36>}, {pipeline_mode = #tpu.pipeline_mode<synchronous>, transform_indices = @transform_2, window_bounds = array<i64: 16, 1>}, {transform_indices = @transform_3, window_bounds = array<i64: 1, 16, 196>}]} {
    %c0 = arith.constant 0 : index
    %c0_0 = arith.constant 0 : index
    %0 = vector.load %arg2[%c0, %c0_0] : memref<16x36xf32, #tpu.memory_space<vmem>>, vector<16x36xf32>
    %c0_1 = arith.constant 0 : index
    %c0_2 = arith.constant 0 : index
    %1 = vector.load %arg3[%c0_1, %c0_2] : memref<16x1xf32, #tpu.memory_space<vmem>>, vector<16x1xf32>
    %c0_3 = arith.constant 0 : index
    %c0_4 = arith.constant 0 : index
    %c0_5 = arith.constant 0 : index
    %c0_6 = arith.constant 0 : index
    %2 = vector.load %arg1[%c0_3, %c0_4, %c0_5, %c0_6] : memref<1x16x16x4xf32, #tpu.memory_space<vmem>>, vector<1x16x16x4xf32>
    %3 = vector.shape_cast %2 : vector<1x16x16x4xf32> to vector<16x16x4xf32>
    %4 = vector.extract_strided_slice %3 {offsets = [0, 0, 0], sizes = [14, 14, 4], strides = [1, 1, 1]} : vector<16x16x4xf32> to vector<14x14x4xf32>
    %5 = vector.shape_cast %4 : vector<14x14x4xf32> to vector<196x4xf32>
    %6 = vector.extract_strided_slice %3 {offsets = [0, 1, 0], sizes = [14, 14, 4], strides = [1, 1, 1]} : vector<16x16x4xf32> to vector<14x14x4xf32>
    %7 = vector.shape_cast %6 : vector<14x14x4xf32> to vector<196x4xf32>
    %8 = vector.extract_strided_slice %3 {offsets = [0, 2, 0], sizes = [14, 14, 4], strides = [1, 1, 1]} : vector<16x16x4xf32> to vector<14x14x4xf32>
    %9 = vector.shape_cast %8 : vector<14x14x4xf32> to vector<196x4xf32>
    %10 = vector.extract_strided_slice %3 {offsets = [1, 0, 0], sizes = [14, 14, 4], strides = [1, 1, 1]} : vector<16x16x4xf32> to vector<14x14x4xf32>
    %11 = vector.shape_cast %10 : vector<14x14x4xf32> to vector<196x4xf32>
    %12 = vector.extract_strided_slice %3 {offsets = [1, 1, 0], sizes = [14, 14, 4], strides = [1, 1, 1]} : vector<16x16x4xf32> to vector<14x14x4xf32>
    %13 = vector.shape_cast %12 : vector<14x14x4xf32> to vector<196x4xf32>
    %14 = vector.extract_strided_slice %3 {offsets = [1, 2, 0], sizes = [14, 14, 4], strides = [1, 1, 1]} : vector<16x16x4xf32> to vector<14x14x4xf32>
    %15 = vector.shape_cast %14 : vector<14x14x4xf32> to vector<196x4xf32>
    %16 = vector.extract_strided_slice %3 {offsets = [2, 0, 0], sizes = [14, 14, 4], strides = [1, 1, 1]} : vector<16x16x4xf32> to vector<14x14x4xf32>
    %17 = vector.shape_cast %16 : vector<14x14x4xf32> to vector<196x4xf32>
    %18 = vector.extract_strided_slice %3 {offsets = [2, 1, 0], sizes = [14, 14, 4], strides = [1, 1, 1]} : vector<16x16x4xf32> to vector<14x14x4xf32>
    %19 = vector.shape_cast %18 : vector<14x14x4xf32> to vector<196x4xf32>
    %20 = vector.extract_strided_slice %3 {offsets = [2, 2, 0], sizes = [14, 14, 4], strides = [1, 1, 1]} : vector<16x16x4xf32> to vector<14x14x4xf32>
    %21 = vector.shape_cast %20 : vector<14x14x4xf32> to vector<196x4xf32>
    %22 = tpu.concatenate %5, %7, %9, %11, %13, %15, %17, %19, %21 in 1 : vector<196x4xf32>, vector<196x4xf32>, vector<196x4xf32>, vector<196x4xf32>, vector<196x4xf32>, vector<196x4xf32>, vector<196x4xf32>, vector<196x4xf32>, vector<196x4xf32> -> vector<196x36xf32>
    "tpu.trace_start"() <{level = 10 : i32, message = "ck,pk->cp"}> : () -> ()
    %cst = arith.constant dense<0.000000e+00> : vector<16x196xf32>
    %23 = tpu.matmul %0, %22, %cst {dimension_numbers = #tpu.dot_dimension_numbers<[1], [1], [0], [0], [0, 0, 1, 0], [], []>} : vector<16x36xf32>, vector<196x36xf32>, vector<16x196xf32> -> vector<16x196xf32>
    "tpu.trace_stop"() : () -> ()
    %24 = vector.broadcast %1 : vector<16x1xf32> to vector<16x196xf32>
    %25 = arith.addf %23, %24 : vector<16x196xf32>
    %c0_7 = arith.constant 0 : index
    %c0_8 = arith.constant 0 : index
    %c0_9 = arith.constant 0 : index
    %26 = vector.load %arg4[%c0_7, %c0_8, %c0_9] : memref<1x16x196xf32, #tpu.memory_space<vmem>>, vector<1x16x196xf32>
    %27 = vector.shape_cast %26 : vector<1x16x196xf32> to vector<16x196xf32>
    %28 = vector.shape_cast %25 : vector<16x196xf32> to vector<1x16x196xf32>
    tpu.vector_store %arg4[%c0_7, %c0_8, %c0_9], %28 {strides = array<i32>} : memref<1x16x196xf32, #tpu.memory_space<vmem>>, vector<1x16x196xf32>,
    return
  }
  func.func @transform_0(%arg0: i32) -> (i32, i32, i32, i32) {
    %c0_i32 = arith.constant 0 : i32
    %c0_i32_0 = arith.constant 0 : i32
    %c0_i32_1 = arith.constant 0 : i32
    %c0_i32_2 = arith.constant 0 : i32
    return %arg0, %c0_i32, %c0_i32_0, %c0_i32_1 : i32, i32, i32, i32
  }
  func.func @transform_1(%arg0: i32) -> (i32, i32) {
    %c0_i32 = arith.constant 0 : i32
    %c0_i32_0 = arith.constant 0 : i32
    %c0_i32_1 = arith.constant 0 : i32
    return %c0_i32, %c0_i32_0 : i32, i32
  }
  func.func @transform_2(%arg0: i32) -> (i32, i32) {
    %c0_i32 = arith.constant 0 : i32
    %c0_i32_0 = arith.constant 0 : i32
    %c0_i32_1 = arith.constant 0 : i32
    return %c0_i32, %c0_i32_0 : i32, i32
  }
  func.func @transform_3(%arg0: i32) -> (i32, i32, i32) {
    %c0_i32 = arith.constant 0 : i32
    %c0_i32_0 = arith.constant 0 : i32
    %c0_i32_1 = arith.constant 0 : i32
    return %arg0, %c0_i32, %c0_i32_0 : i32, i32, i32
  }
}

</mosaic_0001>

<llo_original>
// kernel: tpu_custom_call.1
$region0: #{tpu_custom_call.1}
  #allocation0 [shape = 'u32[]', space=smem, size = 0x4, offset = 0x4, fixed_abs, tag = 'smem constant byte address 0x4 - core index']
  #allocation1 [shape = 'u32[144,128]{1,0:T(1,128)}', space=vmem, size = 0x12000, scoped, tag = 'internal scratch']
  %s0 = inlined_call_operand.vmem [shape: f32[2,16,16,4], index: 0, kind: input, shape index: {}]
  %s1 = inlined_call_operand.vmem [shape: f32[16,36], index: 1, kind: input, shape index: {}]
  %s2 = inlined_call_operand.vmem [shape: f32[16,1], index: 2, kind: input, shape index: {}]
  %s3 = inlined_call_operand.hbm [shape: f32[2,16,196], index: 3, kind: output, shape index: {}]
  %s4 = sld [smem:[#allocation0]]
  $region45: #{tpu_custom_call.1} parent=0
    _
  %s6 = ssub.s32 1, %s4
  %s7 = scalar_select 0, %s6, %s4
  $region1: #{tpu_custom_call.1} parent=0
    #allocation2 [shape = 'u8[32768]{0}', space=vmem, size = 0x8000, scoped, tag = 'output window, operand 0']
    #allocation3 [shape = 's32[2]{0}', space=sflag, size = 0x8, scoped, tag = 'scoped memory for tpu_custom_call.1']
    %8 = vsyncpa [#allocation3], 0
    %s9 = scalar_lea.sflag [#allocation3], 1
    %10 = vsyncpa %s9, 0
    loop: start=0, step=1, limit=4
    $region2: #{tpu_custom_call.1} parent=1 // loop_pre_header
      _
    $region3: #{tpu_custom_call.1} parent=1 // loop_header
      %s12 = sphi 0, %s16
      %p13 = scmp.ge.s32.totalorder %s12, 4
      %s22 = sphi 0, %s24
      %s25 = sphi 0, %s22
      %s26 = sphi 0, %s25
      %s42 = sphi 0, %s26
      %s46 = sphi 0, %s46
      %s48 = sphi 0, %s46
      %s49 = sphi 0, %s48
      %s63 = sphi 0, %s49
      %s67 = sphi 0, %s67
      %s69 = sphi 0, %s67
      %s70 = sphi 0, %s69
      %s84 = sphi 0, %s70
      %s90 = sphi 0, %s92
      %s93 = sphi 0, %s90
      %s94 = sphi 0, %s93
      %s110 = sphi 0, %s94
    $region4: #{tpu_custom_call.1} parent=1 // loop_header_branch
      %15 = sbr.rel (%p13) target = $region8
    $region5: #{tpu_custom_call.1} parent=1 // loop_body
      %s17 = ssub.s32 %s12, 1
      %s18 = ssub.s32 %s12, 2
      %s19 = sadd.s32 %s12, 1
      %s20 = ssub.s32 %s12, %s19
      %p21 = scmp.eq.s32.totalorder %s20, 0
      %s23 = sadd.s32 %s22, 1
      %s24 = scalar_select %p21, %s22, %s23
      %p27 = pneg %p21
      %p28 = scmp.eq.s32.totalorder %s12, 1
      %p29 = por %p27, %p28
      %p30 = scmp.ne.s32.totalorder %s22, %s25
      %p31 = scmp.eq.s32.totalorder %s12, 0
      %p32 = por %p30, %p31
      %p33 = scmp.ne.s32.totalorder %s22, %s25
      %p34 = scmp.eq.s32.totalorder %s17, 1
      %p35 = por %p33, %p34
      %p36 = scmp.ne.s32.totalorder %s25, %s26
      %p37 = scmp.eq.s32.totalorder %s17, 0
      %p38 = por %p36, %p37
      %p39 = scmp.ne.s32.totalorder %s25, %s26
      %p40 = scmp.eq.s32.totalorder %s18, 1
      %p41 = por %p39, %p40
      %p43 = scmp.ne.s32.totalorder %s26, %s42
      %p44 = scmp.eq.s32.totalorder %s18, 0
      %p45 = por %p43, %p44
      %s47 = sadd.s32 %s46, 1
      %p50 = scmp.eq.s32.totalorder %s12, 1
      %p51 = scmp.ne.s32.totalorder %s46, %s48
      %p52 = scmp.eq.s32.totalorder %s12, 0
      %p53 = por %p51, %p52
      %p54 = scmp.ne.s32.totalorder %s46, %s48
      %p55 = scmp.eq.s32.totalorder %s17, 1
      %p56 = por %p54, %p55
      %p57 = scmp.ne.s32.totalorder %s48, %s49
      %p58 = scmp.eq.s32.totalorder %s17, 0
      %p59 = por %p57, %p58
      %p60 = scmp.ne.s32.totalorder %s48, %s49
      %p61 = scmp.eq.s32.totalorder %s18, 1
      %p62 = por %p60, %p61
      %p64 = scmp.ne.s32.totalorder %s49, %s63
      %p65 = scmp.eq.s32.totalorder %s18, 0
      %p66 = por %p64, %p65
      %s68 = sadd.s32 %s67, 1
      %p71 = scmp.eq.s32.totalorder %s12, 1
      %p72 = scmp.ne.s32.totalorder %s67, %s69
      %p73 = scmp.eq.s32.totalorder %s12, 0
      %p74 = por %p72, %p73
      %p75 = scmp.ne.s32.totalorder %s67, %s69
      %p76 = scmp.eq.s32.totalorder %s17, 1
      %p77 = por %p75, %p76
      %p78 = scmp.ne.s32.totalorder %s69, %s70
      %p79 = scmp.eq.s32.totalorder %s17, 0
      %p80 = por %p78, %p79
      %p81 = scmp.ne.s32.totalorder %s69, %s70
      %p82 = scmp.eq.s32.totalorder %s18, 1
      %p83 = por %p81, %p82
      %p85 = scmp.ne.s32.totalorder %s70, %s84
      %p86 = scmp.eq.s32.totalorder %s18, 0
      %p87 = por %p85, %p86
      %s88 = ssub.s32 %s12, %s19
      %p89 = scmp.eq.s32.totalorder %s88, 0
      %s91 = sadd.s32 %s90, 1
      %s92 = scalar_select %p89, %s90, %s91
      %p95 = pneg %p89
      %p96 = scmp.eq.s32.totalorder %s12, 1
      %p97 = por %p95, %p96
      %p98 = scmp.ne.s32.totalorder %s90, %s93
      %p99 = scmp.eq.s32.totalorder %s12, 0
      %p100 = por %p98, %p99
      %p101 = scmp.ne.s32.totalorder %s90, %s93
      %p102 = scmp.eq.s32.totalorder %s17, 1
      %p103 = por %p101, %p102
      %p104 = scmp.ne.s32.totalorder %s93, %s94
      %p105 = scmp.eq.s32.totalorder %s17, 0
      %p106 = por %p104, %p105
      %p107 = scmp.ne.s32.totalorder %s93, %s94
      %p108 = scmp.eq.s32.totalorder %s18, 1
      %p109 = por %p107, %p108
      %p111 = scmp.ne.s32.totalorder %s94, %s110
      %p112 = scmp.eq.s32.totalorder %s18, 0
      %p113 = por %p111, %p112
      %p114 = scmp.le.s32.totalorder 1, %s12
      %p115 = scmp.lt.s32.totalorder %s12, 3
      %p116 = pnand %p114, %p115
      %p117 = pneg %p116
      // Predicated region
      $region9: #{tpu_custom_call.1} parent=5 // pred_check
        _
      $region10: #{tpu_custom_call.1} parent=5 // pred_check_branch
        %119 = sbr.rel (%p116) target = $region12
      $region11: #{tpu_custom_call.1} parent=5 // pred_region
        %s120 = ssub.s32 %s12, 1
        // Predicated region
        $region13: #{tpu_custom_call.1} parent=11 // pred_check
          %p121 = pneg %p59
        $region14: #{tpu_custom_call.1} parent=11 // pred_check_branch
          %123 = sbr.rel (%p121) target = $region16
        $region15: #{tpu_custom_call.1} parent=11 // pred_region
          _
        $region16: #{tpu_custom_call.1} parent=11 // pred_fallthru
          _
        // Predicated region
        $region17: #{tpu_custom_call.1} parent=11 // pred_check
          %p124 = pneg %p80
        $region18: #{tpu_custom_call.1} parent=11 // pred_check_branch
          %126 = sbr.rel (%p124) target = $region20
        $region19: #{tpu_custom_call.1} parent=11 // pred_region
          _
        $region20: #{tpu_custom_call.1} parent=11 // pred_fallthru
          _
      $region12: #{tpu_custom_call.1} parent=5 // pred_fallthru
        _
      %p127 = scmp.lt.s32.totalorder %s12, 2
      // Predicated region
      $region21: #{tpu_custom_call.1} parent=5 // pred_check
        %p128 = pneg %p127
      $region22: #{tpu_custom_call.1} parent=5 // pred_check_branch
        %130 = sbr.rel (%p128) target = $region24
      $region23: #{tpu_custom_call.1} parent=5 // pred_region
        // Predicated region
        $region25: #{tpu_custom_call.1} parent=23 // pred_check
          %p131 = pneg %p32
        $region26: #{tpu_custom_call.1} parent=23 // pred_check_branch
          %133 = sbr.rel (%p131) target = $region28
        $region27: #{tpu_custom_call.1} parent=23 // pred_region
          %p134 = scmp.lt.s32.totalorder %s12, 1
          %s135 = scalar_select %p134, %s12, 1
          %s136 = smul.addr %s135, 32
          %s137 = smul.addr %s136, 8
          %s138 = scalar_lea.vmem %s0, %s137
        $region28: #{tpu_custom_call.1} parent=23 // pred_fallthru
          _
      $region24: #{tpu_custom_call.1} parent=5 // pred_fallthru
        _
      %p139 = scmp.le.s32.totalorder 1, %s12
      %p140 = scmp.lt.s32.totalorder %s12, 3
      %p141 = pnand %p139, %p140
      %p142 = pneg %p141
      // Predicated region
      $region29: #{tpu_custom_call.1} parent=5 // pred_check
        _
      $region30: #{tpu_custom_call.1} parent=5 // pred_check_branch
        %144 = sbr.rel (%p141) target = $region32
      $region31: #{tpu_custom_call.1} parent=5 // pred_region
        %s145 = ssub.s32 %s12, 1
        %p146 = scmp.lt.s32.totalorder %s17, 1
        %s147 = scalar_select %p146, %s17, 1
        %s148 = smul.addr %s147, 32
        %s149 = smul.addr %s148, 8
        %s150 = scalar_lea.vmem %s0, %s149
        %p151 = pneg %p38
        %p152 = pneg %p35
        %p153 = pneg %p59
        %p154 = pneg %p56
        %p155 = pneg %p80
        %p156 = pneg %p77
        %p157 = pneg %p106
        %p158 = pneg %p103
        %s159 = sand.u32 %s93, 1
        %s160 = scalar_lea.sflag [#allocation3], %s159
        %s161 = sand.u32 %s93, 1
        %s162 = smul.addr %s161, 32
        %s163 = scalar_lea.vmem [#allocation2], %s162
        %p164 = scmp.lt.s32.totalorder %s17, 1
        %s165 = scalar_select %p164, %s17, 1
        %s166 = smul.addr %s165, 32
        %s167 = smul.addr %s166, 8
        %s168 = scalar_lea.vmem %s0, %s167
        %v169 = vld [vmem:[%s1] sm:$0xff]
        %v170 = vld [vmem:[%s1 + $0x8] sm:$0xff]
        %v171 = vld [vmem:[%s2] sm:$0xff]
        %v172 = vld [vmem:[%s2 + $0x8] sm:$0xff]
        %v173 = vld [vmem:[%s168] sm:$0xff]
        %v174 = vld [vmem:[%s168 + $0x8] sm:$0xff]
        %v175 = vld [vmem:[%s168 + $0x10] sm:$0xff]
        %v176 = vld [vmem:[%s168 + $0x18] sm:$0xff]
        %v177 = vld [vmem:[%s168 + $0x20] sm:$0xff]
        %v178 = vld [vmem:[%s168 + $0x28] sm:$0xff]
        %v179 = vld [vmem:[%s168 + $0x30] sm:$0xff]
        %v180 = vld [vmem:[%s168 + $0x38] sm:$0xff]
        %v181 = vld [vmem:[%s168 + $0x40] sm:$0xff]
        %v182 = vld [vmem:[%s168 + $0x48] sm:$0xff]
        %v183 = vld [vmem:[%s168 + $0x50] sm:$0xff]
        %v184 = vld [vmem:[%s168 + $0x58] sm:$0xff]
        %v185 = vld [vmem:[%s168 + $0x60] sm:$0xff]
        %v186 = vld [vmem:[%s168 + $0x68] sm:$0xff]
        %v187 = vld [vmem:[%s168 + $0x70] sm:$0xff]
        %v188 = vld [vmem:[%s168 + $0x78] sm:$0xff]
        %v189 = vld [vmem:[%s168 + $0x80] sm:$0xff]
        %v190 = vld [vmem:[%s168 + $0x88] sm:$0xff]
        %v191 = vld [vmem:[%s168 + $0x90] sm:$0xff]
        %v192 = vld [vmem:[%s168 + $0x98] sm:$0xff]
        %v193 = vld [vmem:[%s168 + $0xa0] sm:$0xff]
        %v194 = vld [vmem:[%s168 + $0xa8] sm:$0xff]
        %v195 = vld [vmem:[%s168 + $0xb0] sm:$0xff]
        %v196 = vld [vmem:[%s168 + $0xb8] sm:$0xff]
        %v197 = vld [vmem:[%s168 + $0xc0] sm:$0xff]
        %v198 = vld [vmem:[%s168 + $0xc8] sm:$0xff]
        %v199 = vld [vmem:[%s168 + $0xd0] sm:$0xff]
        %v200 = vld [vmem:[%s168 + $0xd8] sm:$0xff]
        %v201 = vld [vmem:[%s168 + $0xe0] sm:$0xff]
        %v202 = vld [vmem:[%s168 + $0xe8] sm:$0xff]
        %v203 = vld [vmem:[%s168 + $0xf0] sm:$0xff]
        %v204 = vld [vmem:[%s168 + $0xf8] sm:$0xff]
        %v233 = vcombine.high %v173, %v173
        %v235 = vunpack.c.l.s4 1983009808
        %v236 = vunpack.c.0.s8 %v235
        %v237 = vlaneseq
        %v238 = vshrl.u32 %v237, 7
        %v239 = vsub.s32 %v236, %v238
        %v240 = vrot.slane %v173, %v239
        %v242 = vunpack.c.l.s4 1983009808
        %v243 = vunpack.c.0.s8 %v242
        %v244 = vlaneseq
        %v245 = vshrl.u32 %v244, 7
        %v246 = vsub.s32 %v243, %v245
        %v247 = vrot.slane %v233, %v246
        %v248 = vcombine.high %v240, %v240
        %v249 = vcombine.high %v247, %v247
        %v250 = vcombine.high %v174, %v174
        %v252 = vunpack.c.l.s4 1983009808
        %v253 = vunpack.c.0.s8 %v252
        %v254 = vlaneseq
        %v255 = vshrl.u32 %v254, 7
        %v256 = vsub.s32 %v253, %v255
        %v257 = vrot.slane %v174, %v256
        %v259 = vunpack.c.l.s4 1983009808
        %v260 = vunpack.c.0.s8 %v259
        %v261 = vlaneseq
        %v262 = vshrl.u32 %v261, 7
        %v263 = vsub.s32 %v260, %v262
        %v264 = vrot.slane %v250, %v263
        %v265 = vcombine.high %v257, %v257
        %v266 = vcombine.high %v175, %v175
        %v268 = vunpack.c.l.s4 1983009808
        %v269 = vunpack.c.0.s8 %v268
        %v270 = vlaneseq
        %v271 = vshrl.u32 %v270, 7
        %v272 = vsub.s32 %v269, %v271
        %v273 = vrot.slane %v175, %v272
        %v275 = vunpack.c.l.s4 1983009808
        %v276 = vunpack.c.0.s8 %v275
        %v277 = vlaneseq
        %v278 = vshrl.u32 %v277, 7
        %v279 = vsub.s32 %v276, %v278
        %v280 = vrot.slane %v266, %v279
        %v281 = vcombine.high %v273, %v273
        %v282 = vcombine.high %v280, %v280
        %v283 = vcombine.high %v176, %v176
        %v285 = vunpack.c.l.s4 1983009808
        %v286 = vunpack.c.0.s8 %v285
        %v287 = vlaneseq
        %v288 = vshrl.u32 %v287, 7
        %v289 = vsub.s32 %v286, %v288
        %v290 = vrot.slane %v176, %v289
        %v292 = vunpack.c.l.s4 1983009808
        %v293 = vunpack.c.0.s8 %v292
        %v294 = vlaneseq
        %v295 = vshrl.u32 %v294, 7
        %v296 = vsub.s32 %v293, %v295
        %v297 = vrot.slane %v283, %v296
        %v298 = vcombine.high %v290, %v290
        %v299 = vcombine.high %v177, %v177
        %v301 = vunpack.c.l.s4 1983009808
        %v302 = vunpack.c.0.s8 %v301
        %v303 = vlaneseq
        %v304 = vshrl.u32 %v303, 7
        %v305 = vsub.s32 %v302, %v304
        %v306 = vrot.slane %v177, %v305
        %v308 = vunpack.c.l.s4 1983009808
        %v309 = vunpack.c.0.s8 %v308
        %v310 = vlaneseq
        %v311 = vshrl.u32 %v310, 7
        %v312 = vsub.s32 %v309, %v311
        %v313 = vrot.slane %v299, %v312
        %v314 = vcombine.high %v306, %v306
        %v315 = vcombine.high %v313, %v313
        %v316 = vcombine.high %v178, %v178
        %v318 = vunpack.c.l.s4 1983009808
        %v319 = vunpack.c.0.s8 %v318
        %v320 = vlaneseq
        %v321 = vshrl.u32 %v320, 7
        %v322 = vsub.s32 %v319, %v321
        %v323 = vrot.slane %v178, %v322
        %v325 = vunpack.c.l.s4 1983009808
        %v326 = vunpack.c.0.s8 %v325
        %v327 = vlaneseq
        %v328 = vshrl.u32 %v327, 7
        %v329 = vsub.s32 %v326, %v328
        %v330 = vrot.slane %v316, %v329
        %v331 = vcombine.high %v323, %v323
        %v332 = vcombine.high %v179, %v179
        %v334 = vunpack.c.l.s4 1983009808
        %v335 = vunpack.c.0.s8 %v334
        %v336 = vlaneseq
        %v337 = vshrl.u32 %v336, 7
        %v338 = vsub.s32 %v335, %v337
        %v339 = vrot.slane %v179, %v338
        %v341 = vunpack.c.l.s4 1983009808
        %v342 = vunpack.c.0.s8 %v341
        %v343 = vlaneseq
        %v344 = vshrl.u32 %v343, 7
        %v345 = vsub.s32 %v342, %v344
        %v346 = vrot.slane %v332, %v345
        %v347 = vcombine.high %v339, %v339
        %v348 = vcombine.high %v346, %v346
        %v349 = vcombine.high %v180, %v180
        %v351 = vunpack.c.l.s4 1983009808
        %v352 = vunpack.c.0.s8 %v351
        %v353 = vlaneseq
        %v354 = vshrl.u32 %v353, 7
        %v355 = vsub.s32 %v352, %v354
        %v356 = vrot.slane %v180, %v355
        %v358 = vunpack.c.l.s4 1983009808
        %v359 = vunpack.c.0.s8 %v358
        %v360 = vlaneseq
        %v361 = vshrl.u32 %v360, 7
        %v362 = vsub.s32 %v359, %v361
        %v363 = vrot.slane %v349, %v362
        %v364 = vcombine.high %v356, %v356
        %v365 = vcombine.high %v181, %v181
        %v367 = vunpack.c.l.s4 1983009808
        %v368 = vunpack.c.0.s8 %v367
        %v369 = vlaneseq
        %v370 = vshrl.u32 %v369, 7
        %v371 = vsub.s32 %v368, %v370
        %v372 = vrot.slane %v181, %v371
        %v374 = vunpack.c.l.s4 1983009808
        %v375 = vunpack.c.0.s8 %v374
        %v376 = vlaneseq
        %v377 = vshrl.u32 %v376, 7
        %v378 = vsub.s32 %v375, %v377
        %v379 = vrot.slane %v365, %v378
        %v380 = vcombine.high %v372, %v372
        %v381 = vcombine.high %v379, %v379
        %v382 = vcombine.high %v182, %v182
        %v384 = vunpack.c.l.s4 1983009808
        %v385 = vunpack.c.0.s8 %v384
        %v386 = vlaneseq
        %v387 = vshrl.u32 %v386, 7
        %v388 = vsub.s32 %v385, %v387
        %v389 = vrot.slane %v182, %v388
        %v391 = vunpack.c.l.s4 1983009808
        %v392 = vunpack.c.0.s8 %v391
        %v393 = vlaneseq
        %v394 = vshrl.u32 %v393, 7
        %v395 = vsub.s32 %v392, %v394
        %v396 = vrot.slane %v382, %v395
        %v397 = vcombine.high %v389, %v389
        %v398 = vcombine.high %v183, %v183
        %v400 = vunpack.c.l.s4 1983009808
        %v401 = vunpack.c.0.s8 %v400
        %v402 = vlaneseq
        %v403 = vshrl.u32 %v402, 7
        %v404 = vsub.s32 %v401, %v403
        %v405 = vrot.slane %v183, %v404
        %v407 = vunpack.c.l.s4 1983009808
        %v408 = vunpack.c.0.s8 %v407
        %v409 = vlaneseq
        %v410 = vshrl.u32 %v409, 7
        %v411 = vsub.s32 %v408, %v410
        %v412 = vrot.slane %v398, %v411
        %v413 = vcombine.high %v405, %v405
        %v414 = vcombine.high %v412, %v412
        %v415 = vcombine.high %v184, %v184
        %v417 = vunpack.c.l.s4 1983009808
        %v418 = vunpack.c.0.s8 %v417
        %v419 = vlaneseq
        %v420 = vshrl.u32 %v419, 7
        %v421 = vsub.s32 %v418, %v420
        %v422 = vrot.slane %v184, %v421
        %v424 = vunpack.c.l.s4 1983009808
        %v425 = vunpack.c.0.s8 %v424
        %v426 = vlaneseq
        %v427 = vshrl.u32 %v426, 7
        %v428 = vsub.s32 %v425, %v427
        %v429 = vrot.slane %v415, %v428
        %v430 = vcombine.high %v422, %v422
        %v431 = vcombine.high %v185, %v185
        %v433 = vunpack.c.l.s4 1983009808
        %v434 = vunpack.c.0.s8 %v433
        %v435 = vlaneseq
        %v436 = vshrl.u32 %v435, 7
        %v437 = vsub.s32 %v434, %v436
        %v438 = vrot.slane %v185, %v437
        %v440 = vunpack.c.l.s4 1983009808
        %v441 = vunpack.c.0.s8 %v440
        %v442 = vlaneseq
        %v443 = vshrl.u32 %v442, 7
        %v444 = vsub.s32 %v441, %v443
        %v445 = vrot.slane %v431, %v444
        %v446 = vcombine.high %v438, %v438
        %v447 = vcombine.high %v445, %v445
        %v448 = vcombine.high %v186, %v186
        %v450 = vunpack.c.l.s4 1983009808
        %v451 = vunpack.c.0.s8 %v450
        %v452 = vlaneseq
        %v453 = vshrl.u32 %v452, 7
        %v454 = vsub.s32 %v451, %v453
        %v455 = vrot.slane %v186, %v454
        %v457 = vunpack.c.l.s4 1983009808
        %v458 = vunpack.c.0.s8 %v457
        %v459 = vlaneseq
        %v460 = vshrl.u32 %v459, 7
        %v461 = vsub.s32 %v458, %v460
        %v462 = vrot.slane %v448, %v461
        %v463 = vcombine.high %v455, %v455
        %v464 = vcombine.high %v187, %v187
        %v466 = vunpack.c.l.s4 1983009808
        %v467 = vunpack.c.0.s8 %v466
        %v468 = vlaneseq
        %v469 = vshrl.u32 %v468, 7
        %v470 = vsub.s32 %v467, %v469
        %v471 = vrot.slane %v187, %v470
        %v473 = vunpack.c.l.s4 1983009808
        %v474 = vunpack.c.0.s8 %v473
        %v475 = vlaneseq
        %v476 = vshrl.u32 %v475, 7
        %v477 = vsub.s32 %v474, %v476
        %v478 = vrot.slane %v464, %v477
        %v479 = vcombine.high %v471, %v471
        %v480 = vcombine.high %v478, %v478
        %v481 = vcombine.high %v188, %v188
        %v483 = vunpack.c.l.s4 1983009808
        %v484 = vunpack.c.0.s8 %v483
        %v485 = vlaneseq
        %v486 = vshrl.u32 %v485, 7
        %v487 = vsub.s32 %v484, %v486
        %v488 = vrot.slane %v188, %v487
        %v490 = vunpack.c.l.s4 1983009808
        %v491 = vunpack.c.0.s8 %v490
        %v492 = vlaneseq
        %v493 = vshrl.u32 %v492, 7
        %v494 = vsub.s32 %v491, %v493
        %v495 = vrot.slane %v481, %v494
        %v496 = vcombine.high %v488, %v488
        %v497 = vcombine.high %v189, %v189
        %v499 = vunpack.c.l.s4 1983009808
        %v500 = vunpack.c.0.s8 %v499
        %v501 = vlaneseq
        %v502 = vshrl.u32 %v501, 7
        %v503 = vsub.s32 %v500, %v502
        %v504 = vrot.slane %v189, %v503
        %v506 = vunpack.c.l.s4 1983009808
        %v507 = vunpack.c.0.s8 %v506
        %v508 = vlaneseq
        %v509 = vshrl.u32 %v508, 7
        %v510 = vsub.s32 %v507, %v509
        %v511 = vrot.slane %v497, %v510
        %v512 = vcombine.high %v504, %v504
        %v513 = vcombine.high %v511, %v511
        %v514 = vcombine.high %v190, %v190
        %v516 = vunpack.c.l.s4 1983009808
        %v517 = vunpack.c.0.s8 %v516
        %v518 = vlaneseq
        %v519 = vshrl.u32 %v518, 7
        %v520 = vsub.s32 %v517, %v519
        %v521 = vrot.slane %v190, %v520
        %v523 = vunpack.c.l.s4 1983009808
        %v524 = vunpack.c.0.s8 %v523
        %v525 = vlaneseq
        %v526 = vshrl.u32 %v525, 7
        %v527 = vsub.s32 %v524, %v526
        %v528 = vrot.slane %v514, %v527
        %v529 = vcombine.high %v521, %v521
        %v530 = vcombine.high %v191, %v191
        %v532 = vunpack.c.l.s4 1983009808
        %v533 = vunpack.c.0.s8 %v532
        %v534 = vlaneseq
        %v535 = vshrl.u32 %v534, 7
        %v536 = vsub.s32 %v533, %v535
        %v537 = vrot.slane %v191, %v536
        %v539 = vunpack.c.l.s4 1983009808
        %v540 = vunpack.c.0.s8 %v539
        %v541 = vlaneseq
        %v542 = vshrl.u32 %v541, 7
        %v543 = vsub.s32 %v540, %v542
        %v544 = vrot.slane %v530, %v543
        %v545 = vcombine.high %v537, %v537
        %v546 = vcombine.high %v544, %v544
        %v547 = vcombine.high %v192, %v192
        %v549 = vunpack.c.l.s4 1983009808
        %v550 = vunpack.c.0.s8 %v549
        %v551 = vlaneseq
        %v552 = vshrl.u32 %v551, 7
        %v553 = vsub.s32 %v550, %v552
        %v554 = vrot.slane %v192, %v553
        %v556 = vunpack.c.l.s4 1983009808
        %v557 = vunpack.c.0.s8 %v556
        %v558 = vlaneseq
        %v559 = vshrl.u32 %v558, 7
        %v560 = vsub.s32 %v557, %v559
        %v561 = vrot.slane %v547, %v560
        %v562 = vcombine.high %v554, %v554
        %v563 = vcombine.high %v193, %v193
        %v565 = vunpack.c.l.s4 1983009808
        %v566 = vunpack.c.0.s8 %v565
        %v567 = vlaneseq
        %v568 = vshrl.u32 %v567, 7
        %v569 = vsub.s32 %v566, %v568
        %v570 = vrot.slane %v193, %v569
        %v572 = vunpack.c.l.s4 1983009808
        %v573 = vunpack.c.0.s8 %v572
        %v574 = vlaneseq
        %v575 = vshrl.u32 %v574, 7
        %v576 = vsub.s32 %v573, %v575
        %v577 = vrot.slane %v563, %v576
        %v578 = vcombine.high %v570, %v570
        %v579 = vcombine.high %v577, %v577
        %v580 = vcombine.high %v194, %v194
        %v582 = vunpack.c.l.s4 1983009808
        %v583 = vunpack.c.0.s8 %v582
        %v584 = vlaneseq
        %v585 = vshrl.u32 %v584, 7
        %v586 = vsub.s32 %v583, %v585
        %v587 = vrot.slane %v194, %v586
        %v589 = vunpack.c.l.s4 1983009808
        %v590 = vunpack.c.0.s8 %v589
        %v591 = vlaneseq
        %v592 = vshrl.u32 %v591, 7
        %v593 = vsub.s32 %v590, %v592
        %v594 = vrot.slane %v580, %v593
        %v595 = vcombine.high %v587, %v587
        %v596 = vcombine.high %v195, %v195
        %v598 = vunpack.c.l.s4 1983009808
        %v599 = vunpack.c.0.s8 %v598
        %v600 = vlaneseq
        %v601 = vshrl.u32 %v600, 7
        %v602 = vsub.s32 %v599, %v601
        %v603 = vrot.slane %v195, %v602
        %v605 = vunpack.c.l.s4 1983009808
        %v606 = vunpack.c.0.s8 %v605
        %v607 = vlaneseq
        %v608 = vshrl.u32 %v607, 7
        %v609 = vsub.s32 %v606, %v608
        %v610 = vrot.slane %v596, %v609
        %v611 = vcombine.high %v603, %v603
        %v612 = vcombine.high %v610, %v610
        %v613 = vcombine.high %v196, %v196
        %v615 = vunpack.c.l.s4 1983009808
        %v616 = vunpack.c.0.s8 %v615
        %v617 = vlaneseq
        %v618 = vshrl.u32 %v617, 7
        %v619 = vsub.s32 %v616, %v618
        %v620 = vrot.slane %v196, %v619
        %v622 = vunpack.c.l.s4 1983009808
        %v623 = vunpack.c.0.s8 %v622
        %v624 = vlaneseq
        %v625 = vshrl.u32 %v624, 7
        %v626 = vsub.s32 %v623, %v625
        %v627 = vrot.slane %v613, %v626
        %v628 = vcombine.high %v620, %v620
        %v629 = vcombine.high %v197, %v197
        %v631 = vunpack.c.l.s4 1983009808
        %v632 = vunpack.c.0.s8 %v631
        %v633 = vlaneseq
        %v634 = vshrl.u32 %v633, 7
        %v635 = vsub.s32 %v632, %v634
        %v636 = vrot.slane %v197, %v635
        %v638 = vunpack.c.l.s4 1983009808
        %v639 = vunpack.c.0.s8 %v638
        %v640 = vlaneseq
        %v641 = vshrl.u32 %v640, 7
        %v642 = vsub.s32 %v639, %v641
        %v643 = vrot.slane %v629, %v642
        %v644 = vcombine.high %v636, %v636
        %v645 = vcombine.high %v643, %v643
        %v646 = vcombine.high %v198, %v198
        %v648 = vunpack.c.l.s4 1983009808
        %v649 = vunpack.c.0.s8 %v648
        %v650 = vlaneseq
        %v651 = vshrl.u32 %v650, 7
        %v652 = vsub.s32 %v649, %v651
        %v653 = vrot.slane %v198, %v652
        %v655 = vunpack.c.l.s4 1983009808
        %v656 = vunpack.c.0.s8 %v655
        %v657 = vlaneseq
        %v658 = vshrl.u32 %v657, 7
        %v659 = vsub.s32 %v656, %v658
        %v660 = vrot.slane %v646, %v659
        %v661 = vcombine.high %v653, %v653
        %v662 = vcombine.high %v199, %v199
        %v664 = vunpack.c.l.s4 1983009808
        %v665 = vunpack.c.0.s8 %v664
        %v666 = vlaneseq
        %v667 = vshrl.u32 %v666, 7
        %v668 = vsub.s32 %v665, %v667
        %v669 = vrot.slane %v199, %v668
        %v671 = vunpack.c.l.s4 1983009808
        %v672 = vunpack.c.0.s8 %v671
        %v673 = vlaneseq
        %v674 = vshrl.u32 %v673, 7
        %v675 = vsub.s32 %v672, %v674
        %v676 = vrot.slane %v662, %v675
        %v677 = vcombine.high %v669, %v669
        %v678 = vcombine.high %v676, %v676
        %v679 = vcombine.high %v200, %v200
        %v681 = vunpack.c.l.s4 1983009808
        %v682 = vunpack.c.0.s8 %v681
        %v683 = vlaneseq
        %v684 = vshrl.u32 %v683, 7
        %v685 = vsub.s32 %v682, %v684
        %v686 = vrot.slane %v200, %v685
        %v688 = vunpack.c.l.s4 1983009808
        %v689 = vunpack.c.0.s8 %v688
        %v690 = vlaneseq
        %v691 = vshrl.u32 %v690, 7
        %v692 = vsub.s32 %v689, %v691
        %v693 = vrot.slane %v679, %v692
        %v694 = vcombine.high %v686, %v686
        %v695 = vcombine.high %v264, %v264
        %v696 = vcombine.high %v297, %v297
        %v697 = vcombine.high %v330, %v330
        %v698 = vcombine.high %v363, %v363
        %v699 = vcombine.high %v396, %v396
        %v700 = vcombine.high %v429, %v429
        %v701 = vcombine.high %v462, %v462
        %v702 = vcombine.high %v495, %v495
        %v703 = vcombine.high %v528, %v528
        %v704 = vcombine.high %v561, %v561
        %v705 = vcombine.high %v594, %v594
        %v706 = vcombine.high %v627, %v627
        %v707 = vcombine.high %v660, %v660
        %v708 = vcombine.high %v693, %v693
        %vm709 = vcmask 1040384
        %vm710 = vcmask 1042434
        %vm711 = vmor %vm709, %vm710
        %vm712 = vcmask 1044484
        %vm713 = vmor %vm711, %vm712
        %vm714 = vcmask 1046534
        %vm715 = vmor %vm713, %vm714
        %v716 = vrot.slane %v240, 7
        %v717 = vrot.slane %v716, 2
        %v718 = vrot.slane %v248, 7
        %v719 = vsel %vm715, %v717, %v718
        %v720 = vrot.slane %v718, 2
        %v721 = vrot.slane %v247, 7
        %v722 = vsel %vm715, %v720, %v721
        %v723 = vrot.slane %v721, 2
        %v724 = vrot.slane %v249, 7
        %v725 = vsel %vm715, %v723, %v724
        %v726 = vrot.slane %v724, 2
        %v727 = vrot.slane %v257, 7
        %v728 = vsel %vm715, %v726, %v727
        %v729 = vrot.slane %v727, 2
        %v730 = vrot.slane %v265, 7
        %v731 = vsel %vm715, %v729, %v730
        %v732 = vrot.slane %v730, 2
        %v733 = vrot.slane %v264, 7
        %v734 = vsel %vm715, %v732, %v733
        %v735 = vrot.slane %v733, 2
        %v736 = vrot.slane %v695, 7
        %v737 = vsel %vm715, %v735, %v736
        %v738 = vrot.slane %v273, 7
        %v739 = vrot.slane %v738, 2
        %v740 = vrot.slane %v281, 7
        %v741 = vsel %vm715, %v739, %v740
        %v742 = vrot.slane %v740, 2
        %v743 = vrot.slane %v280, 7
        %v744 = vsel %vm715, %v742, %v743
        %v745 = vrot.slane %v743, 2
        %v746 = vrot.slane %v282, 7
        %v747 = vsel %vm715, %v745, %v746
        %v748 = vrot.slane %v746, 2
        %v749 = vrot.slane %v290, 7
        %v750 = vsel %vm715, %v748, %v749
        %v751 = vrot.slane %v749, 2
        %v752 = vrot.slane %v298, 7
        %v753 = vsel %vm715, %v751, %v752
        %v754 = vrot.slane %v752, 2
        %v755 = vrot.slane %v297, 7
        %v756 = vsel %vm715, %v754, %v755
        %v757 = vrot.slane %v755, 2
        %v758 = vrot.slane %v696, 7
        %v759 = vsel %vm715, %v757, %v758
        %v760 = vrot.slane %v306, 7
        %v761 = vrot.slane %v760, 2
        %v762 = vrot.slane %v314, 7
        %v763 = vsel %vm715, %v761, %v762
        %v764 = vrot.slane %v762, 2
        %v765 = vrot.slane %v313, 7
        %v766 = vsel %vm715, %v764, %v765
        %v767 = vrot.slane %v765, 2
        %v768 = vrot.slane %v315, 7
        %v769 = vsel %vm715, %v767, %v768
        %v770 = vrot.slane %v768, 2
        %v771 = vrot.slane %v323, 7
        %v772 = vsel %vm715, %v770, %v771
        %v773 = vrot.slane %v771, 2
        %v774 = vrot.slane %v331, 7
        %v775 = vsel %vm715, %v773, %v774
        %v776 = vrot.slane %v774, 2
        %v777 = vrot.slane %v330, 7
        %v778 = vsel %vm715, %v776, %v777
        %v779 = vrot.slane %v777, 2
        %v780 = vrot.slane %v697, 7
        %v781 = vsel %vm715, %v779, %v780
        %v782 = vrot.slane %v339, 7
        %v783 = vrot.slane %v782, 2
        %v784 = vrot.slane %v347, 7
        %v785 = vsel %vm715, %v783, %v784
        %v786 = vrot.slane %v784, 2
        %v787 = vrot.slane %v346, 7
        %v788 = vsel %vm715, %v786, %v787
        %v789 = vrot.slane %v787, 2
        %v790 = vrot.slane %v348, 7
        %v791 = vsel %vm715, %v789, %v790
        %v792 = vrot.slane %v790, 2
        %v793 = vrot.slane %v356, 7
        %v794 = vsel %vm715, %v792, %v793
        %v795 = vrot.slane %v793, 2
        %v796 = vrot.slane %v364, 7
        %v797 = vsel %vm715, %v795, %v796
        %v798 = vrot.slane %v796, 2
        %v799 = vrot.slane %v363, 7
        %v800 = vsel %vm715, %v798, %v799
        %v801 = vrot.slane %v799, 2
        %v802 = vrot.slane %v698, 7
        %v803 = vsel %vm715, %v801, %v802
        %v804 = vrot.slane %v372, 7
        %v805 = vrot.slane %v804, 2
        %v806 = vrot.slane %v380, 7
        %v807 = vsel %vm715, %v805, %v806
        %v808 = vrot.slane %v806, 2
        %v809 = vrot.slane %v379, 7
        %v810 = vsel %vm715, %v808, %v809
        %v811 = vrot.slane %v809, 2
        %v812 = vrot.slane %v381, 7
        %v813 = vsel %vm715, %v811, %v812
        %v814 = vrot.slane %v812, 2
        %v815 = vrot.slane %v389, 7
        %v816 = vsel %vm715, %v814, %v815
        %v817 = vrot.slane %v815, 2
        %v818 = vrot.slane %v397, 7
        %v819 = vsel %vm715, %v817, %v818
        %v820 = vrot.slane %v818, 2
        %v821 = vrot.slane %v396, 7
        %v822 = vsel %vm715, %v820, %v821
        %v823 = vrot.slane %v821, 2
        %v824 = vrot.slane %v699, 7
        %v825 = vsel %vm715, %v823, %v824
        %v826 = vrot.slane %v405, 7
        %v827 = vrot.slane %v826, 2
        %v828 = vrot.slane %v413, 7
        %v829 = vsel %vm715, %v827, %v828
        %v830 = vrot.slane %v828, 2
        %v831 = vrot.slane %v412, 7
        %v832 = vsel %vm715, %v830, %v831
        %v833 = vrot.slane %v831, 2
        %v834 = vrot.slane %v414, 7
        %v835 = vsel %vm715, %v833, %v834
        %v836 = vrot.slane %v834, 2
        %v837 = vrot.slane %v422, 7
        %v838 = vsel %vm715, %v836, %v837
        %v839 = vrot.slane %v837, 2
        %v840 = vrot.slane %v430, 7
        %v841 = vsel %vm715, %v839, %v840
        %v842 = vrot.slane %v840, 2
        %v843 = vrot.slane %v429, 7
        %v844 = vsel %vm715, %v842, %v843
        %v845 = vrot.slane %v843, 2
        %v846 = vrot.slane %v700, 7
        %v847 = vsel %vm715, %v845, %v846
        %v848 = vrot.slane %v438, 7
        %v849 = vrot.slane %v848, 2
        %v850 = vrot.slane %v446, 7
        %v851 = vsel %vm715, %v849, %v850
        %v852 = vrot.slane %v850, 2
        %v853 = vrot.slane %v445, 7
        %v854 = vsel %vm715, %v852, %v853
        %v855 = vrot.slane %v853, 2
        %v856 = vrot.slane %v447, 7
        %v857 = vsel %vm715, %v855, %v856
        %v858 = vrot.slane %v856, 2
        %v859 = vrot.slane %v455, 7
        %v860 = vsel %vm715, %v858, %v859
        %v861 = vrot.slane %v859, 2
        %v862 = vrot.slane %v463, 7
        %v863 = vsel %vm715, %v861, %v862
        %v864 = vrot.slane %v862, 2
        %v865 = vrot.slane %v462, 7
        %v866 = vsel %vm715, %v864, %v865
        %v867 = vrot.slane %v865, 2
        %v868 = vrot.slane %v701, 7
        %v869 = vsel %vm715, %v867, %v868
        %v870 = vrot.slane %v471, 7
        %v871 = vrot.slane %v870, 2
        %v872 = vrot.slane %v479, 7
        %v873 = vsel %vm715, %v871, %v872
        %v874 = vrot.slane %v872, 2
        %v875 = vrot.slane %v478, 7
        %v876 = vsel %vm715, %v874, %v875
        %v877 = vrot.slane %v875, 2
        %v878 = vrot.slane %v480, 7
        %v879 = vsel %vm715, %v877, %v878
        %v880 = vrot.slane %v878, 2
        %v881 = vrot.slane %v488, 7
        %v882 = vsel %vm715, %v880, %v881
        %v883 = vrot.slane %v881, 2
        %v884 = vrot.slane %v496, 7
        %v885 = vsel %vm715, %v883, %v884
        %v886 = vrot.slane %v884, 2
        %v887 = vrot.slane %v495, 7
        %v888 = vsel %vm715, %v886, %v887
        %v889 = vrot.slane %v887, 2
        %v890 = vrot.slane %v702, 7
        %v891 = vsel %vm715, %v889, %v890
        %v892 = vrot.slane %v504, 7
        %v893 = vrot.slane %v892, 2
        %v894 = vrot.slane %v512, 7
        %v895 = vsel %vm715, %v893, %v894
        %v896 = vrot.slane %v894, 2
        %v897 = vrot.slane %v511, 7
        %v898 = vsel %vm715, %v896, %v897
        %v899 = vrot.slane %v897, 2
        %v900 = vrot.slane %v513, 7
        %v901 = vsel %vm715, %v899, %v900
        %v902 = vrot.slane %v900, 2
        %v903 = vrot.slane %v521, 7
        %v904 = vsel %vm715, %v902, %v903
        %v905 = vrot.slane %v903, 2
        %v906 = vrot.slane %v529, 7
        %v907 = vsel %vm715, %v905, %v906
        %v908 = vrot.slane %v906, 2
        %v909 = vrot.slane %v528, 7
        %v910 = vsel %vm715, %v908, %v909
        %v911 = vrot.slane %v909, 2
        %v912 = vrot.slane %v703, 7
        %v913 = vsel %vm715, %v911, %v912
        %v914 = vrot.slane %v537, 7
        %v915 = vrot.slane %v914, 2
        %v916 = vrot.slane %v545, 7
        %v917 = vsel %vm715, %v915, %v916
        %v918 = vrot.slane %v916, 2
        %v919 = vrot.slane %v544, 7
        %v920 = vsel %vm715, %v918, %v919
        %v921 = vrot.slane %v919, 2
        %v922 = vrot.slane %v546, 7
        %v923 = vsel %vm715, %v921, %v922
        %v924 = vrot.slane %v922, 2
        %v925 = vrot.slane %v554, 7
        %v926 = vsel %vm715, %v924, %v925
        %v927 = vrot.slane %v925, 2
        %v928 = vrot.slane %v562, 7
        %v929 = vsel %vm715, %v927, %v928
        %v930 = vrot.slane %v928, 2
        %v931 = vrot.slane %v561, 7
        %v932 = vsel %vm715, %v930, %v931
        %v933 = vrot.slane %v931, 2
        %v934 = vrot.slane %v704, 7
        %v935 = vsel %vm715, %v933, %v934
        %v936 = vrot.slane %v570, 7
        %v937 = vrot.slane %v936, 2
        %v938 = vrot.slane %v578, 7
        %v939 = vsel %vm715, %v937, %v938
        %v940 = vrot.slane %v938, 2
        %v941 = vrot.slane %v577, 7
        %v942 = vsel %vm715, %v940, %v941
        %v943 = vrot.slane %v941, 2
        %v944 = vrot.slane %v579, 7
        %v945 = vsel %vm715, %v943, %v944
        %v946 = vrot.slane %v944, 2
        %v947 = vrot.slane %v587, 7
        %v948 = vsel %vm715, %v946, %v947
        %v949 = vrot.slane %v947, 2
        %v950 = vrot.slane %v595, 7
        %v951 = vsel %vm715, %v949, %v950
        %v952 = vrot.slane %v950, 2
        %v953 = vrot.slane %v594, 7
        %v954 = vsel %vm715, %v952, %v953
        %v955 = vrot.slane %v953, 2
        %v956 = vrot.slane %v705, 7
        %v957 = vsel %vm715, %v955, %v956
        %v958 = vrot.slane %v603, 7
        %v959 = vrot.slane %v958, 2
        %v960 = vrot.slane %v611, 7
        %v961 = vsel %vm715, %v959, %v960
        %v962 = vrot.slane %v960, 2
        %v963 = vrot.slane %v610, 7
        %v964 = vsel %vm715, %v962, %v963
        %v965 = vrot.slane %v963, 2
        %v966 = vrot.slane %v612, 7
        %v967 = vsel %vm715, %v965, %v966
        %v968 = vrot.slane %v966, 2
        %v969 = vrot.slane %v620, 7
        %v970 = vsel %vm715, %v968, %v969
        %v971 = vrot.slane %v969, 2
        %v972 = vrot.slane %v628, 7
        %v973 = vsel %vm715, %v971, %v972
        %v974 = vrot.slane %v972, 2
        %v975 = vrot.slane %v627, 7
        %v976 = vsel %vm715, %v974, %v975
        %v977 = vrot.slane %v975, 2
        %v978 = vrot.slane %v706, 7
        %v979 = vsel %vm715, %v977, %v978
        %v980 = vrot.slane %v636, 7
        %v981 = vrot.slane %v980, 2
        %v982 = vrot.slane %v644, 7
        %v983 = vsel %vm715, %v981, %v982
        %v984 = vrot.slane %v982, 2
        %v985 = vrot.slane %v643, 7
        %v986 = vsel %vm715, %v984, %v985
        %v987 = vrot.slane %v985, 2
        %v988 = vrot.slane %v645, 7
        %v989 = vsel %vm715, %v987, %v988
        %v990 = vrot.slane %v988, 2
        %v991 = vrot.slane %v653, 7
        %v992 = vsel %vm715, %v990, %v991
        %v993 = vrot.slane %v991, 2
        %v994 = vrot.slane %v661, 7
        %v995 = vsel %vm715, %v993, %v994
        %v996 = vrot.slane %v994, 2
        %v997 = vrot.slane %v660, 7
        %v998 = vsel %vm715, %v996, %v997
        %v999 = vrot.slane %v997, 2
        %v1000 = vrot.slane %v707, 7
        %v1001 = vsel %vm715, %v999, %v1000
        %v1002 = vrot.slane %v669, 7
        %v1003 = vrot.slane %v1002, 2
        %v1004 = vrot.slane %v677, 7
        %v1005 = vsel %vm715, %v1003, %v1004
        %v1006 = vrot.slane %v1004, 2
        %v1007 = vrot.slane %v676, 7
        %v1008 = vsel %vm715, %v1006, %v1007
        %v1009 = vrot.slane %v1007, 2
        %v1010 = vrot.slane %v678, 7
        %v1011 = vsel %vm715, %v1009, %v1010
        %v1012 = vrot.slane %v1010, 2
        %v1013 = vrot.slane %v686, 7
        %v1014 = vsel %vm715, %v1012, %v1013
        %v1015 = vrot.slane %v1013, 2
        %v1016 = vrot.slane %v694, 7
        %v1017 = vsel %vm715, %v1015, %v1016
        %v1018 = vrot.slane %v1016, 2
        %v1019 = vrot.slane %v693, 7
        %v1020 = vsel %vm715, %v1018, %v1019
        %v1021 = vrot.slane %v1019, 2
        %v1022 = vrot.slane %v708, 7
        %v1023 = vsel %vm715, %v1021, %v1022
        %v1026 = vcombine.high %v201, %v201
        %v1028 = vunpack.c.l.s4 1983009808
        %v1029 = vunpack.c.0.s8 %v1028
        %v1030 = vlaneseq
        %v1031 = vshrl.u32 %v1030, 7
        %v1032 = vsub.s32 %v1029, %v1031
        %v1033 = vrot.slane %v201, %v1032
        %v1035 = vunpack.c.l.s4 1983009808
        %v1036 = vunpack.c.0.s8 %v1035
        %v1037 = vlaneseq
        %v1038 = vshrl.u32 %v1037, 7
        %v1039 = vsub.s32 %v1036, %v1038
        %v1040 = vrot.slane %v1026, %v1039
        %v1041 = vcombine.high %v1033, %v1033
        %v1042 = vcombine.high %v1040, %v1040
        %v1043 = vcombine.high %v202, %v202
        %v1045 = vunpack.c.l.s4 1983009808
        %v1046 = vunpack.c.0.s8 %v1045
        %v1047 = vlaneseq
        %v1048 = vshrl.u32 %v1047, 7
        %v1049 = vsub.s32 %v1046, %v1048
        %v1050 = vrot.slane %v202, %v1049
        %v1052 = vunpack.c.l.s4 1983009808
        %v1053 = vunpack.c.0.s8 %v1052
        %v1054 = vlaneseq
        %v1055 = vshrl.u32 %v1054, 7
        %v1056 = vsub.s32 %v1053, %v1055
        %v1057 = vrot.slane %v1043, %v1056
        %v1058 = vcombine.high %v1050, %v1050
        %v1059 = vcombine.high %v1057, %v1057
        %v1060 = vrot.slane %v1033, 7
        %v1061 = vrot.slane %v1060, 2
        %v1062 = vrot.slane %v1041, 7
        %v1063 = vsel %vm715, %v1061, %v1062
        %v1064 = vrot.slane %v1062, 2
        %v1065 = vrot.slane %v1040, 7
        %v1066 = vsel %vm715, %v1064, %v1065
        %v1067 = vrot.slane %v1065, 2
        %v1068 = vrot.slane %v1042, 7
        %v1069 = vsel %vm715, %v1067, %v1068
        %v1070 = vrot.slane %v1068, 2
        %v1071 = vrot.slane %v1050, 7
        %v1072 = vsel %vm715, %v1070, %v1071
        %v1073 = vrot.slane %v1071, 2
        %v1074 = vrot.slane %v1058, 7
        %v1075 = vsel %vm715, %v1073, %v1074
        %v1076 = vrot.slane %v1074, 2
        %v1077 = vrot.slane %v1057, 7
        %v1078 = vsel %vm715, %v1076, %v1077
        %v1079 = vrot.slane %v1077, 2
        %v1080 = vrot.slane %v1059, 7
        %v1081 = vsel %vm715, %v1079, %v1080
        %v1084 = vcombine.high %v203, %v203
        %v1086 = vunpack.c.l.s4 1983009808
        %v1087 = vunpack.c.0.s8 %v1086
        %v1088 = vlaneseq
        %v1089 = vshrl.u32 %v1088, 7
        %v1090 = vsub.s32 %v1087, %v1089
        %v1091 = vrot.slane %v203, %v1090
        %v1093 = vunpack.c.l.s4 1983009808
        %v1094 = vunpack.c.0.s8 %v1093
        %v1095 = vlaneseq
        %v1096 = vshrl.u32 %v1095, 7
        %v1097 = vsub.s32 %v1094, %v1096
        %v1098 = vrot.slane %v1084, %v1097
        %v1099 = vcombine.high %v1091, %v1091
        %v1100 = vcombine.high %v1098, %v1098
        %v1101 = vcombine.high %v204, %v204
        %v1103 = vunpack.c.l.s4 1983009808
        %v1104 = vunpack.c.0.s8 %v1103
        %v1105 = vlaneseq
        %v1106 = vshrl.u32 %v1105, 7
        %v1107 = vsub.s32 %v1104, %v1106
        %v1108 = vrot.slane %v204, %v1107
        %v1110 = vunpack.c.l.s4 1983009808
        %v1111 = vunpack.c.0.s8 %v1110
        %v1112 = vlaneseq
        %v1113 = vshrl.u32 %v1112, 7
        %v1114 = vsub.s32 %v1111, %v1113
        %v1115 = vrot.slane %v1101, %v1114
        %v1116 = vcombine.high %v1108, %v1108
        %v1117 = vcombine.high %v1115, %v1115
        %v1118 = vrot.slane %v1091, 7
        %v1119 = vrot.slane %v1118, 2
        %v1120 = vrot.slane %v1099, 7
        %v1121 = vsel %vm715, %v1119, %v1120
        %v1122 = vrot.slane %v1120, 2
        %v1123 = vrot.slane %v1098, 7
        %v1124 = vsel %vm715, %v1122, %v1123
        %v1125 = vrot.slane %v1123, 2
        %v1126 = vrot.slane %v1100, 7
        %v1127 = vsel %vm715, %v1125, %v1126
        %v1128 = vrot.slane %v1126, 2
        %v1129 = vrot.slane %v1108, 7
        %v1130 = vsel %vm715, %v1128, %v1129
        %v1131 = vrot.slane %v1129, 2
        %v1132 = vrot.slane %v1116, 7
        %v1133 = vsel %vm715, %v1131, %v1132
        %v1134 = vrot.slane %v1132, 2
        %v1135 = vrot.slane %v1115, 7
        %v1136 = vsel %vm715, %v1134, %v1135
        %v1137 = vrot.slane %v1135, 2
        %v1138 = vrot.slane %v1117, 7
        %v1139 = vsel %vm715, %v1137, %v1138
        %v1140 = vcombine.low %v240, %v248
        %v1141 = vcombine.low %v247, %v249
        %v1143 = vunpack.c.l.s4 1983009808
        %v1144 = vunpack.c.0.s8 %v1143
        %v1145 = vlaneseq
        %v1146 = vshrl.u32 %v1145, 7
        %v1147 = vsub.s32 %v1144, %v1146
        %v1148 = vrot.slane %v1140, %v1147
        %v1150 = vunpack.c.l.s4 1983009808
        %v1151 = vunpack.c.0.s8 %v1150
        %v1152 = vlaneseq
        %v1153 = vshrl.u32 %v1152, 7
        %v1154 = vsub.s32 %v1151, %v1153
        %v1155 = vrot.slane %v1141, %v1154
        %v1156 = vcombine.low %v1148, %v1155
        %v1157 = vcombine.low %v257, %v265
        %v1158 = vcombine.low %v264, %v273
        %v1160 = vunpack.c.l.s4 1983009808
        %v1161 = vunpack.c.0.s8 %v1160
        %v1162 = vlaneseq
        %v1163 = vshrl.u32 %v1162, 7
        %v1164 = vsub.s32 %v1161, %v1163
        %v1165 = vrot.slane %v1157, %v1164
        %v1167 = vunpack.c.l.s4 1983009808
        %v1168 = vunpack.c.0.s8 %v1167
        %v1169 = vlaneseq
        %v1170 = vshrl.u32 %v1169, 7
        %v1171 = vsub.s32 %v1168, %v1170
        %v1172 = vrot.slane %v1158, %v1171
        %v1173 = vcombine.low %v1165, %v1172
        %v1174 = vcombine.low %v281, %v280
        %v1175 = vcombine.low %v282, %v290
        %v1177 = vunpack.c.l.s4 1983009808
        %v1178 = vunpack.c.0.s8 %v1177
        %v1179 = vlaneseq
        %v1180 = vshrl.u32 %v1179, 7
        %v1181 = vsub.s32 %v1178, %v1180
        %v1182 = vrot.slane %v1174, %v1181
        %v1184 = vunpack.c.l.s4 1983009808
        %v1185 = vunpack.c.0.s8 %v1184
        %v1186 = vlaneseq
        %v1187 = vshrl.u32 %v1186, 7
        %v1188 = vsub.s32 %v1185, %v1187
        %v1189 = vrot.slane %v1175, %v1188
        %v1190 = vcombine.low %v1182, %v1189
        %v1191 = vcombine.low %v298, %v297
        %v1192 = vcombine.low %v306, %v314
        %v1194 = vunpack.c.l.s4 1983009808
        %v1195 = vunpack.c.0.s8 %v1194
        %v1196 = vlaneseq
        %v1197 = vshrl.u32 %v1196, 7
        %v1198 = vsub.s32 %v1195, %v1197
        %v1199 = vrot.slane %v1191, %v1198
        %v1201 = vunpack.c.l.s4 1983009808
        %v1202 = vunpack.c.0.s8 %v1201
        %v1203 = vlaneseq
        %v1204 = vshrl.u32 %v1203, 7
        %v1205 = vsub.s32 %v1202, %v1204
        %v1206 = vrot.slane %v1192, %v1205
        %v1207 = vcombine.low %v1199, %v1206
        %v1208 = vcombine.low %v313, %v315
        %v1209 = vcombine.low %v323, %v331
        %v1211 = vunpack.c.l.s4 1983009808
        %v1212 = vunpack.c.0.s8 %v1211
        %v1213 = vlaneseq
        %v1214 = vshrl.u32 %v1213, 7
        %v1215 = vsub.s32 %v1212, %v1214
        %v1216 = vrot.slane %v1208, %v1215
        %v1218 = vunpack.c.l.s4 1983009808
        %v1219 = vunpack.c.0.s8 %v1218
        %v1220 = vlaneseq
        %v1221 = vshrl.u32 %v1220, 7
        %v1222 = vsub.s32 %v1219, %v1221
        %v1223 = vrot.slane %v1209, %v1222
        %v1224 = vcombine.low %v1216, %v1223
        %v1225 = vcombine.low %v330, %v339
        %v1226 = vcombine.low %v347, %v346
        %v1228 = vunpack.c.l.s4 1983009808
        %v1229 = vunpack.c.0.s8 %v1228
        %v1230 = vlaneseq
        %v1231 = vshrl.u32 %v1230, 7
        %v1232 = vsub.s32 %v1229, %v1231
        %v1233 = vrot.slane %v1225, %v1232
        %v1235 = vunpack.c.l.s4 1983009808
        %v1236 = vunpack.c.0.s8 %v1235
        %v1237 = vlaneseq
        %v1238 = vshrl.u32 %v1237, 7
        %v1239 = vsub.s32 %v1236, %v1238
        %v1240 = vrot.slane %v1226, %v1239
        %v1241 = vcombine.low %v1233, %v1240
        %v1242 = vcombine.low %v348, %v356
        %v1243 = vcombine.low %v364, %v363
        %v1245 = vunpack.c.l.s4 1983009808
        %v1246 = vunpack.c.0.s8 %v1245
        %v1247 = vlaneseq
        %v1248 = vshrl.u32 %v1247, 7
        %v1249 = vsub.s32 %v1246, %v1248
        %v1250 = vrot.slane %v1242, %v1249
        %v1252 = vunpack.c.l.s4 1983009808
        %v1253 = vunpack.c.0.s8 %v1252
        %v1254 = vlaneseq
        %v1255 = vshrl.u32 %v1254, 7
        %v1256 = vsub.s32 %v1253, %v1255
        %v1257 = vrot.slane %v1243, %v1256
        %v1258 = vcombine.low %v1250, %v1257
        %v1259 = vcombine.low %v372, %v380
        %v1260 = vcombine.low %v379, %v381
        %v1262 = vunpack.c.l.s4 1983009808
        %v1263 = vunpack.c.0.s8 %v1262
        %v1264 = vlaneseq
        %v1265 = vshrl.u32 %v1264, 7
        %v1266 = vsub.s32 %v1263, %v1265
        %v1267 = vrot.slane %v1259, %v1266
        %v1269 = vunpack.c.l.s4 1983009808
        %v1270 = vunpack.c.0.s8 %v1269
        %v1271 = vlaneseq
        %v1272 = vshrl.u32 %v1271, 7
        %v1273 = vsub.s32 %v1270, %v1272
        %v1274 = vrot.slane %v1260, %v1273
        %v1275 = vcombine.low %v1267, %v1274
        %v1276 = vcombine.low %v389, %v397
        %v1277 = vcombine.low %v396, %v405
        %v1279 = vunpack.c.l.s4 1983009808
        %v1280 = vunpack.c.0.s8 %v1279
        %v1281 = vlaneseq
        %v1282 = vshrl.u32 %v1281, 7
        %v1283 = vsub.s32 %v1280, %v1282
        %v1284 = vrot.slane %v1276, %v1283
        %v1286 = vunpack.c.l.s4 1983009808
        %v1287 = vunpack.c.0.s8 %v1286
        %v1288 = vlaneseq
        %v1289 = vshrl.u32 %v1288, 7
        %v1290 = vsub.s32 %v1287, %v1289
        %v1291 = vrot.slane %v1277, %v1290
        %v1292 = vcombine.low %v1284, %v1291
        %v1293 = vcombine.low %v413, %v412
        %v1294 = vcombine.low %v414, %v422
        %v1296 = vunpack.c.l.s4 1983009808
        %v1297 = vunpack.c.0.s8 %v1296
        %v1298 = vlaneseq
        %v1299 = vshrl.u32 %v1298, 7
        %v1300 = vsub.s32 %v1297, %v1299
        %v1301 = vrot.slane %v1293, %v1300
        %v1303 = vunpack.c.l.s4 1983009808
        %v1304 = vunpack.c.0.s8 %v1303
        %v1305 = vlaneseq
        %v1306 = vshrl.u32 %v1305, 7
        %v1307 = vsub.s32 %v1304, %v1306
        %v1308 = vrot.slane %v1294, %v1307
        %v1309 = vcombine.low %v1301, %v1308
        %v1310 = vcombine.low %v430, %v429
        %v1311 = vcombine.low %v438, %v446
        %v1313 = vunpack.c.l.s4 1983009808
        %v1314 = vunpack.c.0.s8 %v1313
        %v1315 = vlaneseq
        %v1316 = vshrl.u32 %v1315, 7
        %v1317 = vsub.s32 %v1314, %v1316
        %v1318 = vrot.slane %v1310, %v1317
        %v1320 = vunpack.c.l.s4 1983009808
        %v1321 = vunpack.c.0.s8 %v1320
        %v1322 = vlaneseq
        %v1323 = vshrl.u32 %v1322, 7
        %v1324 = vsub.s32 %v1321, %v1323
        %v1325 = vrot.slane %v1311, %v1324
        %v1326 = vcombine.low %v1318, %v1325
        %v1327 = vcombine.low %v445, %v447
        %v1328 = vcombine.low %v455, %v463
        %v1330 = vunpack.c.l.s4 1983009808
        %v1331 = vunpack.c.0.s8 %v1330
        %v1332 = vlaneseq
        %v1333 = vshrl.u32 %v1332, 7
        %v1334 = vsub.s32 %v1331, %v1333
        %v1335 = vrot.slane %v1327, %v1334
        %v1337 = vunpack.c.l.s4 1983009808
        %v1338 = vunpack.c.0.s8 %v1337
        %v1339 = vlaneseq
        %v1340 = vshrl.u32 %v1339, 7
        %v1341 = vsub.s32 %v1338, %v1340
        %v1342 = vrot.slane %v1328, %v1341
        %v1343 = vcombine.low %v1335, %v1342
        %v1344 = vcombine.low %v462, %v471
        %v1345 = vcombine.low %v479, %v478
        %v1347 = vunpack.c.l.s4 1983009808
        %v1348 = vunpack.c.0.s8 %v1347
        %v1349 = vlaneseq
        %v1350 = vshrl.u32 %v1349, 7
        %v1351 = vsub.s32 %v1348, %v1350
        %v1352 = vrot.slane %v1344, %v1351
        %v1354 = vunpack.c.l.s4 1983009808
        %v1355 = vunpack.c.0.s8 %v1354
        %v1356 = vlaneseq
        %v1357 = vshrl.u32 %v1356, 7
        %v1358 = vsub.s32 %v1355, %v1357
        %v1359 = vrot.slane %v1345, %v1358
        %v1360 = vcombine.low %v1352, %v1359
        %v1361 = vcombine.low %v480, %v488
        %v1362 = vcombine.low %v496, %v495
        %v1364 = vunpack.c.l.s4 1983009808
        %v1365 = vunpack.c.0.s8 %v1364
        %v1366 = vlaneseq
        %v1367 = vshrl.u32 %v1366, 7
        %v1368 = vsub.s32 %v1365, %v1367
        %v1369 = vrot.slane %v1361, %v1368
        %v1371 = vunpack.c.l.s4 1983009808
        %v1372 = vunpack.c.0.s8 %v1371
        %v1373 = vlaneseq
        %v1374 = vshrl.u32 %v1373, 7
        %v1375 = vsub.s32 %v1372, %v1374
        %v1376 = vrot.slane %v1362, %v1375
        %v1377 = vcombine.low %v1369, %v1376
        %v1378 = vcombine.low %v504, %v512
        %v1379 = vcombine.low %v511, %v513
        %v1381 = vunpack.c.l.s4 1983009808
        %v1382 = vunpack.c.0.s8 %v1381
        %v1383 = vlaneseq
        %v1384 = vshrl.u32 %v1383, 7
        %v1385 = vsub.s32 %v1382, %v1384
        %v1386 = vrot.slane %v1378, %v1385
        %v1388 = vunpack.c.l.s4 1983009808
        %v1389 = vunpack.c.0.s8 %v1388
        %v1390 = vlaneseq
        %v1391 = vshrl.u32 %v1390, 7
        %v1392 = vsub.s32 %v1389, %v1391
        %v1393 = vrot.slane %v1379, %v1392
        %v1394 = vcombine.low %v1386, %v1393
        %v1395 = vcombine.low %v521, %v529
        %v1396 = vcombine.low %v528, %v537
        %v1398 = vunpack.c.l.s4 1983009808
        %v1399 = vunpack.c.0.s8 %v1398
        %v1400 = vlaneseq
        %v1401 = vshrl.u32 %v1400, 7
        %v1402 = vsub.s32 %v1399, %v1401
        %v1403 = vrot.slane %v1395, %v1402
        %v1405 = vunpack.c.l.s4 1983009808
        %v1406 = vunpack.c.0.s8 %v1405
        %v1407 = vlaneseq
        %v1408 = vshrl.u32 %v1407, 7
        %v1409 = vsub.s32 %v1406, %v1408
        %v1410 = vrot.slane %v1396, %v1409
        %v1411 = vcombine.low %v1403, %v1410
        %v1412 = vcombine.low %v545, %v544
        %v1413 = vcombine.low %v546, %v554
        %v1415 = vunpack.c.l.s4 1983009808
        %v1416 = vunpack.c.0.s8 %v1415
        %v1417 = vlaneseq
        %v1418 = vshrl.u32 %v1417, 7
        %v1419 = vsub.s32 %v1416, %v1418
        %v1420 = vrot.slane %v1412, %v1419
        %v1422 = vunpack.c.l.s4 1983009808
        %v1423 = vunpack.c.0.s8 %v1422
        %v1424 = vlaneseq
        %v1425 = vshrl.u32 %v1424, 7
        %v1426 = vsub.s32 %v1423, %v1425
        %v1427 = vrot.slane %v1413, %v1426
        %v1428 = vcombine.low %v1420, %v1427
        %v1429 = vcombine.low %v562, %v561
        %v1430 = vcombine.low %v570, %v578
        %v1432 = vunpack.c.l.s4 1983009808
        %v1433 = vunpack.c.0.s8 %v1432
        %v1434 = vlaneseq
        %v1435 = vshrl.u32 %v1434, 7
        %v1436 = vsub.s32 %v1433, %v1435
        %v1437 = vrot.slane %v1429, %v1436
        %v1439 = vunpack.c.l.s4 1983009808
        %v1440 = vunpack.c.0.s8 %v1439
        %v1441 = vlaneseq
        %v1442 = vshrl.u32 %v1441, 7
        %v1443 = vsub.s32 %v1440, %v1442
        %v1444 = vrot.slane %v1430, %v1443
        %v1445 = vcombine.low %v1437, %v1444
        %v1446 = vcombine.low %v577, %v579
        %v1447 = vcombine.low %v587, %v595
        %v1449 = vunpack.c.l.s4 1983009808
        %v1450 = vunpack.c.0.s8 %v1449
        %v1451 = vlaneseq
        %v1452 = vshrl.u32 %v1451, 7
        %v1453 = vsub.s32 %v1450, %v1452
        %v1454 = vrot.slane %v1446, %v1453
        %v1456 = vunpack.c.l.s4 1983009808
        %v1457 = vunpack.c.0.s8 %v1456
        %v1458 = vlaneseq
        %v1459 = vshrl.u32 %v1458, 7
        %v1460 = vsub.s32 %v1457, %v1459
        %v1461 = vrot.slane %v1447, %v1460
        %v1462 = vcombine.low %v1454, %v1461
        %v1463 = vcombine.low %v594, %v603
        %v1464 = vcombine.low %v611, %v610
        %v1466 = vunpack.c.l.s4 1983009808
        %v1467 = vunpack.c.0.s8 %v1466
        %v1468 = vlaneseq
        %v1469 = vshrl.u32 %v1468, 7
        %v1470 = vsub.s32 %v1467, %v1469
        %v1471 = vrot.slane %v1463, %v1470
        %v1473 = vunpack.c.l.s4 1983009808
        %v1474 = vunpack.c.0.s8 %v1473
        %v1475 = vlaneseq
        %v1476 = vshrl.u32 %v1475, 7
        %v1477 = vsub.s32 %v1474, %v1476
        %v1478 = vrot.slane %v1464, %v1477
        %v1479 = vcombine.low %v1471, %v1478
        %v1480 = vcombine.low %v612, %v620
        %v1481 = vcombine.low %v628, %v627
        %v1483 = vunpack.c.l.s4 1983009808
        %v1484 = vunpack.c.0.s8 %v1483
        %v1485 = vlaneseq
        %v1486 = vshrl.u32 %v1485, 7
        %v1487 = vsub.s32 %v1484, %v1486
        %v1488 = vrot.slane %v1480, %v1487
        %v1490 = vunpack.c.l.s4 1983009808
        %v1491 = vunpack.c.0.s8 %v1490
        %v1492 = vlaneseq
        %v1493 = vshrl.u32 %v1492, 7
        %v1494 = vsub.s32 %v1491, %v1493
        %v1495 = vrot.slane %v1481, %v1494
        %v1496 = vcombine.low %v1488, %v1495
        %v1497 = vcombine.low %v636, %v644
        %v1498 = vcombine.low %v643, %v645
        %v1500 = vunpack.c.l.s4 1983009808
        %v1501 = vunpack.c.0.s8 %v1500
        %v1502 = vlaneseq
        %v1503 = vshrl.u32 %v1502, 7
        %v1504 = vsub.s32 %v1501, %v1503
        %v1505 = vrot.slane %v1497, %v1504
        %v1507 = vunpack.c.l.s4 1983009808
        %v1508 = vunpack.c.0.s8 %v1507
        %v1509 = vlaneseq
        %v1510 = vshrl.u32 %v1509, 7
        %v1511 = vsub.s32 %v1508, %v1510
        %v1512 = vrot.slane %v1498, %v1511
        %v1513 = vcombine.low %v1505, %v1512
        %v1514 = vcombine.low %v653, %v661
        %v1515 = vcombine.low %v660, %v669
        %v1517 = vunpack.c.l.s4 1983009808
        %v1518 = vunpack.c.0.s8 %v1517
        %v1519 = vlaneseq
        %v1520 = vshrl.u32 %v1519, 7
        %v1521 = vsub.s32 %v1518, %v1520
        %v1522 = vrot.slane %v1514, %v1521
        %v1524 = vunpack.c.l.s4 1983009808
        %v1525 = vunpack.c.0.s8 %v1524
        %v1526 = vlaneseq
        %v1527 = vshrl.u32 %v1526, 7
        %v1528 = vsub.s32 %v1525, %v1527
        %v1529 = vrot.slane %v1515, %v1528
        %v1530 = vcombine.low %v1522, %v1529
        %v1531 = vcombine.low %v677, %v676
        %v1532 = vcombine.low %v678, %v686
        %v1534 = vunpack.c.l.s4 1983009808
        %v1535 = vunpack.c.0.s8 %v1534
        %v1536 = vlaneseq
        %v1537 = vshrl.u32 %v1536, 7
        %v1538 = vsub.s32 %v1535, %v1537
        %v1539 = vrot.slane %v1531, %v1538
        %v1541 = vunpack.c.l.s4 1983009808
        %v1542 = vunpack.c.0.s8 %v1541
        %v1543 = vlaneseq
        %v1544 = vshrl.u32 %v1543, 7
        %v1545 = vsub.s32 %v1542, %v1544
        %v1546 = vrot.slane %v1532, %v1545
        %v1547 = vcombine.low %v1539, %v1546
        %v1548 = vcombine.low %v694, %v693
        %v1550 = vunpack.c.l.s4 1983009808
        %v1551 = vunpack.c.0.s8 %v1550
        %v1552 = vlaneseq
        %v1553 = vshrl.u32 %v1552, 7
        %v1554 = vsub.s32 %v1551, %v1553
        %v1555 = vrot.slane %v1548, %v1554
        %v1581 = vcombine.low %v719, %v722
        %v1582 = vcombine.low %v725, %v728
        %v1584 = vunpack.c.l.s4 1983009808
        %v1585 = vunpack.c.0.s8 %v1584
        %v1586 = vlaneseq
        %v1587 = vshrl.u32 %v1586, 7
        %v1588 = vsub.s32 %v1585, %v1587
        %v1589 = vrot.slane %v1581, %v1588
        %v1591 = vunpack.c.l.s4 1983009808
        %v1592 = vunpack.c.0.s8 %v1591
        %v1593 = vlaneseq
        %v1594 = vshrl.u32 %v1593, 7
        %v1595 = vsub.s32 %v1592, %v1594
        %v1596 = vrot.slane %v1582, %v1595
        %v1597 = vcombine.low %v1589, %v1596
        %v1598 = vcombine.low %v731, %v734
        %v1599 = vcombine.low %v737, %v741
        %v1601 = vunpack.c.l.s4 1983009808
        %v1602 = vunpack.c.0.s8 %v1601
        %v1603 = vlaneseq
        %v1604 = vshrl.u32 %v1603, 7
        %v1605 = vsub.s32 %v1602, %v1604
        %v1606 = vrot.slane %v1598, %v1605
        %v1608 = vunpack.c.l.s4 1983009808
        %v1609 = vunpack.c.0.s8 %v1608
        %v1610 = vlaneseq
        %v1611 = vshrl.u32 %v1610, 7
        %v1612 = vsub.s32 %v1609, %v1611
        %v1613 = vrot.slane %v1599, %v1612
        %v1614 = vcombine.low %v1606, %v1613
        %v1615 = vcombine.low %v744, %v747
        %v1616 = vcombine.low %v750, %v753
        %v1618 = vunpack.c.l.s4 1983009808
        %v1619 = vunpack.c.0.s8 %v1618
        %v1620 = vlaneseq
        %v1621 = vshrl.u32 %v1620, 7
        %v1622 = vsub.s32 %v1619, %v1621
        %v1623 = vrot.slane %v1615, %v1622
        %v1625 = vunpack.c.l.s4 1983009808
        %v1626 = vunpack.c.0.s8 %v1625
        %v1627 = vlaneseq
        %v1628 = vshrl.u32 %v1627, 7
        %v1629 = vsub.s32 %v1626, %v1628
        %v1630 = vrot.slane %v1616, %v1629
        %v1631 = vcombine.low %v1623, %v1630
        %v1632 = vcombine.low %v756, %v759
        %v1633 = vcombine.low %v763, %v766
        %v1635 = vunpack.c.l.s4 1983009808
        %v1636 = vunpack.c.0.s8 %v1635
        %v1637 = vlaneseq
        %v1638 = vshrl.u32 %v1637, 7
        %v1639 = vsub.s32 %v1636, %v1638
        %v1640 = vrot.slane %v1632, %v1639
        %v1642 = vunpack.c.l.s4 1983009808
        %v1643 = vunpack.c.0.s8 %v1642
        %v1644 = vlaneseq
        %v1645 = vshrl.u32 %v1644, 7
        %v1646 = vsub.s32 %v1643, %v1645
        %v1647 = vrot.slane %v1633, %v1646
        %v1648 = vcombine.low %v1640, %v1647
        %v1649 = vcombine.low %v769, %v772
        %v1650 = vcombine.low %v775, %v778
        %v1652 = vunpack.c.l.s4 1983009808
        %v1653 = vunpack.c.0.s8 %v1652
        %v1654 = vlaneseq
        %v1655 = vshrl.u32 %v1654, 7
        %v1656 = vsub.s32 %v1653, %v1655
        %v1657 = vrot.slane %v1649, %v1656
        %v1659 = vunpack.c.l.s4 1983009808
        %v1660 = vunpack.c.0.s8 %v1659
        %v1661 = vlaneseq
        %v1662 = vshrl.u32 %v1661, 7
        %v1663 = vsub.s32 %v1660, %v1662
        %v1664 = vrot.slane %v1650, %v1663
        %v1665 = vcombine.low %v1657, %v1664
        %v1666 = vcombine.low %v781, %v785
        %v1667 = vcombine.low %v788, %v791
        %v1669 = vunpack.c.l.s4 1983009808
        %v1670 = vunpack.c.0.s8 %v1669
        %v1671 = vlaneseq
        %v1672 = vshrl.u32 %v1671, 7
        %v1673 = vsub.s32 %v1670, %v1672
        %v1674 = vrot.slane %v1666, %v1673
        %v1676 = vunpack.c.l.s4 1983009808
        %v1677 = vunpack.c.0.s8 %v1676
        %v1678 = vlaneseq
        %v1679 = vshrl.u32 %v1678, 7
        %v1680 = vsub.s32 %v1677, %v1679
        %v1681 = vrot.slane %v1667, %v1680
        %v1682 = vcombine.low %v1674, %v1681
        %v1683 = vcombine.low %v794, %v797
        %v1684 = vcombine.low %v800, %v803
        %v1686 = vunpack.c.l.s4 1983009808
        %v1687 = vunpack.c.0.s8 %v1686
        %v1688 = vlaneseq
        %v1689 = vshrl.u32 %v1688, 7
        %v1690 = vsub.s32 %v1687, %v1689
        %v1691 = vrot.slane %v1683, %v1690
        %v1693 = vunpack.c.l.s4 1983009808
        %v1694 = vunpack.c.0.s8 %v1693
        %v1695 = vlaneseq
        %v1696 = vshrl.u32 %v1695, 7
        %v1697 = vsub.s32 %v1694, %v1696
        %v1698 = vrot.slane %v1684, %v1697
        %v1699 = vcombine.low %v1691, %v1698
        %v1700 = vcombine.low %v807, %v810
        %v1701 = vcombine.low %v813, %v816
        %v1703 = vunpack.c.l.s4 1983009808
        %v1704 = vunpack.c.0.s8 %v1703
        %v1705 = vlaneseq
        %v1706 = vshrl.u32 %v1705, 7
        %v1707 = vsub.s32 %v1704, %v1706
        %v1708 = vrot.slane %v1700, %v1707
        %v1710 = vunpack.c.l.s4 1983009808
        %v1711 = vunpack.c.0.s8 %v1710
        %v1712 = vlaneseq
        %v1713 = vshrl.u32 %v1712, 7
        %v1714 = vsub.s32 %v1711, %v1713
        %v1715 = vrot.slane %v1701, %v1714
        %v1716 = vcombine.low %v1708, %v1715
        %v1717 = vcombine.low %v819, %v822
        %v1718 = vcombine.low %v825, %v829
        %v1720 = vunpack.c.l.s4 1983009808
        %v1721 = vunpack.c.0.s8 %v1720
        %v1722 = vlaneseq
        %v1723 = vshrl.u32 %v1722, 7
        %v1724 = vsub.s32 %v1721, %v1723
        %v1725 = vrot.slane %v1717, %v1724
        %v1727 = vunpack.c.l.s4 1983009808
        %v1728 = vunpack.c.0.s8 %v1727
        %v1729 = vlaneseq
        %v1730 = vshrl.u32 %v1729, 7
        %v1731 = vsub.s32 %v1728, %v1730
        %v1732 = vrot.slane %v1718, %v1731
        %v1733 = vcombine.low %v1725, %v1732
        %v1734 = vcombine.low %v832, %v835
        %v1735 = vcombine.low %v838, %v841
        %v1737 = vunpack.c.l.s4 1983009808
        %v1738 = vunpack.c.0.s8 %v1737
        %v1739 = vlaneseq
        %v1740 = vshrl.u32 %v1739, 7
        %v1741 = vsub.s32 %v1738, %v1740
        %v1742 = vrot.slane %v1734, %v1741
        %v1744 = vunpack.c.l.s4 1983009808
        %v1745 = vunpack.c.0.s8 %v1744
        %v1746 = vlaneseq
        %v1747 = vshrl.u32 %v1746, 7
        %v1748 = vsub.s32 %v1745, %v1747
        %v1749 = vrot.slane %v1735, %v1748
        %v1750 = vcombine.low %v1742, %v1749
        %v1751 = vcombine.low %v844, %v847
        %v1752 = vcombine.low %v851, %v854
        %v1754 = vunpack.c.l.s4 1983009808
        %v1755 = vunpack.c.0.s8 %v1754
        %v1756 = vlaneseq
        %v1757 = vshrl.u32 %v1756, 7
        %v1758 = vsub.s32 %v1755, %v1757
        %v1759 = vrot.slane %v1751, %v1758
        %v1761 = vunpack.c.l.s4 1983009808
        %v1762 = vunpack.c.0.s8 %v1761
        %v1763 = vlaneseq
        %v1764 = vshrl.u32 %v1763, 7
        %v1765 = vsub.s32 %v1762, %v1764
        %v1766 = vrot.slane %v1752, %v1765
        %v1767 = vcombine.low %v1759, %v1766
        %v1768 = vcombine.low %v857, %v860
        %v1769 = vcombine.low %v863, %v866
        %v1771 = vunpack.c.l.s4 1983009808
        %v1772 = vunpack.c.0.s8 %v1771
        %v1773 = vlaneseq
        %v1774 = vshrl.u32 %v1773, 7
        %v1775 = vsub.s32 %v1772, %v1774
        %v1776 = vrot.slane %v1768, %v1775
        %v1778 = vunpack.c.l.s4 1983009808
        %v1779 = vunpack.c.0.s8 %v1778
        %v1780 = vlaneseq
        %v1781 = vshrl.u32 %v1780, 7
        %v1782 = vsub.s32 %v1779, %v1781
        %v1783 = vrot.slane %v1769, %v1782
        %v1784 = vcombine.low %v1776, %v1783
        %v1785 = vcombine.low %v869, %v873
        %v1786 = vcombine.low %v876, %v879
        %v1788 = vunpack.c.l.s4 1983009808
        %v1789 = vunpack.c.0.s8 %v1788
        %v1790 = vlaneseq
        %v1791 = vshrl.u32 %v1790, 7
        %v1792 = vsub.s32 %v1789, %v1791
        %v1793 = vrot.slane %v1785, %v1792
        %v1795 = vunpack.c.l.s4 1983009808
        %v1796 = vunpack.c.0.s8 %v1795
        %v1797 = vlaneseq
        %v1798 = vshrl.u32 %v1797, 7
        %v1799 = vsub.s32 %v1796, %v1798
        %v1800 = vrot.slane %v1786, %v1799
        %v1801 = vcombine.low %v1793, %v1800
        %v1802 = vcombine.low %v882, %v885
        %v1803 = vcombine.low %v888, %v891
        %v1805 = vunpack.c.l.s4 1983009808
        %v1806 = vunpack.c.0.s8 %v1805
        %v1807 = vlaneseq
        %v1808 = vshrl.u32 %v1807, 7
        %v1809 = vsub.s32 %v1806, %v1808
        %v1810 = vrot.slane %v1802, %v1809
        %v1812 = vunpack.c.l.s4 1983009808
        %v1813 = vunpack.c.0.s8 %v1812
        %v1814 = vlaneseq
        %v1815 = vshrl.u32 %v1814, 7
        %v1816 = vsub.s32 %v1813, %v1815
        %v1817 = vrot.slane %v1803, %v1816
        %v1818 = vcombine.low %v1810, %v1817
        %v1819 = vcombine.low %v895, %v898
        %v1820 = vcombine.low %v901, %v904
        %v1822 = vunpack.c.l.s4 1983009808
        %v1823 = vunpack.c.0.s8 %v1822
        %v1824 = vlaneseq
        %v1825 = vshrl.u32 %v1824, 7
        %v1826 = vsub.s32 %v1823, %v1825
        %v1827 = vrot.slane %v1819, %v1826
        %v1829 = vunpack.c.l.s4 1983009808
        %v1830 = vunpack.c.0.s8 %v1829
        %v1831 = vlaneseq
        %v1832 = vshrl.u32 %v1831, 7
        %v1833 = vsub.s32 %v1830, %v1832
        %v1834 = vrot.slane %v1820, %v1833
        %v1835 = vcombine.low %v1827, %v1834
        %v1836 = vcombine.low %v907, %v910
        %v1837 = vcombine.low %v913, %v917
        %v1839 = vunpack.c.l.s4 1983009808
        %v1840 = vunpack.c.0.s8 %v1839
        %v1841 = vlaneseq
        %v1842 = vshrl.u32 %v1841, 7
        %v1843 = vsub.s32 %v1840, %v1842
        %v1844 = vrot.slane %v1836, %v1843
        %v1846 = vunpack.c.l.s4 1983009808
        %v1847 = vunpack.c.0.s8 %v1846
        %v1848 = vlaneseq
        %v1849 = vshrl.u32 %v1848, 7
        %v1850 = vsub.s32 %v1847, %v1849
        %v1851 = vrot.slane %v1837, %v1850
        %v1852 = vcombine.low %v1844, %v1851
        %v1853 = vcombine.low %v920, %v923
        %v1854 = vcombine.low %v926, %v929
        %v1856 = vunpack.c.l.s4 1983009808
        %v1857 = vunpack.c.0.s8 %v1856
        %v1858 = vlaneseq
        %v1859 = vshrl.u32 %v1858, 7
        %v1860 = vsub.s32 %v1857, %v1859
        %v1861 = vrot.slane %v1853, %v1860
        %v1863 = vunpack.c.l.s4 1983009808
        %v1864 = vunpack.c.0.s8 %v1863
        %v1865 = vlaneseq
        %v1866 = vshrl.u32 %v1865, 7
        %v1867 = vsub.s32 %v1864, %v1866
        %v1868 = vrot.slane %v1854, %v1867
        %v1869 = vcombine.low %v1861, %v1868
        %v1870 = vcombine.low %v932, %v935
        %v1871 = vcombine.low %v939, %v942
        %v1873 = vunpack.c.l.s4 1983009808
        %v1874 = vunpack.c.0.s8 %v1873
        %v1875 = vlaneseq
        %v1876 = vshrl.u32 %v1875, 7
        %v1877 = vsub.s32 %v1874, %v1876
        %v1878 = vrot.slane %v1870, %v1877
        %v1880 = vunpack.c.l.s4 1983009808
        %v1881 = vunpack.c.0.s8 %v1880
        %v1882 = vlaneseq
        %v1883 = vshrl.u32 %v1882, 7
        %v1884 = vsub.s32 %v1881, %v1883
        %v1885 = vrot.slane %v1871, %v1884
        %v1886 = vcombine.low %v1878, %v1885
        %v1887 = vcombine.low %v945, %v948
        %v1888 = vcombine.low %v951, %v954
        %v1890 = vunpack.c.l.s4 1983009808
        %v1891 = vunpack.c.0.s8 %v1890
        %v1892 = vlaneseq
        %v1893 = vshrl.u32 %v1892, 7
        %v1894 = vsub.s32 %v1891, %v1893
        %v1895 = vrot.slane %v1887, %v1894
        %v1897 = vunpack.c.l.s4 1983009808
        %v1898 = vunpack.c.0.s8 %v1897
        %v1899 = vlaneseq
        %v1900 = vshrl.u32 %v1899, 7
        %v1901 = vsub.s32 %v1898, %v1900
        %v1902 = vrot.slane %v1888, %v1901
        %v1903 = vcombine.low %v1895, %v1902
        %v1904 = vcombine.low %v957, %v961
        %v1905 = vcombine.low %v964, %v967
        %v1907 = vunpack.c.l.s4 1983009808
        %v1908 = vunpack.c.0.s8 %v1907
        %v1909 = vlaneseq
        %v1910 = vshrl.u32 %v1909, 7
        %v1911 = vsub.s32 %v1908, %v1910
        %v1912 = vrot.slane %v1904, %v1911
        %v1914 = vunpack.c.l.s4 1983009808
        %v1915 = vunpack.c.0.s8 %v1914
        %v1916 = vlaneseq
        %v1917 = vshrl.u32 %v1916, 7
        %v1918 = vsub.s32 %v1915, %v1917
        %v1919 = vrot.slane %v1905, %v1918
        %v1920 = vcombine.low %v1912, %v1919
        %v1921 = vcombine.low %v970, %v973
        %v1922 = vcombine.low %v976, %v979
        %v1924 = vunpack.c.l.s4 1983009808
        %v1925 = vunpack.c.0.s8 %v1924
        %v1926 = vlaneseq
        %v1927 = vshrl.u32 %v1926, 7
        %v1928 = vsub.s32 %v1925, %v1927
        %v1929 = vrot.slane %v1921, %v1928
        %v1931 = vunpack.c.l.s4 1983009808
        %v1932 = vunpack.c.0.s8 %v1931
        %v1933 = vlaneseq
        %v1934 = vshrl.u32 %v1933, 7
        %v1935 = vsub.s32 %v1932, %v1934
        %v1936 = vrot.slane %v1922, %v1935
        %v1937 = vcombine.low %v1929, %v1936
        %v1938 = vcombine.low %v983, %v986
        %v1939 = vcombine.low %v989, %v992
        %v1941 = vunpack.c.l.s4 1983009808
        %v1942 = vunpack.c.0.s8 %v1941
        %v1943 = vlaneseq
        %v1944 = vshrl.u32 %v1943, 7
        %v1945 = vsub.s32 %v1942, %v1944
        %v1946 = vrot.slane %v1938, %v1945
        %v1948 = vunpack.c.l.s4 1983009808
        %v1949 = vunpack.c.0.s8 %v1948
        %v1950 = vlaneseq
        %v1951 = vshrl.u32 %v1950, 7
        %v1952 = vsub.s32 %v1949, %v1951
        %v1953 = vrot.slane %v1939, %v1952
        %v1954 = vcombine.low %v1946, %v1953
        %v1955 = vcombine.low %v995, %v998
        %v1956 = vcombine.low %v1001, %v1005
        %v1958 = vunpack.c.l.s4 1983009808
        %v1959 = vunpack.c.0.s8 %v1958
        %v1960 = vlaneseq
        %v1961 = vshrl.u32 %v1960, 7
        %v1962 = vsub.s32 %v1959, %v1961
        %v1963 = vrot.slane %v1955, %v1962
        %v1965 = vunpack.c.l.s4 1983009808
        %v1966 = vunpack.c.0.s8 %v1965
        %v1967 = vlaneseq
        %v1968 = vshrl.u32 %v1967, 7
        %v1969 = vsub.s32 %v1966, %v1968
        %v1970 = vrot.slane %v1956, %v1969
        %v1971 = vcombine.low %v1963, %v1970
        %v1972 = vcombine.low %v1008, %v1011
        %v1973 = vcombine.low %v1014, %v1017
        %v1975 = vunpack.c.l.s4 1983009808
        %v1976 = vunpack.c.0.s8 %v1975
        %v1977 = vlaneseq
        %v1978 = vshrl.u32 %v1977, 7
        %v1979 = vsub.s32 %v1976, %v1978
        %v1980 = vrot.slane %v1972, %v1979
        %v1982 = vunpack.c.l.s4 1983009808
        %v1983 = vunpack.c.0.s8 %v1982
        %v1984 = vlaneseq
        %v1985 = vshrl.u32 %v1984, 7
        %v1986 = vsub.s32 %v1983, %v1985
        %v1987 = vrot.slane %v1973, %v1986
        %v1988 = vcombine.low %v1980, %v1987
        %v1989 = vcombine.low %v1020, %v1023
        %v1991 = vunpack.c.l.s4 1983009808
        %v1992 = vunpack.c.0.s8 %v1991
        %v1993 = vlaneseq
        %v1994 = vshrl.u32 %v1993, 7
        %v1995 = vsub.s32 %v1992, %v1994
        %v1996 = vrot.slane %v1989, %v1995
        %1997 = vrot.lane.b32.xlu0 %v1597, 4
        %v1998 = vpop.permute.xlu0 %1997
        %1999 = vrot.lane.b32.xlu0 %v1614, 4
        %v2000 = vpop.permute.xlu0 %1999
        %2001 = vrot.lane.b32.xlu0 %v1631, 4
        %v2002 = vpop.permute.xlu0 %2001
        %2003 = vrot.lane.b32.xlu0 %v1648, 4
        %v2004 = vpop.permute.xlu0 %2003
        %2005 = vrot.lane.b32.xlu0 %v1665, 4
        %v2006 = vpop.permute.xlu0 %2005
        %2007 = vrot.lane.b32.xlu0 %v1682, 4
        %v2008 = vpop.permute.xlu0 %2007
        %2009 = vrot.lane.b32.xlu0 %v1699, 4
        %v2010 = vpop.permute.xlu0 %2009
        %2011 = vrot.lane.b32.xlu0 %v1716, 4
        %v2012 = vpop.permute.xlu0 %2011
        %2013 = vrot.lane.b32.xlu0 %v1733, 4
        %v2014 = vpop.permute.xlu0 %2013
        %2015 = vrot.lane.b32.xlu0 %v1750, 4
        %v2016 = vpop.permute.xlu0 %2015
        %2017 = vrot.lane.b32.xlu0 %v1767, 4
        %v2018 = vpop.permute.xlu0 %2017
        %2019 = vrot.lane.b32.xlu0 %v1784, 4
        %v2020 = vpop.permute.xlu0 %2019
        %2021 = vrot.lane.b32.xlu0 %v1801, 4
        %v2022 = vpop.permute.xlu0 %2021
        %2023 = vrot.lane.b32.xlu0 %v1818, 4
        %v2024 = vpop.permute.xlu0 %2023
        %2025 = vrot.lane.b32.xlu0 %v1835, 4
        %v2026 = vpop.permute.xlu0 %2025
        %2027 = vrot.lane.b32.xlu0 %v1852, 4
        %v2028 = vpop.permute.xlu0 %2027
        %2029 = vrot.lane.b32.xlu0 %v1869, 4
        %v2030 = vpop.permute.xlu0 %2029
        %2031 = vrot.lane.b32.xlu0 %v1886, 4
        %v2032 = vpop.permute.xlu0 %2031
        %2033 = vrot.lane.b32.xlu0 %v1903, 4
        %v2034 = vpop.permute.xlu0 %2033
        %2035 = vrot.lane.b32.xlu0 %v1920, 4
        %v2036 = vpop.permute.xlu0 %2035
        %2037 = vrot.lane.b32.xlu0 %v1937, 4
        %v2038 = vpop.permute.xlu0 %2037
        %2039 = vrot.lane.b32.xlu0 %v1954, 4
        %v2040 = vpop.permute.xlu0 %2039
        %2041 = vrot.lane.b32.xlu0 %v1971, 4
        %v2042 = vpop.permute.xlu0 %2041
        %2043 = vrot.lane.b32.xlu0 %v1988, 4
        %v2044 = vpop.permute.xlu0 %2043
        %2045 = vrot.lane.b32.xlu0 %v1996, 4
        %v2046 = vpop.permute.xlu0 %2045
        %v2072 = vcombine.low %v248, %v247
        %v2073 = vcombine.low %v249, %v257
        %v2075 = vunpack.c.l.s4 1983009808
        %v2076 = vunpack.c.0.s8 %v2075
        %v2077 = vlaneseq
        %v2078 = vshrl.u32 %v2077, 7
        %v2079 = vsub.s32 %v2076, %v2078
        %v2080 = vrot.slane %v2072, %v2079
        %v2082 = vunpack.c.l.s4 1983009808
        %v2083 = vunpack.c.0.s8 %v2082
        %v2084 = vlaneseq
        %v2085 = vshrl.u32 %v2084, 7
        %v2086 = vsub.s32 %v2083, %v2085
        %v2087 = vrot.slane %v2073, %v2086
        %v2088 = vcombine.low %v2080, %v2087
        %v2089 = vcombine.low %v265, %v264
        %v2090 = vcombine.low %v695, %v281
        %v2092 = vunpack.c.l.s4 1983009808
        %v2093 = vunpack.c.0.s8 %v2092
        %v2094 = vlaneseq
        %v2095 = vshrl.u32 %v2094, 7
        %v2096 = vsub.s32 %v2093, %v2095
        %v2097 = vrot.slane %v2089, %v2096
        %v2099 = vunpack.c.l.s4 1983009808
        %v2100 = vunpack.c.0.s8 %v2099
        %v2101 = vlaneseq
        %v2102 = vshrl.u32 %v2101, 7
        %v2103 = vsub.s32 %v2100, %v2102
        %v2104 = vrot.slane %v2090, %v2103
        %v2105 = vcombine.low %v2097, %v2104
        %v2106 = vcombine.low %v280, %v282
        %v2107 = vcombine.low %v290, %v298
        %v2109 = vunpack.c.l.s4 1983009808
        %v2110 = vunpack.c.0.s8 %v2109
        %v2111 = vlaneseq
        %v2112 = vshrl.u32 %v2111, 7
        %v2113 = vsub.s32 %v2110, %v2112
        %v2114 = vrot.slane %v2106, %v2113
        %v2116 = vunpack.c.l.s4 1983009808
        %v2117 = vunpack.c.0.s8 %v2116
        %v2118 = vlaneseq
        %v2119 = vshrl.u32 %v2118, 7
        %v2120 = vsub.s32 %v2117, %v2119
        %v2121 = vrot.slane %v2107, %v2120
        %v2122 = vcombine.low %v2114, %v2121
        %v2123 = vcombine.low %v297, %v696
        %v2124 = vcombine.low %v314, %v313
        %v2126 = vunpack.c.l.s4 1983009808
        %v2127 = vunpack.c.0.s8 %v2126
        %v2128 = vlaneseq
        %v2129 = vshrl.u32 %v2128, 7
        %v2130 = vsub.s32 %v2127, %v2129
        %v2131 = vrot.slane %v2123, %v2130
        %v2133 = vunpack.c.l.s4 1983009808
        %v2134 = vunpack.c.0.s8 %v2133
        %v2135 = vlaneseq
        %v2136 = vshrl.u32 %v2135, 7
        %v2137 = vsub.s32 %v2134, %v2136
        %v2138 = vrot.slane %v2124, %v2137
        %v2139 = vcombine.low %v2131, %v2138
        %v2140 = vcombine.low %v315, %v323
        %v2141 = vcombine.low %v331, %v330
        %v2143 = vunpack.c.l.s4 1983009808
        %v2144 = vunpack.c.0.s8 %v2143
        %v2145 = vlaneseq
        %v2146 = vshrl.u32 %v2145, 7
        %v2147 = vsub.s32 %v2144, %v2146
        %v2148 = vrot.slane %v2140, %v2147
        %v2150 = vunpack.c.l.s4 1983009808
        %v2151 = vunpack.c.0.s8 %v2150
        %v2152 = vlaneseq
        %v2153 = vshrl.u32 %v2152, 7
        %v2154 = vsub.s32 %v2151, %v2153
        %v2155 = vrot.slane %v2141, %v2154
        %v2156 = vcombine.low %v2148, %v2155
        %v2157 = vcombine.low %v697, %v347
        %v2158 = vcombine.low %v346, %v348
        %v2160 = vunpack.c.l.s4 1983009808
        %v2161 = vunpack.c.0.s8 %v2160
        %v2162 = vlaneseq
        %v2163 = vshrl.u32 %v2162, 7
        %v2164 = vsub.s32 %v2161, %v2163
        %v2165 = vrot.slane %v2157, %v2164
        %v2167 = vunpack.c.l.s4 1983009808
        %v2168 = vunpack.c.0.s8 %v2167
        %v2169 = vlaneseq
        %v2170 = vshrl.u32 %v2169, 7
        %v2171 = vsub.s32 %v2168, %v2170
        %v2172 = vrot.slane %v2158, %v2171
        %v2173 = vcombine.low %v2165, %v2172
        %v2174 = vcombine.low %v356, %v364
        %v2175 = vcombine.low %v363, %v698
        %v2177 = vunpack.c.l.s4 1983009808
        %v2178 = vunpack.c.0.s8 %v2177
        %v2179 = vlaneseq
        %v2180 = vshrl.u32 %v2179, 7
        %v2181 = vsub.s32 %v2178, %v2180
        %v2182 = vrot.slane %v2174, %v2181
        %v2184 = vunpack.c.l.s4 1983009808
        %v2185 = vunpack.c.0.s8 %v2184
        %v2186 = vlaneseq
        %v2187 = vshrl.u32 %v2186, 7
        %v2188 = vsub.s32 %v2185, %v2187
        %v2189 = vrot.slane %v2175, %v2188
        %v2190 = vcombine.low %v2182, %v2189
        %v2191 = vcombine.low %v380, %v379
        %v2192 = vcombine.low %v381, %v389
        %v2194 = vunpack.c.l.s4 1983009808
        %v2195 = vunpack.c.0.s8 %v2194
        %v2196 = vlaneseq
        %v2197 = vshrl.u32 %v2196, 7
        %v2198 = vsub.s32 %v2195, %v2197
        %v2199 = vrot.slane %v2191, %v2198
        %v2201 = vunpack.c.l.s4 1983009808
        %v2202 = vunpack.c.0.s8 %v2201
        %v2203 = vlaneseq
        %v2204 = vshrl.u32 %v2203, 7
        %v2205 = vsub.s32 %v2202, %v2204
        %v2206 = vrot.slane %v2192, %v2205
        %v2207 = vcombine.low %v2199, %v2206
        %v2208 = vcombine.low %v397, %v396
        %v2209 = vcombine.low %v699, %v413
        %v2211 = vunpack.c.l.s4 1983009808
        %v2212 = vunpack.c.0.s8 %v2211
        %v2213 = vlaneseq
        %v2214 = vshrl.u32 %v2213, 7
        %v2215 = vsub.s32 %v2212, %v2214
        %v2216 = vrot.slane %v2208, %v2215
        %v2218 = vunpack.c.l.s4 1983009808
        %v2219 = vunpack.c.0.s8 %v2218
        %v2220 = vlaneseq
        %v2221 = vshrl.u32 %v2220, 7
        %v2222 = vsub.s32 %v2219, %v2221
        %v2223 = vrot.slane %v2209, %v2222
        %v2224 = vcombine.low %v2216, %v2223
        %v2225 = vcombine.low %v412, %v414
        %v2226 = vcombine.low %v422, %v430
        %v2228 = vunpack.c.l.s4 1983009808
        %v2229 = vunpack.c.0.s8 %v2228
        %v2230 = vlaneseq
        %v2231 = vshrl.u32 %v2230, 7
        %v2232 = vsub.s32 %v2229, %v2231
        %v2233 = vrot.slane %v2225, %v2232
        %v2235 = vunpack.c.l.s4 1983009808
        %v2236 = vunpack.c.0.s8 %v2235
        %v2237 = vlaneseq
        %v2238 = vshrl.u32 %v2237, 7
        %v2239 = vsub.s32 %v2236, %v2238
        %v2240 = vrot.slane %v2226, %v2239
        %v2241 = vcombine.low %v2233, %v2240
        %v2242 = vcombine.low %v429, %v700
        %v2243 = vcombine.low %v446, %v445
        %v2245 = vunpack.c.l.s4 1983009808
        %v2246 = vunpack.c.0.s8 %v2245
        %v2247 = vlaneseq
        %v2248 = vshrl.u32 %v2247, 7
        %v2249 = vsub.s32 %v2246, %v2248
        %v2250 = vrot.slane %v2242, %v2249
        %v2252 = vunpack.c.l.s4 1983009808
        %v2253 = vunpack.c.0.s8 %v2252
        %v2254 = vlaneseq
        %v2255 = vshrl.u32 %v2254, 7
        %v2256 = vsub.s32 %v2253, %v2255
        %v2257 = vrot.slane %v2243, %v2256
        %v2258 = vcombine.low %v2250, %v2257
        %v2259 = vcombine.low %v447, %v455
        %v2260 = vcombine.low %v463, %v462
        %v2262 = vunpack.c.l.s4 1983009808
        %v2263 = vunpack.c.0.s8 %v2262
        %v2264 = vlaneseq
        %v2265 = vshrl.u32 %v2264, 7
        %v2266 = vsub.s32 %v2263, %v2265
        %v2267 = vrot.slane %v2259, %v2266
        %v2269 = vunpack.c.l.s4 1983009808
        %v2270 = vunpack.c.0.s8 %v2269
        %v2271 = vlaneseq
        %v2272 = vshrl.u32 %v2271, 7
        %v2273 = vsub.s32 %v2270, %v2272
        %v2274 = vrot.slane %v2260, %v2273
        %v2275 = vcombine.low %v2267, %v2274
        %v2276 = vcombine.low %v701, %v479
        %v2277 = vcombine.low %v478, %v480
        %v2279 = vunpack.c.l.s4 1983009808
        %v2280 = vunpack.c.0.s8 %v2279
        %v2281 = vlaneseq
        %v2282 = vshrl.u32 %v2281, 7
        %v2283 = vsub.s32 %v2280, %v2282
        %v2284 = vrot.slane %v2276, %v2283
        %v2286 = vunpack.c.l.s4 1983009808
        %v2287 = vunpack.c.0.s8 %v2286
        %v2288 = vlaneseq
        %v2289 = vshrl.u32 %v2288, 7
        %v2290 = vsub.s32 %v2287, %v2289
        %v2291 = vrot.slane %v2277, %v2290
        %v2292 = vcombine.low %v2284, %v2291
        %v2293 = vcombine.low %v488, %v496
        %v2294 = vcombine.low %v495, %v702
        %v2296 = vunpack.c.l.s4 1983009808
        %v2297 = vunpack.c.0.s8 %v2296
        %v2298 = vlaneseq
        %v2299 = vshrl.u32 %v2298, 7
        %v2300 = vsub.s32 %v2297, %v2299
        %v2301 = vrot.slane %v2293, %v2300
        %v2303 = vunpack.c.l.s4 1983009808
        %v2304 = vunpack.c.0.s8 %v2303
        %v2305 = vlaneseq
        %v2306 = vshrl.u32 %v2305, 7
        %v2307 = vsub.s32 %v2304, %v2306
        %v2308 = vrot.slane %v2294, %v2307
        %v2309 = vcombine.low %v2301, %v2308
        %v2310 = vcombine.low %v512, %v511
        %v2311 = vcombine.low %v513, %v521
        %v2313 = vunpack.c.l.s4 1983009808
        %v2314 = vunpack.c.0.s8 %v2313
        %v2315 = vlaneseq
        %v2316 = vshrl.u32 %v2315, 7
        %v2317 = vsub.s32 %v2314, %v2316
        %v2318 = vrot.slane %v2310, %v2317
        %v2320 = vunpack.c.l.s4 1983009808
        %v2321 = vunpack.c.0.s8 %v2320
        %v2322 = vlaneseq
        %v2323 = vshrl.u32 %v2322, 7
        %v2324 = vsub.s32 %v2321, %v2323
        %v2325 = vrot.slane %v2311, %v2324
        %v2326 = vcombine.low %v2318, %v2325
        %v2327 = vcombine.low %v529, %v528
        %v2328 = vcombine.low %v703, %v545
        %v2330 = vunpack.c.l.s4 1983009808
        %v2331 = vunpack.c.0.s8 %v2330
        %v2332 = vlaneseq
        %v2333 = vshrl.u32 %v2332, 7
        %v2334 = vsub.s32 %v2331, %v2333
        %v2335 = vrot.slane %v2327, %v2334
        %v2337 = vunpack.c.l.s4 1983009808
        %v2338 = vunpack.c.0.s8 %v2337
        %v2339 = vlaneseq
        %v2340 = vshrl.u32 %v2339, 7
        %v2341 = vsub.s32 %v2338, %v2340
        %v2342 = vrot.slane %v2328, %v2341
        %v2343 = vcombine.low %v2335, %v2342
        %v2344 = vcombine.low %v544, %v546
        %v2345 = vcombine.low %v554, %v562
        %v2347 = vunpack.c.l.s4 1983009808
        %v2348 = vunpack.c.0.s8 %v2347
        %v2349 = vlaneseq
        %v2350 = vshrl.u32 %v2349, 7
        %v2351 = vsub.s32 %v2348, %v2350
        %v2352 = vrot.slane %v2344, %v2351
        %v2354 = vunpack.c.l.s4 1983009808
        %v2355 = vunpack.c.0.s8 %v2354
        %v2356 = vlaneseq
        %v2357 = vshrl.u32 %v2356, 7
        %v2358 = vsub.s32 %v2355, %v2357
        %v2359 = vrot.slane %v2345, %v2358
        %v2360 = vcombine.low %v2352, %v2359
        %v2361 = vcombine.low %v561, %v704
        %v2362 = vcombine.low %v578, %v577
        %v2364 = vunpack.c.l.s4 1983009808
        %v2365 = vunpack.c.0.s8 %v2364
        %v2366 = vlaneseq
        %v2367 = vshrl.u32 %v2366, 7
        %v2368 = vsub.s32 %v2365, %v2367
        %v2369 = vrot.slane %v2361, %v2368
        %v2371 = vunpack.c.l.s4 1983009808
        %v2372 = vunpack.c.0.s8 %v2371
        %v2373 = vlaneseq
        %v2374 = vshrl.u32 %v2373, 7
        %v2375 = vsub.s32 %v2372, %v2374
        %v2376 = vrot.slane %v2362, %v2375
        %v2377 = vcombine.low %v2369, %v2376
        %v2378 = vcombine.low %v579, %v587
        %v2379 = vcombine.low %v595, %v594
        %v2381 = vunpack.c.l.s4 1983009808
        %v2382 = vunpack.c.0.s8 %v2381
        %v2383 = vlaneseq
        %v2384 = vshrl.u32 %v2383, 7
        %v2385 = vsub.s32 %v2382, %v2384
        %v2386 = vrot.slane %v2378, %v2385
        %v2388 = vunpack.c.l.s4 1983009808
        %v2389 = vunpack.c.0.s8 %v2388
        %v2390 = vlaneseq
        %v2391 = vshrl.u32 %v2390, 7
        %v2392 = vsub.s32 %v2389, %v2391
        %v2393 = vrot.slane %v2379, %v2392
        %v2394 = vcombine.low %v2386, %v2393
        %v2395 = vcombine.low %v705, %v611
        %v2396 = vcombine.low %v610, %v612
        %v2398 = vunpack.c.l.s4 1983009808
        %v2399 = vunpack.c.0.s8 %v2398
        %v2400 = vlaneseq
        %v2401 = vshrl.u32 %v2400, 7
        %v2402 = vsub.s32 %v2399, %v2401
        %v2403 = vrot.slane %v2395, %v2402
        %v2405 = vunpack.c.l.s4 1983009808
        %v2406 = vunpack.c.0.s8 %v2405
        %v2407 = vlaneseq
        %v2408 = vshrl.u32 %v2407, 7
        %v2409 = vsub.s32 %v2406, %v2408
        %v2410 = vrot.slane %v2396, %v2409
        %v2411 = vcombine.low %v2403, %v2410
        %v2412 = vcombine.low %v620, %v628
        %v2413 = vcombine.low %v627, %v706
        %v2415 = vunpack.c.l.s4 1983009808
        %v2416 = vunpack.c.0.s8 %v2415
        %v2417 = vlaneseq
        %v2418 = vshrl.u32 %v2417, 7
        %v2419 = vsub.s32 %v2416, %v2418
        %v2420 = vrot.slane %v2412, %v2419
        %v2422 = vunpack.c.l.s4 1983009808
        %v2423 = vunpack.c.0.s8 %v2422
        %v2424 = vlaneseq
        %v2425 = vshrl.u32 %v2424, 7
        %v2426 = vsub.s32 %v2423, %v2425
        %v2427 = vrot.slane %v2413, %v2426
        %v2428 = vcombine.low %v2420, %v2427
        %v2429 = vcombine.low %v644, %v643
        %v2430 = vcombine.low %v645, %v653
        %v2432 = vunpack.c.l.s4 1983009808
        %v2433 = vunpack.c.0.s8 %v2432
        %v2434 = vlaneseq
        %v2435 = vshrl.u32 %v2434, 7
        %v2436 = vsub.s32 %v2433, %v2435
        %v2437 = vrot.slane %v2429, %v2436
        %v2439 = vunpack.c.l.s4 1983009808
        %v2440 = vunpack.c.0.s8 %v2439
        %v2441 = vlaneseq
        %v2442 = vshrl.u32 %v2441, 7
        %v2443 = vsub.s32 %v2440, %v2442
        %v2444 = vrot.slane %v2430, %v2443
        %v2445 = vcombine.low %v2437, %v2444
        %v2446 = vcombine.low %v661, %v660
        %v2447 = vcombine.low %v707, %v677
        %v2449 = vunpack.c.l.s4 1983009808
        %v2450 = vunpack.c.0.s8 %v2449
        %v2451 = vlaneseq
        %v2452 = vshrl.u32 %v2451, 7
        %v2453 = vsub.s32 %v2450, %v2452
        %v2454 = vrot.slane %v2446, %v2453
        %v2456 = vunpack.c.l.s4 1983009808
        %v2457 = vunpack.c.0.s8 %v2456
        %v2458 = vlaneseq
        %v2459 = vshrl.u32 %v2458, 7
        %v2460 = vsub.s32 %v2457, %v2459
        %v2461 = vrot.slane %v2447, %v2460
        %v2462 = vcombine.low %v2454, %v2461
        %v2463 = vcombine.low %v676, %v678
        %v2464 = vcombine.low %v686, %v694
        %v2466 = vunpack.c.l.s4 1983009808
        %v2467 = vunpack.c.0.s8 %v2466
        %v2468 = vlaneseq
        %v2469 = vshrl.u32 %v2468, 7
        %v2470 = vsub.s32 %v2467, %v2469
        %v2471 = vrot.slane %v2463, %v2470
        %v2473 = vunpack.c.l.s4 1983009808
        %v2474 = vunpack.c.0.s8 %v2473
        %v2475 = vlaneseq
        %v2476 = vshrl.u32 %v2475, 7
        %v2477 = vsub.s32 %v2474, %v2476
        %v2478 = vrot.slane %v2464, %v2477
        %v2479 = vcombine.low %v2471, %v2478
        %v2480 = vcombine.low %v693, %v708
        %v2482 = vunpack.c.l.s4 1983009808
        %v2483 = vunpack.c.0.s8 %v2482
        %v2484 = vlaneseq
        %v2485 = vshrl.u32 %v2484, 7
        %v2486 = vsub.s32 %v2483, %v2485
        %v2487 = vrot.slane %v2480, %v2486
        %2488 = vrot.lane.b32.xlu0 %v2088, 8
        %v2489 = vpop.permute.xlu0 %2488
        %2490 = vrot.lane.b32.xlu0 %v2105, 8
        %v2491 = vpop.permute.xlu0 %2490
        %2492 = vrot.lane.b32.xlu0 %v2122, 8
        %v2493 = vpop.permute.xlu0 %2492
        %2494 = vrot.lane.b32.xlu0 %v2139, 8
        %v2495 = vpop.permute.xlu0 %2494
        %2496 = vrot.lane.b32.xlu0 %v2156, 8
        %v2497 = vpop.permute.xlu0 %2496
        %2498 = vrot.lane.b32.xlu0 %v2173, 8
        %v2499 = vpop.permute.xlu0 %2498
        %2500 = vrot.lane.b32.xlu0 %v2190, 8
        %v2501 = vpop.permute.xlu0 %2500
        %2502 = vrot.lane.b32.xlu0 %v2207, 8
        %v2503 = vpop.permute.xlu0 %2502
        %2504 = vrot.lane.b32.xlu0 %v2224, 8
        %v2505 = vpop.permute.xlu0 %2504
        %2506 = vrot.lane.b32.xlu0 %v2241, 8
        %v2507 = vpop.permute.xlu0 %2506
        %2508 = vrot.lane.b32.xlu0 %v2258, 8
        %v2509 = vpop.permute.xlu0 %2508
        %2510 = vrot.lane.b32.xlu0 %v2275, 8
        %v2511 = vpop.permute.xlu0 %2510
        %2512 = vrot.lane.b32.xlu0 %v2292, 8
        %v2513 = vpop.permute.xlu0 %2512
        %2514 = vrot.lane.b32.xlu0 %v2309, 8
        %v2515 = vpop.permute.xlu0 %2514
        %2516 = vrot.lane.b32.xlu0 %v2326, 8
        %v2517 = vpop.permute.xlu0 %2516
        %2518 = vrot.lane.b32.xlu0 %v2343, 8
        %v2519 = vpop.permute.xlu0 %2518
        %2520 = vrot.lane.b32.xlu0 %v2360, 8
        %v2521 = vpop.permute.xlu0 %2520
        %2522 = vrot.lane.b32.xlu0 %v2377, 8
        %v2523 = vpop.permute.xlu0 %2522
        %2524 = vrot.lane.b32.xlu0 %v2394, 8
        %v2525 = vpop.permute.xlu0 %2524
        %2526 = vrot.lane.b32.xlu0 %v2411, 8
        %v2527 = vpop.permute.xlu0 %2526
        %2528 = vrot.lane.b32.xlu0 %v2428, 8
        %v2529 = vpop.permute.xlu0 %2528
        %2530 = vrot.lane.b32.xlu0 %v2445, 8
        %v2531 = vpop.permute.xlu0 %2530
        %2532 = vrot.lane.b32.xlu0 %v2462, 8
        %v2533 = vpop.permute.xlu0 %2532
        %2534 = vrot.lane.b32.xlu0 %v2479, 8
        %v2535 = vpop.permute.xlu0 %2534
        %2536 = vrot.lane.b32.xlu0 %v2487, 8
        %v2537 = vpop.permute.xlu0 %2536
        %v2563 = vcombine.low %v273, %v281
        %v2565 = vunpack.c.l.s4 1983009808
        %v2566 = vunpack.c.0.s8 %v2565
        %v2567 = vlaneseq
        %v2568 = vshrl.u32 %v2567, 7
        %v2569 = vsub.s32 %v2566, %v2568
        %v2570 = vrot.slane %v2563, %v2569
        %v2571 = vcombine.low %v2570, %v2114
        %v2572 = vcombine.low %v297, %v306
        %v2574 = vunpack.c.l.s4 1983009808
        %v2575 = vunpack.c.0.s8 %v2574
        %v2576 = vlaneseq
        %v2577 = vshrl.u32 %v2576, 7
        %v2578 = vsub.s32 %v2575, %v2577
        %v2579 = vrot.slane %v2572, %v2578
        %v2580 = vcombine.low %v2121, %v2579
        %v2581 = vcombine.low %v2138, %v2148
        %v2582 = vcombine.low %v339, %v347
        %v2584 = vunpack.c.l.s4 1983009808
        %v2585 = vunpack.c.0.s8 %v2584
        %v2586 = vlaneseq
        %v2587 = vshrl.u32 %v2586, 7
        %v2588 = vsub.s32 %v2585, %v2587
        %v2589 = vrot.slane %v2582, %v2588
        %v2590 = vcombine.low %v2155, %v2589
        %v2591 = vcombine.low %v2172, %v2182
        %v2592 = vcombine.low %v363, %v372
        %v2594 = vunpack.c.l.s4 1983009808
        %v2595 = vunpack.c.0.s8 %v2594
        %v2596 = vlaneseq
        %v2597 = vshrl.u32 %v2596, 7
        %v2598 = vsub.s32 %v2595, %v2597
        %v2599 = vrot.slane %v2592, %v2598
        %v2600 = vcombine.low %v2599, %v2199
        %v2601 = vcombine.low %v2206, %v2216
        %v2602 = vcombine.low %v405, %v413
        %v2604 = vunpack.c.l.s4 1983009808
        %v2605 = vunpack.c.0.s8 %v2604
        %v2606 = vlaneseq
        %v2607 = vshrl.u32 %v2606, 7
        %v2608 = vsub.s32 %v2605, %v2607
        %v2609 = vrot.slane %v2602, %v2608
        %v2610 = vcombine.low %v2609, %v2233
        %v2611 = vcombine.low %v429, %v438
        %v2613 = vunpack.c.l.s4 1983009808
        %v2614 = vunpack.c.0.s8 %v2613
        %v2615 = vlaneseq
        %v2616 = vshrl.u32 %v2615, 7
        %v2617 = vsub.s32 %v2614, %v2616
        %v2618 = vrot.slane %v2611, %v2617
        %v2619 = vcombine.low %v2240, %v2618
        %v2620 = vcombine.low %v2257, %v2267
        %v2621 = vcombine.low %v471, %v479
        %v2623 = vunpack.c.l.s4 1983009808
        %v2624 = vunpack.c.0.s8 %v2623
        %v2625 = vlaneseq
        %v2626 = vshrl.u32 %v2625, 7
        %v2627 = vsub.s32 %v2624, %v2626
        %v2628 = vrot.slane %v2621, %v2627
        %v2629 = vcombine.low %v2274, %v2628
        %v2630 = vcombine.low %v2291, %v2301
        %v2631 = vcombine.low %v495, %v504
        %v2633 = vunpack.c.l.s4 1983009808
        %v2634 = vunpack.c.0.s8 %v2633
        %v2635 = vlaneseq
        %v2636 = vshrl.u32 %v2635, 7
        %v2637 = vsub.s32 %v2634, %v2636
        %v2638 = vrot.slane %v2631, %v2637
        %v2639 = vcombine.low %v2638, %v2318
        %v2640 = vcombine.low %v2325, %v2335
        %v2641 = vcombine.low %v537, %v545
        %v2643 = vunpack.c.l.s4 1983009808
        %v2644 = vunpack.c.0.s8 %v2643
        %v2645 = vlaneseq
        %v2646 = vshrl.u32 %v2645, 7
        %v2647 = vsub.s32 %v2644, %v2646
        %v2648 = vrot.slane %v2641, %v2647
        %v2649 = vcombine.low %v2648, %v2352
        %v2650 = vcombine.low %v561, %v570
        %v2652 = vunpack.c.l.s4 1983009808
        %v2653 = vunpack.c.0.s8 %v2652
        %v2654 = vlaneseq
        %v2655 = vshrl.u32 %v2654, 7
        %v2656 = vsub.s32 %v2653, %v2655
        %v2657 = vrot.slane %v2650, %v2656
        %v2658 = vcombine.low %v2359, %v2657
        %v2659 = vcombine.low %v2376, %v2386
        %v2660 = vcombine.low %v603, %v611
        %v2662 = vunpack.c.l.s4 1983009808
        %v2663 = vunpack.c.0.s8 %v2662
        %v2664 = vlaneseq
        %v2665 = vshrl.u32 %v2664, 7
        %v2666 = vsub.s32 %v2663, %v2665
        %v2667 = vrot.slane %v2660, %v2666
        %v2668 = vcombine.low %v2393, %v2667
        %v2669 = vcombine.low %v2410, %v2420
        %v2670 = vcombine.low %v627, %v636
        %v2672 = vunpack.c.l.s4 1983009808
        %v2673 = vunpack.c.0.s8 %v2672
        %v2674 = vlaneseq
        %v2675 = vshrl.u32 %v2674, 7
        %v2676 = vsub.s32 %v2673, %v2675
        %v2677 = vrot.slane %v2670, %v2676
        %v2678 = vcombine.low %v2677, %v2437
        %v2679 = vcombine.low %v2444, %v2454
        %v2680 = vcombine.low %v669, %v677
        %v2682 = vunpack.c.l.s4 1983009808
        %v2683 = vunpack.c.0.s8 %v2682
        %v2684 = vlaneseq
        %v2685 = vshrl.u32 %v2684, 7
        %v2686 = vsub.s32 %v2683, %v2685
        %v2687 = vrot.slane %v2680, %v2686
        %v2688 = vcombine.low %v2687, %v2471
        %v2689 = vcombine.low %v693, %v1033
        %v2691 = vunpack.c.l.s4 1983009808
        %v2692 = vunpack.c.0.s8 %v2691
        %v2693 = vlaneseq
        %v2694 = vshrl.u32 %v2693, 7
        %v2695 = vsub.s32 %v2692, %v2694
        %v2696 = vrot.slane %v2689, %v2695
        %v2697 = vcombine.low %v2478, %v2696
        %v2698 = vcombine.low %v1041, %v1040
        %v2699 = vcombine.low %v1042, %v1050
        %v2701 = vunpack.c.l.s4 1983009808
        %v2702 = vunpack.c.0.s8 %v2701
        %v2703 = vlaneseq
        %v2704 = vshrl.u32 %v2703, 7
        %v2705 = vsub.s32 %v2702, %v2704
        %v2706 = vrot.slane %v2698, %v2705
        %v2708 = vunpack.c.l.s4 1983009808
        %v2709 = vunpack.c.0.s8 %v2708
        %v2710 = vlaneseq
        %v2711 = vshrl.u32 %v2710, 7
        %v2712 = vsub.s32 %v2709, %v2711
        %v2713 = vrot.slane %v2699, %v2712
        %v2714 = vcombine.low %v2706, %v2713
        %v2715 = vcombine.low %v1058, %v1057
        %v2717 = vunpack.c.l.s4 1983009808
        %v2718 = vunpack.c.0.s8 %v2717
        %v2719 = vlaneseq
        %v2720 = vshrl.u32 %v2719, 7
        %v2721 = vsub.s32 %v2718, %v2720
        %v2722 = vrot.slane %v2715, %v2721
        %2723 = vrot.lane.b32.xlu0 %v2571, 12
        %v2724 = vpop.permute.xlu0 %2723
        %2725 = vrot.lane.b32.xlu0 %v2580, 12
        %v2726 = vpop.permute.xlu0 %2725
        %2727 = vrot.lane.b32.xlu0 %v2581, 12
        %v2728 = vpop.permute.xlu0 %2727
        %2729 = vrot.lane.b32.xlu0 %v2590, 12
        %v2730 = vpop.permute.xlu0 %2729
        %2731 = vrot.lane.b32.xlu0 %v2591, 12
        %v2732 = vpop.permute.xlu0 %2731
        %2733 = vrot.lane.b32.xlu0 %v2600, 12
        %v2734 = vpop.permute.xlu0 %2733
        %2735 = vrot.lane.b32.xlu0 %v2601, 12
        %v2736 = vpop.permute.xlu0 %2735
        %2737 = vrot.lane.b32.xlu0 %v2610, 12
        %v2738 = vpop.permute.xlu0 %2737
        %2739 = vrot.lane.b32.xlu0 %v2619, 12
        %v2740 = vpop.permute.xlu0 %2739
        %2741 = vrot.lane.b32.xlu0 %v2620, 12
        %v2742 = vpop.permute.xlu0 %2741
        %2743 = vrot.lane.b32.xlu0 %v2629, 12
        %v2744 = vpop.permute.xlu0 %2743
        %2745 = vrot.lane.b32.xlu0 %v2630, 12
        %v2746 = vpop.permute.xlu0 %2745
        %2747 = vrot.lane.b32.xlu0 %v2639, 12
        %v2748 = vpop.permute.xlu0 %2747
        %2749 = vrot.lane.b32.xlu0 %v2640, 12
        %v2750 = vpop.permute.xlu0 %2749
        %2751 = vrot.lane.b32.xlu0 %v2649, 12
        %v2752 = vpop.permute.xlu0 %2751
        %2753 = vrot.lane.b32.xlu0 %v2658, 12
        %v2754 = vpop.permute.xlu0 %2753
        %2755 = vrot.lane.b32.xlu0 %v2659, 12
        %v2756 = vpop.permute.xlu0 %2755
        %2757 = vrot.lane.b32.xlu0 %v2668, 12
        %v2758 = vpop.permute.xlu0 %2757
        %2759 = vrot.lane.b32.xlu0 %v2669, 12
        %v2760 = vpop.permute.xlu0 %2759
        %2761 = vrot.lane.b32.xlu0 %v2678, 12
        %v2762 = vpop.permute.xlu0 %2761
        %2763 = vrot.lane.b32.xlu0 %v2679, 12
        %v2764 = vpop.permute.xlu0 %2763
        %2765 = vrot.lane.b32.xlu0 %v2688, 12
        %v2766 = vpop.permute.xlu0 %2765
        %2767 = vrot.lane.b32.xlu0 %v2697, 12
        %v2768 = vpop.permute.xlu0 %2767
        %2769 = vrot.lane.b32.xlu0 %v2714, 12
        %v2770 = vpop.permute.xlu0 %2769
        %2771 = vrot.lane.b32.xlu0 %v2722, 12
        %v2772 = vpop.permute.xlu0 %2771
        %v2798 = vcombine.low %v741, %v744
        %v2799 = vcombine.low %v747, %v750
        %v2801 = vunpack.c.l.s4 1983009808
        %v2802 = vunpack.c.0.s8 %v2801
        %v2803 = vlaneseq
        %v2804 = vshrl.u32 %v2803, 7
        %v2805 = vsub.s32 %v2802, %v2804
        %v2806 = vrot.slane %v2798, %v2805
        %v2808 = vunpack.c.l.s4 1983009808
        %v2809 = vunpack.c.0.s8 %v2808
        %v2810 = vlaneseq
        %v2811 = vshrl.u32 %v2810, 7
        %v2812 = vsub.s32 %v2809, %v2811
        %v2813 = vrot.slane %v2799, %v2812
        %v2814 = vcombine.low %v2806, %v2813
        %v2815 = vcombine.low %v753, %v756
        %v2816 = vcombine.low %v759, %v763
        %v2818 = vunpack.c.l.s4 1983009808
        %v2819 = vunpack.c.0.s8 %v2818
        %v2820 = vlaneseq
        %v2821 = vshrl.u32 %v2820, 7
        %v2822 = vsub.s32 %v2819, %v2821
        %v2823 = vrot.slane %v2815, %v2822
        %v2825 = vunpack.c.l.s4 1983009808
        %v2826 = vunpack.c.0.s8 %v2825
        %v2827 = vlaneseq
        %v2828 = vshrl.u32 %v2827, 7
        %v2829 = vsub.s32 %v2826, %v2828
        %v2830 = vrot.slane %v2816, %v2829
        %v2831 = vcombine.low %v2823, %v2830
        %v2832 = vcombine.low %v766, %v769
        %v2833 = vcombine.low %v772, %v775
        %v2835 = vunpack.c.l.s4 1983009808
        %v2836 = vunpack.c.0.s8 %v2835
        %v2837 = vlaneseq
        %v2838 = vshrl.u32 %v2837, 7
        %v2839 = vsub.s32 %v2836, %v2838
        %v2840 = vrot.slane %v2832, %v2839
        %v2842 = vunpack.c.l.s4 1983009808
        %v2843 = vunpack.c.0.s8 %v2842
        %v2844 = vlaneseq
        %v2845 = vshrl.u32 %v2844, 7
        %v2846 = vsub.s32 %v2843, %v2845
        %v2847 = vrot.slane %v2833, %v2846
        %v2848 = vcombine.low %v2840, %v2847
        %v2849 = vcombine.low %v778, %v781
        %v2850 = vcombine.low %v785, %v788
        %v2852 = vunpack.c.l.s4 1983009808
        %v2853 = vunpack.c.0.s8 %v2852
        %v2854 = vlaneseq
        %v2855 = vshrl.u32 %v2854, 7
        %v2856 = vsub.s32 %v2853, %v2855
        %v2857 = vrot.slane %v2849, %v2856
        %v2859 = vunpack.c.l.s4 1983009808
        %v2860 = vunpack.c.0.s8 %v2859
        %v2861 = vlaneseq
        %v2862 = vshrl.u32 %v2861, 7
        %v2863 = vsub.s32 %v2860, %v2862
        %v2864 = vrot.slane %v2850, %v2863
        %v2865 = vcombine.low %v2857, %v2864
        %v2866 = vcombine.low %v791, %v794
        %v2867 = vcombine.low %v797, %v800
        %v2869 = vunpack.c.l.s4 1983009808
        %v2870 = vunpack.c.0.s8 %v2869
        %v2871 = vlaneseq
        %v2872 = vshrl.u32 %v2871, 7
        %v2873 = vsub.s32 %v2870, %v2872
        %v2874 = vrot.slane %v2866, %v2873
        %v2876 = vunpack.c.l.s4 1983009808
        %v2877 = vunpack.c.0.s8 %v2876
        %v2878 = vlaneseq
        %v2879 = vshrl.u32 %v2878, 7
        %v2880 = vsub.s32 %v2877, %v2879
        %v2881 = vrot.slane %v2867, %v2880
        %v2882 = vcombine.low %v2874, %v2881
        %v2883 = vcombine.low %v803, %v807
        %v2884 = vcombine.low %v810, %v813
        %v2886 = vunpack.c.l.s4 1983009808
        %v2887 = vunpack.c.0.s8 %v2886
        %v2888 = vlaneseq
        %v2889 = vshrl.u32 %v2888, 7
        %v2890 = vsub.s32 %v2887, %v2889
        %v2891 = vrot.slane %v2883, %v2890
        %v2893 = vunpack.c.l.s4 1983009808
        %v2894 = vunpack.c.0.s8 %v2893
        %v2895 = vlaneseq
        %v2896 = vshrl.u32 %v2895, 7
        %v2897 = vsub.s32 %v2894, %v2896
        %v2898 = vrot.slane %v2884, %v2897
        %v2899 = vcombine.low %v2891, %v2898
        %v2900 = vcombine.low %v816, %v819
        %v2901 = vcombine.low %v822, %v825
        %v2903 = vunpack.c.l.s4 1983009808
        %v2904 = vunpack.c.0.s8 %v2903
        %v2905 = vlaneseq
        %v2906 = vshrl.u32 %v2905, 7
        %v2907 = vsub.s32 %v2904, %v2906
        %v2908 = vrot.slane %v2900, %v2907
        %v2910 = vunpack.c.l.s4 1983009808
        %v2911 = vunpack.c.0.s8 %v2910
        %v2912 = vlaneseq
        %v2913 = vshrl.u32 %v2912, 7
        %v2914 = vsub.s32 %v2911, %v2913
        %v2915 = vrot.slane %v2901, %v2914
        %v2916 = vcombine.low %v2908, %v2915
        %v2917 = vcombine.low %v829, %v832
        %v2918 = vcombine.low %v835, %v838
        %v2920 = vunpack.c.l.s4 1983009808
        %v2921 = vunpack.c.0.s8 %v2920
        %v2922 = vlaneseq
        %v2923 = vshrl.u32 %v2922, 7
        %v2924 = vsub.s32 %v2921, %v2923
        %v2925 = vrot.slane %v2917, %v2924
        %v2927 = vunpack.c.l.s4 1983009808
        %v2928 = vunpack.c.0.s8 %v2927
        %v2929 = vlaneseq
        %v2930 = vshrl.u32 %v2929, 7
        %v2931 = vsub.s32 %v2928, %v2930
        %v2932 = vrot.slane %v2918, %v2931
        %v2933 = vcombine.low %v2925, %v2932
        %v2934 = vcombine.low %v841, %v844
        %v2935 = vcombine.low %v847, %v851
        %v2937 = vunpack.c.l.s4 1983009808
        %v2938 = vunpack.c.0.s8 %v2937
        %v2939 = vlaneseq
        %v2940 = vshrl.u32 %v2939, 7
        %v2941 = vsub.s32 %v2938, %v2940
        %v2942 = vrot.slane %v2934, %v2941
        %v2944 = vunpack.c.l.s4 1983009808
        %v2945 = vunpack.c.0.s8 %v2944
        %v2946 = vlaneseq
        %v2947 = vshrl.u32 %v2946, 7
        %v2948 = vsub.s32 %v2945, %v2947
        %v2949 = vrot.slane %v2935, %v2948
        %v2950 = vcombine.low %v2942, %v2949
        %v2951 = vcombine.low %v854, %v857
        %v2952 = vcombine.low %v860, %v863
        %v2954 = vunpack.c.l.s4 1983009808
        %v2955 = vunpack.c.0.s8 %v2954
        %v2956 = vlaneseq
        %v2957 = vshrl.u32 %v2956, 7
        %v2958 = vsub.s32 %v2955, %v2957
        %v2959 = vrot.slane %v2951, %v2958
        %v2961 = vunpack.c.l.s4 1983009808
        %v2962 = vunpack.c.0.s8 %v2961
        %v2963 = vlaneseq
        %v2964 = vshrl.u32 %v2963, 7
        %v2965 = vsub.s32 %v2962, %v2964
        %v2966 = vrot.slane %v2952, %v2965
        %v2967 = vcombine.low %v2959, %v2966
        %v2968 = vcombine.low %v866, %v869
        %v2969 = vcombine.low %v873, %v876
        %v2971 = vunpack.c.l.s4 1983009808
        %v2972 = vunpack.c.0.s8 %v2971
        %v2973 = vlaneseq
        %v2974 = vshrl.u32 %v2973, 7
        %v2975 = vsub.s32 %v2972, %v2974
        %v2976 = vrot.slane %v2968, %v2975
        %v2978 = vunpack.c.l.s4 1983009808
        %v2979 = vunpack.c.0.s8 %v2978
        %v2980 = vlaneseq
        %v2981 = vshrl.u32 %v2980, 7
        %v2982 = vsub.s32 %v2979, %v2981
        %v2983 = vrot.slane %v2969, %v2982
        %v2984 = vcombine.low %v2976, %v2983
        %v2985 = vcombine.low %v879, %v882
        %v2986 = vcombine.low %v885, %v888
        %v2988 = vunpack.c.l.s4 1983009808
        %v2989 = vunpack.c.0.s8 %v2988
        %v2990 = vlaneseq
        %v2991 = vshrl.u32 %v2990, 7
        %v2992 = vsub.s32 %v2989, %v2991
        %v2993 = vrot.slane %v2985, %v2992
        %v2995 = vunpack.c.l.s4 1983009808
        %v2996 = vunpack.c.0.s8 %v2995
        %v2997 = vlaneseq
        %v2998 = vshrl.u32 %v2997, 7
        %v2999 = vsub.s32 %v2996, %v2998
        %v3000 = vrot.slane %v2986, %v2999
        %v3001 = vcombine.low %v2993, %v3000
        %v3002 = vcombine.low %v891, %v895
        %v3003 = vcombine.low %v898, %v901
        %v3005 = vunpack.c.l.s4 1983009808
        %v3006 = vunpack.c.0.s8 %v3005
        %v3007 = vlaneseq
        %v3008 = vshrl.u32 %v3007, 7
        %v3009 = vsub.s32 %v3006, %v3008
        %v3010 = vrot.slane %v3002, %v3009
        %v3012 = vunpack.c.l.s4 1983009808
        %v3013 = vunpack.c.0.s8 %v3012
        %v3014 = vlaneseq
        %v3015 = vshrl.u32 %v3014, 7
        %v3016 = vsub.s32 %v3013, %v3015
        %v3017 = vrot.slane %v3003, %v3016
        %v3018 = vcombine.low %v3010, %v3017
        %v3019 = vcombine.low %v904, %v907
        %v3020 = vcombine.low %v910, %v913
        %v3022 = vunpack.c.l.s4 1983009808
        %v3023 = vunpack.c.0.s8 %v3022
        %v3024 = vlaneseq
        %v3025 = vshrl.u32 %v3024, 7
        %v3026 = vsub.s32 %v3023, %v3025
        %v3027 = vrot.slane %v3019, %v3026
        %v3029 = vunpack.c.l.s4 1983009808
        %v3030 = vunpack.c.0.s8 %v3029
        %v3031 = vlaneseq
        %v3032 = vshrl.u32 %v3031, 7
        %v3033 = vsub.s32 %v3030, %v3032
        %v3034 = vrot.slane %v3020, %v3033
        %v3035 = vcombine.low %v3027, %v3034
        %v3036 = vcombine.low %v917, %v920
        %v3037 = vcombine.low %v923, %v926
        %v3039 = vunpack.c.l.s4 1983009808
        %v3040 = vunpack.c.0.s8 %v3039
        %v3041 = vlaneseq
        %v3042 = vshrl.u32 %v3041, 7
        %v3043 = vsub.s32 %v3040, %v3042
        %v3044 = vrot.slane %v3036, %v3043
        %v3046 = vunpack.c.l.s4 1983009808
        %v3047 = vunpack.c.0.s8 %v3046
        %v3048 = vlaneseq
        %v3049 = vshrl.u32 %v3048, 7
        %v3050 = vsub.s32 %v3047, %v3049
        %v3051 = vrot.slane %v3037, %v3050
        %v3052 = vcombine.low %v3044, %v3051
        %v3053 = vcombine.low %v929, %v932
        %v3054 = vcombine.low %v935, %v939
        %v3056 = vunpack.c.l.s4 1983009808
        %v3057 = vunpack.c.0.s8 %v3056
        %v3058 = vlaneseq
        %v3059 = vshrl.u32 %v3058, 7
        %v3060 = vsub.s32 %v3057, %v3059
        %v3061 = vrot.slane %v3053, %v3060
        %v3063 = vunpack.c.l.s4 1983009808
        %v3064 = vunpack.c.0.s8 %v3063
        %v3065 = vlaneseq
        %v3066 = vshrl.u32 %v3065, 7
        %v3067 = vsub.s32 %v3064, %v3066
        %v3068 = vrot.slane %v3054, %v3067
        %v3069 = vcombine.low %v3061, %v3068
        %v3070 = vcombine.low %v942, %v945
        %v3071 = vcombine.low %v948, %v951
        %v3073 = vunpack.c.l.s4 1983009808
        %v3074 = vunpack.c.0.s8 %v3073
        %v3075 = vlaneseq
        %v3076 = vshrl.u32 %v3075, 7
        %v3077 = vsub.s32 %v3074, %v3076
        %v3078 = vrot.slane %v3070, %v3077
        %v3080 = vunpack.c.l.s4 1983009808
        %v3081 = vunpack.c.0.s8 %v3080
        %v3082 = vlaneseq
        %v3083 = vshrl.u32 %v3082, 7
        %v3084 = vsub.s32 %v3081, %v3083
        %v3085 = vrot.slane %v3071, %v3084
        %v3086 = vcombine.low %v3078, %v3085
        %v3087 = vcombine.low %v954, %v957
        %v3088 = vcombine.low %v961, %v964
        %v3090 = vunpack.c.l.s4 1983009808
        %v3091 = vunpack.c.0.s8 %v3090
        %v3092 = vlaneseq
        %v3093 = vshrl.u32 %v3092, 7
        %v3094 = vsub.s32 %v3091, %v3093
        %v3095 = vrot.slane %v3087, %v3094
        %v3097 = vunpack.c.l.s4 1983009808
        %v3098 = vunpack.c.0.s8 %v3097
        %v3099 = vlaneseq
        %v3100 = vshrl.u32 %v3099, 7
        %v3101 = vsub.s32 %v3098, %v3100
        %v3102 = vrot.slane %v3088, %v3101
        %v3103 = vcombine.low %v3095, %v3102
        %v3104 = vcombine.low %v967, %v970
        %v3105 = vcombine.low %v973, %v976
        %v3107 = vunpack.c.l.s4 1983009808
        %v3108 = vunpack.c.0.s8 %v3107
        %v3109 = vlaneseq
        %v3110 = vshrl.u32 %v3109, 7
        %v3111 = vsub.s32 %v3108, %v3110
        %v3112 = vrot.slane %v3104, %v3111
        %v3114 = vunpack.c.l.s4 1983009808
        %v3115 = vunpack.c.0.s8 %v3114
        %v3116 = vlaneseq
        %v3117 = vshrl.u32 %v3116, 7
        %v3118 = vsub.s32 %v3115, %v3117
        %v3119 = vrot.slane %v3105, %v3118
        %v3120 = vcombine.low %v3112, %v3119
        %v3121 = vcombine.low %v979, %v983
        %v3122 = vcombine.low %v986, %v989
        %v3124 = vunpack.c.l.s4 1983009808
        %v3125 = vunpack.c.0.s8 %v3124
        %v3126 = vlaneseq
        %v3127 = vshrl.u32 %v3126, 7
        %v3128 = vsub.s32 %v3125, %v3127
        %v3129 = vrot.slane %v3121, %v3128
        %v3131 = vunpack.c.l.s4 1983009808
        %v3132 = vunpack.c.0.s8 %v3131
        %v3133 = vlaneseq
        %v3134 = vshrl.u32 %v3133, 7
        %v3135 = vsub.s32 %v3132, %v3134
        %v3136 = vrot.slane %v3122, %v3135
        %v3137 = vcombine.low %v3129, %v3136
        %v3138 = vcombine.low %v992, %v995
        %v3139 = vcombine.low %v998, %v1001
        %v3141 = vunpack.c.l.s4 1983009808
        %v3142 = vunpack.c.0.s8 %v3141
        %v3143 = vlaneseq
        %v3144 = vshrl.u32 %v3143, 7
        %v3145 = vsub.s32 %v3142, %v3144
        %v3146 = vrot.slane %v3138, %v3145
        %v3148 = vunpack.c.l.s4 1983009808
        %v3149 = vunpack.c.0.s8 %v3148
        %v3150 = vlaneseq
        %v3151 = vshrl.u32 %v3150, 7
        %v3152 = vsub.s32 %v3149, %v3151
        %v3153 = vrot.slane %v3139, %v3152
        %v3154 = vcombine.low %v3146, %v3153
        %v3155 = vcombine.low %v1005, %v1008
        %v3156 = vcombine.low %v1011, %v1014
        %v3158 = vunpack.c.l.s4 1983009808
        %v3159 = vunpack.c.0.s8 %v3158
        %v3160 = vlaneseq
        %v3161 = vshrl.u32 %v3160, 7
        %v3162 = vsub.s32 %v3159, %v3161
        %v3163 = vrot.slane %v3155, %v3162
        %v3165 = vunpack.c.l.s4 1983009808
        %v3166 = vunpack.c.0.s8 %v3165
        %v3167 = vlaneseq
        %v3168 = vshrl.u32 %v3167, 7
        %v3169 = vsub.s32 %v3166, %v3168
        %v3170 = vrot.slane %v3156, %v3169
        %v3171 = vcombine.low %v3163, %v3170
        %v3172 = vcombine.low %v1017, %v1020
        %v3173 = vcombine.low %v1023, %v1063
        %v3175 = vunpack.c.l.s4 1983009808
        %v3176 = vunpack.c.0.s8 %v3175
        %v3177 = vlaneseq
        %v3178 = vshrl.u32 %v3177, 7
        %v3179 = vsub.s32 %v3176, %v3178
        %v3180 = vrot.slane %v3172, %v3179
        %v3182 = vunpack.c.l.s4 1983009808
        %v3183 = vunpack.c.0.s8 %v3182
        %v3184 = vlaneseq
        %v3185 = vshrl.u32 %v3184, 7
        %v3186 = vsub.s32 %v3183, %v3185
        %v3187 = vrot.slane %v3173, %v3186
        %v3188 = vcombine.low %v3180, %v3187
        %v3189 = vcombine.low %v1066, %v1069
        %v3190 = vcombine.low %v1072, %v1075
        %v3192 = vunpack.c.l.s4 1983009808
        %v3193 = vunpack.c.0.s8 %v3192
        %v3194 = vlaneseq
        %v3195 = vshrl.u32 %v3194, 7
        %v3196 = vsub.s32 %v3193, %v3195
        %v3197 = vrot.slane %v3189, %v3196
        %v3199 = vunpack.c.l.s4 1983009808
        %v3200 = vunpack.c.0.s8 %v3199
        %v3201 = vlaneseq
        %v3202 = vshrl.u32 %v3201, 7
        %v3203 = vsub.s32 %v3200, %v3202
        %v3204 = vrot.slane %v3190, %v3203
        %v3205 = vcombine.low %v3197, %v3204
        %v3206 = vcombine.low %v1078, %v1081
        %v3208 = vunpack.c.l.s4 1983009808
        %v3209 = vunpack.c.0.s8 %v3208
        %v3210 = vlaneseq
        %v3211 = vshrl.u32 %v3210, 7
        %v3212 = vsub.s32 %v3209, %v3211
        %v3213 = vrot.slane %v3206, %v3212
        %3214 = vrot.lane.b32.xlu0 %v2814, 16
        %v3215 = vpop.permute.xlu0 %3214
        %3216 = vrot.lane.b32.xlu0 %v2831, 16
        %v3217 = vpop.permute.xlu0 %3216
        %3218 = vrot.lane.b32.xlu0 %v2848, 16
        %v3219 = vpop.permute.xlu0 %3218
        %3220 = vrot.lane.b32.xlu0 %v2865, 16
        %v3221 = vpop.permute.xlu0 %3220
        %3222 = vrot.lane.b32.xlu0 %v2882, 16
        %v3223 = vpop.permute.xlu0 %3222
        %3224 = vrot.lane.b32.xlu0 %v2899, 16
        %v3225 = vpop.permute.xlu0 %3224
        %3226 = vrot.lane.b32.xlu0 %v2916, 16
        %v3227 = vpop.permute.xlu0 %3226
        %3228 = vrot.lane.b32.xlu0 %v2933, 16
        %v3229 = vpop.permute.xlu0 %3228
        %3230 = vrot.lane.b32.xlu0 %v2950, 16
        %v3231 = vpop.permute.xlu0 %3230
        %3232 = vrot.lane.b32.xlu0 %v2967, 16
        %v3233 = vpop.permute.xlu0 %3232
        %3234 = vrot.lane.b32.xlu0 %v2984, 16
        %v3235 = vpop.permute.xlu0 %3234
        %3236 = vrot.lane.b32.xlu0 %v3001, 16
        %v3237 = vpop.permute.xlu0 %3236
        %3238 = vrot.lane.b32.xlu0 %v3018, 16
        %v3239 = vpop.permute.xlu0 %3238
        %3240 = vrot.lane.b32.xlu0 %v3035, 16
        %v3241 = vpop.permute.xlu0 %3240
        %3242 = vrot.lane.b32.xlu0 %v3052, 16
        %v3243 = vpop.permute.xlu0 %3242
        %3244 = vrot.lane.b32.xlu0 %v3069, 16
        %v3245 = vpop.permute.xlu0 %3244
        %3246 = vrot.lane.b32.xlu0 %v3086, 16
        %v3247 = vpop.permute.xlu0 %3246
        %3248 = vrot.lane.b32.xlu0 %v3103, 16
        %v3249 = vpop.permute.xlu0 %3248
        %3250 = vrot.lane.b32.xlu0 %v3120, 16
        %v3251 = vpop.permute.xlu0 %3250
        %3252 = vrot.lane.b32.xlu0 %v3137, 16
        %v3253 = vpop.permute.xlu0 %3252
        %3254 = vrot.lane.b32.xlu0 %v3154, 16
        %v3255 = vpop.permute.xlu0 %3254
        %3256 = vrot.lane.b32.xlu0 %v3171, 16
        %v3257 = vpop.permute.xlu0 %3256
        %3258 = vrot.lane.b32.xlu0 %v3188, 16
        %v3259 = vpop.permute.xlu0 %3258
        %3260 = vrot.lane.b32.xlu0 %v3205, 16
        %v3261 = vpop.permute.xlu0 %3260
        %3262 = vrot.lane.b32.xlu0 %v3213, 16
        %v3263 = vpop.permute.xlu0 %3262
        %v3289 = vcombine.low %v696, %v314
        %v3291 = vunpack.c.l.s4 1983009808
        %v3292 = vunpack.c.0.s8 %v3291
        %v3293 = vlaneseq
        %v3294 = vshrl.u32 %v3293, 7
        %v3295 = vsub.s32 %v3292, %v3294
        %v3296 = vrot.slane %v3289, %v3295
        %v3297 = vcombine.low %v1199, %v3296
        %v3298 = vcombine.low %v330, %v697
        %v3300 = vunpack.c.l.s4 1983009808
        %v3301 = vunpack.c.0.s8 %v3300
        %v3302 = vlaneseq
        %v3303 = vshrl.u32 %v3302, 7
        %v3304 = vsub.s32 %v3301, %v3303
        %v3305 = vrot.slane %v3298, %v3304
        %v3306 = vcombine.low %v3305, %v1240
        %v3307 = vcombine.low %v698, %v380
        %v3309 = vunpack.c.l.s4 1983009808
        %v3310 = vunpack.c.0.s8 %v3309
        %v3311 = vlaneseq
        %v3312 = vshrl.u32 %v3311, 7
        %v3313 = vsub.s32 %v3310, %v3312
        %v3314 = vrot.slane %v3307, %v3313
        %v3315 = vcombine.low %v3314, %v1274
        %v3316 = vcombine.low %v396, %v699
        %v3318 = vunpack.c.l.s4 1983009808
        %v3319 = vunpack.c.0.s8 %v3318
        %v3320 = vlaneseq
        %v3321 = vshrl.u32 %v3320, 7
        %v3322 = vsub.s32 %v3319, %v3321
        %v3323 = vrot.slane %v3316, %v3322
        %v3324 = vcombine.low %v1284, %v3323
        %v3325 = vcombine.low %v700, %v446
        %v3327 = vunpack.c.l.s4 1983009808
        %v3328 = vunpack.c.0.s8 %v3327
        %v3329 = vlaneseq
        %v3330 = vshrl.u32 %v3329, 7
        %v3331 = vsub.s32 %v3328, %v3330
        %v3332 = vrot.slane %v3325, %v3331
        %v3333 = vcombine.low %v1318, %v3332
        %v3334 = vcombine.low %v462, %v701
        %v3336 = vunpack.c.l.s4 1983009808
        %v3337 = vunpack.c.0.s8 %v3336
        %v3338 = vlaneseq
        %v3339 = vshrl.u32 %v3338, 7
        %v3340 = vsub.s32 %v3337, %v3339
        %v3341 = vrot.slane %v3334, %v3340
        %v3342 = vcombine.low %v3341, %v1359
        %v3343 = vcombine.low %v702, %v512
        %v3345 = vunpack.c.l.s4 1983009808
        %v3346 = vunpack.c.0.s8 %v3345
        %v3347 = vlaneseq
        %v3348 = vshrl.u32 %v3347, 7
        %v3349 = vsub.s32 %v3346, %v3348
        %v3350 = vrot.slane %v3343, %v3349
        %v3351 = vcombine.low %v3350, %v1393
        %v3352 = vcombine.low %v528, %v703
        %v3354 = vunpack.c.l.s4 1983009808
        %v3355 = vunpack.c.0.s8 %v3354
        %v3356 = vlaneseq
        %v3357 = vshrl.u32 %v3356, 7
        %v3358 = vsub.s32 %v3355, %v3357
        %v3359 = vrot.slane %v3352, %v3358
        %v3360 = vcombine.low %v1403, %v3359
        %v3361 = vcombine.low %v704, %v578
        %v3363 = vunpack.c.l.s4 1983009808
        %v3364 = vunpack.c.0.s8 %v3363
        %v3365 = vlaneseq
        %v3366 = vshrl.u32 %v3365, 7
        %v3367 = vsub.s32 %v3364, %v3366
        %v3368 = vrot.slane %v3361, %v3367
        %v3369 = vcombine.low %v1437, %v3368
        %v3370 = vcombine.low %v594, %v705
        %v3372 = vunpack.c.l.s4 1983009808
        %v3373 = vunpack.c.0.s8 %v3372
        %v3374 = vlaneseq
        %v3375 = vshrl.u32 %v3374, 7
        %v3376 = vsub.s32 %v3373, %v3375
        %v3377 = vrot.slane %v3370, %v3376
        %v3378 = vcombine.low %v3377, %v1478
        %v3379 = vcombine.low %v706, %v644
        %v3381 = vunpack.c.l.s4 1983009808
        %v3382 = vunpack.c.0.s8 %v3381
        %v3383 = vlaneseq
        %v3384 = vshrl.u32 %v3383, 7
        %v3385 = vsub.s32 %v3382, %v3384
        %v3386 = vrot.slane %v3379, %v3385
        %v3387 = vcombine.low %v3386, %v1512
        %v3388 = vcombine.low %v660, %v707
        %v3390 = vunpack.c.l.s4 1983009808
        %v3391 = vunpack.c.0.s8 %v3390
        %v3392 = vlaneseq
        %v3393 = vshrl.u32 %v3392, 7
        %v3394 = vsub.s32 %v3391, %v3393
        %v3395 = vrot.slane %v3388, %v3394
        %v3396 = vcombine.low %v1522, %v3395
        %v3397 = vcombine.low %v708, %v1041
        %v3399 = vunpack.c.l.s4 1983009808
        %v3400 = vunpack.c.0.s8 %v3399
        %v3401 = vlaneseq
        %v3402 = vshrl.u32 %v3401, 7
        %v3403 = vsub.s32 %v3400, %v3402
        %v3404 = vrot.slane %v3397, %v3403
        %v3405 = vcombine.low %v1555, %v3404
        %v3406 = vcombine.low %v1040, %v1042
        %v3407 = vcombine.low %v1050, %v1058
        %v3409 = vunpack.c.l.s4 1983009808
        %v3410 = vunpack.c.0.s8 %v3409
        %v3411 = vlaneseq
        %v3412 = vshrl.u32 %v3411, 7
        %v3413 = vsub.s32 %v3410, %v3412
        %v3414 = vrot.slane %v3406, %v3413
        %v3416 = vunpack.c.l.s4 1983009808
        %v3417 = vunpack.c.0.s8 %v3416
        %v3418 = vlaneseq
        %v3419 = vshrl.u32 %v3418, 7
        %v3420 = vsub.s32 %v3417, %v3419
        %v3421 = vrot.slane %v3407, %v3420
        %v3422 = vcombine.low %v3414, %v3421
        %v3423 = vcombine.low %v1057, %v1059
        %v3425 = vunpack.c.l.s4 1983009808
        %v3426 = vunpack.c.0.s8 %v3425
        %v3427 = vlaneseq
        %v3428 = vshrl.u32 %v3427, 7
        %v3429 = vsub.s32 %v3426, %v3428
        %v3430 = vrot.slane %v3423, %v3429
        %3431 = vrot.lane.b32.xlu0 %v1190, 20
        %v3432 = vpop.permute.xlu0 %3431
        %3433 = vrot.lane.b32.xlu0 %v3297, 20
        %v3434 = vpop.permute.xlu0 %3433
        %3435 = vrot.lane.b32.xlu0 %v1224, 20
        %v3436 = vpop.permute.xlu0 %3435
        %3437 = vrot.lane.b32.xlu0 %v3306, 20
        %v3438 = vpop.permute.xlu0 %3437
        %3439 = vrot.lane.b32.xlu0 %v1258, 20
        %v3440 = vpop.permute.xlu0 %3439
        %3441 = vrot.lane.b32.xlu0 %v3315, 20
        %v3442 = vpop.permute.xlu0 %3441
        %3443 = vrot.lane.b32.xlu0 %v3324, 20
        %v3444 = vpop.permute.xlu0 %3443
        %3445 = vrot.lane.b32.xlu0 %v1309, 20
        %v3446 = vpop.permute.xlu0 %3445
        %3447 = vrot.lane.b32.xlu0 %v3333, 20
        %v3448 = vpop.permute.xlu0 %3447
        %3449 = vrot.lane.b32.xlu0 %v1343, 20
        %v3450 = vpop.permute.xlu0 %3449
        %3451 = vrot.lane.b32.xlu0 %v3342, 20
        %v3452 = vpop.permute.xlu0 %3451
        %3453 = vrot.lane.b32.xlu0 %v1377, 20
        %v3454 = vpop.permute.xlu0 %3453
        %3455 = vrot.lane.b32.xlu0 %v3351, 20
        %v3456 = vpop.permute.xlu0 %3455
        %3457 = vrot.lane.b32.xlu0 %v3360, 20
        %v3458 = vpop.permute.xlu0 %3457
        %3459 = vrot.lane.b32.xlu0 %v1428, 20
        %v3460 = vpop.permute.xlu0 %3459
        %3461 = vrot.lane.b32.xlu0 %v3369, 20
        %v3462 = vpop.permute.xlu0 %3461
        %3463 = vrot.lane.b32.xlu0 %v1462, 20
        %v3464 = vpop.permute.xlu0 %3463
        %3465 = vrot.lane.b32.xlu0 %v3378, 20
        %v3466 = vpop.permute.xlu0 %3465
        %3467 = vrot.lane.b32.xlu0 %v1496, 20
        %v3468 = vpop.permute.xlu0 %3467
        %3469 = vrot.lane.b32.xlu0 %v3387, 20
        %v3470 = vpop.permute.xlu0 %3469
        %3471 = vrot.lane.b32.xlu0 %v3396, 20
        %v3472 = vpop.permute.xlu0 %3471
        %3473 = vrot.lane.b32.xlu0 %v1547, 20
        %v3474 = vpop.permute.xlu0 %3473
        %3475 = vrot.lane.b32.xlu0 %v3405, 20
        %v3476 = vpop.permute.xlu0 %3475
        %3477 = vrot.lane.b32.xlu0 %v3422, 20
        %v3478 = vpop.permute.xlu0 %3477
        %3479 = vrot.lane.b32.xlu0 %v3430, 20
        %v3480 = vpop.permute.xlu0 %3479
        %v3506 = vcombine.low %v1206, %v1216
        %v3507 = vcombine.low %v1223, %v1233
        %v3508 = vcombine.low %v1240, %v1250
        %v3509 = vcombine.low %v1257, %v1267
        %v3510 = vcombine.low %v1274, %v1284
        %v3511 = vcombine.low %v1291, %v1301
        %v3512 = vcombine.low %v1308, %v1318
        %v3513 = vcombine.low %v1325, %v1335
        %v3514 = vcombine.low %v1342, %v1352
        %v3515 = vcombine.low %v1359, %v1369
        %v3516 = vcombine.low %v1376, %v1386
        %v3517 = vcombine.low %v1393, %v1403
        %v3518 = vcombine.low %v1410, %v1420
        %v3519 = vcombine.low %v1427, %v1437
        %v3520 = vcombine.low %v1444, %v1454
        %v3521 = vcombine.low %v1461, %v1471
        %v3522 = vcombine.low %v1478, %v1488
        %v3523 = vcombine.low %v1495, %v1505
        %v3524 = vcombine.low %v1512, %v1522
        %v3525 = vcombine.low %v1529, %v1539
        %v3526 = vcombine.low %v1546, %v1555
        %v3527 = vcombine.low %v1033, %v1041
        %v3529 = vunpack.c.l.s4 1983009808
        %v3530 = vunpack.c.0.s8 %v3529
        %v3531 = vlaneseq
        %v3532 = vshrl.u32 %v3531, 7
        %v3533 = vsub.s32 %v3530, %v3532
        %v3534 = vrot.slane %v3527, %v3533
        %v3535 = vcombine.low %v3534, %v3414
        %v3536 = vcombine.low %v1057, %v1091
        %v3538 = vunpack.c.l.s4 1983009808
        %v3539 = vunpack.c.0.s8 %v3538
        %v3540 = vlaneseq
        %v3541 = vshrl.u32 %v3540, 7
        %v3542 = vsub.s32 %v3539, %v3541
        %v3543 = vrot.slane %v3536, %v3542
        %v3544 = vcombine.low %v3421, %v3543
        %v3545 = vcombine.low %v1099, %v1098
        %v3546 = vcombine.low %v1100, %v1108
        %v3548 = vunpack.c.l.s4 1983009808
        %v3549 = vunpack.c.0.s8 %v3548
        %v3550 = vlaneseq
        %v3551 = vshrl.u32 %v3550, 7
        %v3552 = vsub.s32 %v3549, %v3551
        %v3553 = vrot.slane %v3545, %v3552
        %v3555 = vunpack.c.l.s4 1983009808
        %v3556 = vunpack.c.0.s8 %v3555
        %v3557 = vlaneseq
        %v3558 = vshrl.u32 %v3557, 7
        %v3559 = vsub.s32 %v3556, %v3558
        %v3560 = vrot.slane %v3546, %v3559
        %v3561 = vcombine.low %v3553, %v3560
        %v3562 = vcombine.low %v1116, %v1115
        %v3564 = vunpack.c.l.s4 1983009808
        %v3565 = vunpack.c.0.s8 %v3564
        %v3566 = vlaneseq
        %v3567 = vshrl.u32 %v3566, 7
        %v3568 = vsub.s32 %v3565, %v3567
        %v3569 = vrot.slane %v3562, %v3568
        %3570 = vrot.lane.b32.xlu0 %v3506, 24
        %v3571 = vpop.permute.xlu0 %3570
        %3572 = vrot.lane.b32.xlu0 %v3507, 24
        %v3573 = vpop.permute.xlu0 %3572
        %3574 = vrot.lane.b32.xlu0 %v3508, 24
        %v3575 = vpop.permute.xlu0 %3574
        %3576 = vrot.lane.b32.xlu0 %v3509, 24
        %v3577 = vpop.permute.xlu0 %3576
        %3578 = vrot.lane.b32.xlu0 %v3510, 24
        %v3579 = vpop.permute.xlu0 %3578
        %3580 = vrot.lane.b32.xlu0 %v3511, 24
        %v3581 = vpop.permute.xlu0 %3580
        %3582 = vrot.lane.b32.xlu0 %v3512, 24
        %v3583 = vpop.permute.xlu0 %3582
        %3584 = vrot.lane.b32.xlu0 %v3513, 24
        %v3585 = vpop.permute.xlu0 %3584
        %3586 = vrot.lane.b32.xlu0 %v3514, 24
        %v3587 = vpop.permute.xlu0 %3586
        %3588 = vrot.lane.b32.xlu0 %v3515, 24
        %v3589 = vpop.permute.xlu0 %3588
        %3590 = vrot.lane.b32.xlu0 %v3516, 24
        %v3591 = vpop.permute.xlu0 %3590
        %3592 = vrot.lane.b32.xlu0 %v3517, 24
        %v3593 = vpop.permute.xlu0 %3592
        %3594 = vrot.lane.b32.xlu0 %v3518, 24
        %v3595 = vpop.permute.xlu0 %3594
        %3596 = vrot.lane.b32.xlu0 %v3519, 24
        %v3597 = vpop.permute.xlu0 %3596
        %3598 = vrot.lane.b32.xlu0 %v3520, 24
        %v3599 = vpop.permute.xlu0 %3598
        %3600 = vrot.lane.b32.xlu0 %v3521, 24
        %v3601 = vpop.permute.xlu0 %3600
        %3602 = vrot.lane.b32.xlu0 %v3522, 24
        %v3603 = vpop.permute.xlu0 %3602
        %3604 = vrot.lane.b32.xlu0 %v3523, 24
        %v3605 = vpop.permute.xlu0 %3604
        %3606 = vrot.lane.b32.xlu0 %v3524, 24
        %v3607 = vpop.permute.xlu0 %3606
        %3608 = vrot.lane.b32.xlu0 %v3525, 24
        %v3609 = vpop.permute.xlu0 %3608
        %3610 = vrot.lane.b32.xlu0 %v3526, 24
        %v3611 = vpop.permute.xlu0 %3610
        %3612 = vrot.lane.b32.xlu0 %v3535, 24
        %v3613 = vpop.permute.xlu0 %3612
        %3614 = vrot.lane.b32.xlu0 %v3544, 24
        %v3615 = vpop.permute.xlu0 %3614
        %3616 = vrot.lane.b32.xlu0 %v3561, 24
        %v3617 = vpop.permute.xlu0 %3616
        %3618 = vrot.lane.b32.xlu0 %v3569, 24
        %v3619 = vpop.permute.xlu0 %3618
        %v3645 = vcombine.low %v1647, %v1657
        %v3646 = vcombine.low %v1664, %v1674
        %v3647 = vcombine.low %v1681, %v1691
        %v3648 = vcombine.low %v1698, %v1708
        %v3649 = vcombine.low %v1715, %v1725
        %v3650 = vcombine.low %v1732, %v1742
        %v3651 = vcombine.low %v1749, %v1759
        %v3652 = vcombine.low %v1766, %v1776
        %v3653 = vcombine.low %v1783, %v1793
        %v3654 = vcombine.low %v1800, %v1810
        %v3655 = vcombine.low %v1817, %v1827
        %v3656 = vcombine.low %v1834, %v1844
        %v3657 = vcombine.low %v1851, %v1861
        %v3658 = vcombine.low %v1868, %v1878
        %v3659 = vcombine.low %v1885, %v1895
        %v3660 = vcombine.low %v1902, %v1912
        %v3661 = vcombine.low %v1919, %v1929
        %v3662 = vcombine.low %v1936, %v1946
        %v3663 = vcombine.low %v1953, %v1963
        %v3664 = vcombine.low %v1970, %v1980
        %v3665 = vcombine.low %v1987, %v1996
        %v3666 = vcombine.low %v1063, %v1066
        %v3667 = vcombine.low %v1069, %v1072
        %v3669 = vunpack.c.l.s4 1983009808
        %v3670 = vunpack.c.0.s8 %v3669
        %v3671 = vlaneseq
        %v3672 = vshrl.u32 %v3671, 7
        %v3673 = vsub.s32 %v3670, %v3672
        %v3674 = vrot.slane %v3666, %v3673
        %v3676 = vunpack.c.l.s4 1983009808
        %v3677 = vunpack.c.0.s8 %v3676
        %v3678 = vlaneseq
        %v3679 = vshrl.u32 %v3678, 7
        %v3680 = vsub.s32 %v3677, %v3679
        %v3681 = vrot.slane %v3667, %v3680
        %v3682 = vcombine.low %v3674, %v3681
        %v3683 = vcombine.low %v1075, %v1078
        %v3684 = vcombine.low %v1081, %v1121
        %v3686 = vunpack.c.l.s4 1983009808
        %v3687 = vunpack.c.0.s8 %v3686
        %v3688 = vlaneseq
        %v3689 = vshrl.u32 %v3688, 7
        %v3690 = vsub.s32 %v3687, %v3689
        %v3691 = vrot.slane %v3683, %v3690
        %v3693 = vunpack.c.l.s4 1983009808
        %v3694 = vunpack.c.0.s8 %v3693
        %v3695 = vlaneseq
        %v3696 = vshrl.u32 %v3695, 7
        %v3697 = vsub.s32 %v3694, %v3696
        %v3698 = vrot.slane %v3684, %v3697
        %v3699 = vcombine.low %v3691, %v3698
        %v3700 = vcombine.low %v1124, %v1127
        %v3701 = vcombine.low %v1130, %v1133
        %v3703 = vunpack.c.l.s4 1983009808
        %v3704 = vunpack.c.0.s8 %v3703
        %v3705 = vlaneseq
        %v3706 = vshrl.u32 %v3705, 7
        %v3707 = vsub.s32 %v3704, %v3706
        %v3708 = vrot.slane %v3700, %v3707
        %v3710 = vunpack.c.l.s4 1983009808
        %v3711 = vunpack.c.0.s8 %v3710
        %v3712 = vlaneseq
        %v3713 = vshrl.u32 %v3712, 7
        %v3714 = vsub.s32 %v3711, %v3713
        %v3715 = vrot.slane %v3701, %v3714
        %v3716 = vcombine.low %v3708, %v3715
        %v3717 = vcombine.low %v1136, %v1139
        %v3719 = vunpack.c.l.s4 1983009808
        %v3720 = vunpack.c.0.s8 %v3719
        %v3721 = vlaneseq
        %v3722 = vshrl.u32 %v3721, 7
        %v3723 = vsub.s32 %v3720, %v3722
        %v3724 = vrot.slane %v3717, %v3723
        %3725 = vrot.lane.b32.xlu0 %v3645, 28
        %v3726 = vpop.permute.xlu0 %3725
        %3727 = vrot.lane.b32.xlu0 %v3646, 28
        %v3728 = vpop.permute.xlu0 %3727
        %3729 = vrot.lane.b32.xlu0 %v3647, 28
        %v3730 = vpop.permute.xlu0 %3729
        %3731 = vrot.lane.b32.xlu0 %v3648, 28
        %v3732 = vpop.permute.xlu0 %3731
        %3733 = vrot.lane.b32.xlu0 %v3649, 28
        %v3734 = vpop.permute.xlu0 %3733
        %3735 = vrot.lane.b32.xlu0 %v3650, 28
        %v3736 = vpop.permute.xlu0 %3735
        %3737 = vrot.lane.b32.xlu0 %v3651, 28
        %v3738 = vpop.permute.xlu0 %3737
        %3739 = vrot.lane.b32.xlu0 %v3652, 28
        %v3740 = vpop.permute.xlu0 %3739
        %3741 = vrot.lane.b32.xlu0 %v3653, 28
        %v3742 = vpop.permute.xlu0 %3741
        %3743 = vrot.lane.b32.xlu0 %v3654, 28
        %v3744 = vpop.permute.xlu0 %3743
        %3745 = vrot.lane.b32.xlu0 %v3655, 28
        %v3746 = vpop.permute.xlu0 %3745
        %3747 = vrot.lane.b32.xlu0 %v3656, 28
        %v3748 = vpop.permute.xlu0 %3747
        %3749 = vrot.lane.b32.xlu0 %v3657, 28
        %v3750 = vpop.permute.xlu0 %3749
        %3751 = vrot.lane.b32.xlu0 %v3658, 28
        %v3752 = vpop.permute.xlu0 %3751
        %3753 = vrot.lane.b32.xlu0 %v3659, 28
        %v3754 = vpop.permute.xlu0 %3753
        %3755 = vrot.lane.b32.xlu0 %v3660, 28
        %v3756 = vpop.permute.xlu0 %3755
        %3757 = vrot.lane.b32.xlu0 %v3661, 28
        %v3758 = vpop.permute.xlu0 %3757
        %3759 = vrot.lane.b32.xlu0 %v3662, 28
        %v3760 = vpop.permute.xlu0 %3759
        %3761 = vrot.lane.b32.xlu0 %v3663, 28
        %v3762 = vpop.permute.xlu0 %3761
        %3763 = vrot.lane.b32.xlu0 %v3664, 28
        %v3764 = vpop.permute.xlu0 %3763
        %3765 = vrot.lane.b32.xlu0 %v3665, 28
        %v3766 = vpop.permute.xlu0 %3765
        %3767 = vrot.lane.b32.xlu0 %v3682, 28
        %v3768 = vpop.permute.xlu0 %3767
        %3769 = vrot.lane.b32.xlu0 %v3699, 28
        %v3770 = vpop.permute.xlu0 %3769
        %3771 = vrot.lane.b32.xlu0 %v3716, 28
        %v3772 = vpop.permute.xlu0 %3771
        %3773 = vrot.lane.b32.xlu0 %v3724, 28
        %v3774 = vpop.permute.xlu0 %3773
        %v3800 = vcombine.low %v2155, %v2165
        %v3801 = vcombine.low %v2189, %v2199
        %v3802 = vcombine.low %v2223, %v2233
        %v3803 = vcombine.low %v2240, %v2250
        %v3804 = vcombine.low %v2274, %v2284
        %v3805 = vcombine.low %v2308, %v2318
        %v3806 = vcombine.low %v2342, %v2352
        %v3807 = vcombine.low %v2359, %v2369
        %v3808 = vcombine.low %v2393, %v2403
        %v3809 = vcombine.low %v2427, %v2437
        %v3810 = vcombine.low %v2461, %v2471
        %v3811 = vcombine.low %v2478, %v2487
        %v3812 = vcombine.low %v1059, %v1099
        %v3814 = vunpack.c.l.s4 1983009808
        %v3815 = vunpack.c.0.s8 %v3814
        %v3816 = vlaneseq
        %v3817 = vshrl.u32 %v3816, 7
        %v3818 = vsub.s32 %v3815, %v3817
        %v3819 = vrot.slane %v3812, %v3818
        %v3820 = vcombine.low %v2722, %v3819
        %v3821 = vcombine.low %v1098, %v1100
        %v3822 = vcombine.low %v1108, %v1116
        %v3824 = vunpack.c.l.s4 1983009808
        %v3825 = vunpack.c.0.s8 %v3824
        %v3826 = vlaneseq
        %v3827 = vshrl.u32 %v3826, 7
        %v3828 = vsub.s32 %v3825, %v3827
        %v3829 = vrot.slane %v3821, %v3828
        %v3831 = vunpack.c.l.s4 1983009808
        %v3832 = vunpack.c.0.s8 %v3831
        %v3833 = vlaneseq
        %v3834 = vshrl.u32 %v3833, 7
        %v3835 = vsub.s32 %v3832, %v3834
        %v3836 = vrot.slane %v3822, %v3835
        %v3837 = vcombine.low %v3829, %v3836
        %v3838 = vcombine.low %v1115, %v1117
        %v3840 = vunpack.c.l.s4 1983009808
        %v3841 = vunpack.c.0.s8 %v3840
        %v3842 = vlaneseq
        %v3843 = vshrl.u32 %v3842, 7
        %v3844 = vsub.s32 %v3841, %v3843
        %v3845 = vrot.slane %v3838, %v3844
        %3846 = vrot.lane.b32.xlu0 %v2581, 32
        %v3847 = vpop.permute.xlu0 %3846
        %3848 = vrot.lane.b32.xlu0 %v3800, 32
        %v3849 = vpop.permute.xlu0 %3848
        %3850 = vrot.lane.b32.xlu0 %v2591, 32
        %v3851 = vpop.permute.xlu0 %3850
        %3852 = vrot.lane.b32.xlu0 %v3801, 32
        %v3853 = vpop.permute.xlu0 %3852
        %3854 = vrot.lane.b32.xlu0 %v2601, 32
        %v3855 = vpop.permute.xlu0 %3854
        %3856 = vrot.lane.b32.xlu0 %v3802, 32
        %v3857 = vpop.permute.xlu0 %3856
        %3858 = vrot.lane.b32.xlu0 %v3803, 32
        %v3859 = vpop.permute.xlu0 %3858
        %3860 = vrot.lane.b32.xlu0 %v2620, 32
        %v3861 = vpop.permute.xlu0 %3860
        %3862 = vrot.lane.b32.xlu0 %v3804, 32
        %v3863 = vpop.permute.xlu0 %3862
        %3864 = vrot.lane.b32.xlu0 %v2630, 32
        %v3865 = vpop.permute.xlu0 %3864
        %3866 = vrot.lane.b32.xlu0 %v3805, 32
        %v3867 = vpop.permute.xlu0 %3866
        %3868 = vrot.lane.b32.xlu0 %v2640, 32
        %v3869 = vpop.permute.xlu0 %3868
        %3870 = vrot.lane.b32.xlu0 %v3806, 32
        %v3871 = vpop.permute.xlu0 %3870
        %3872 = vrot.lane.b32.xlu0 %v3807, 32
        %v3873 = vpop.permute.xlu0 %3872
        %3874 = vrot.lane.b32.xlu0 %v2659, 32
        %v3875 = vpop.permute.xlu0 %3874
        %3876 = vrot.lane.b32.xlu0 %v3808, 32
        %v3877 = vpop.permute.xlu0 %3876
        %3878 = vrot.lane.b32.xlu0 %v2669, 32
        %v3879 = vpop.permute.xlu0 %3878
        %3880 = vrot.lane.b32.xlu0 %v3809, 32
        %v3881 = vpop.permute.xlu0 %3880
        %3882 = vrot.lane.b32.xlu0 %v2679, 32
        %v3883 = vpop.permute.xlu0 %3882
        %3884 = vrot.lane.b32.xlu0 %v3810, 32
        %v3885 = vpop.permute.xlu0 %3884
        %3886 = vrot.lane.b32.xlu0 %v3811, 32
        %v3887 = vpop.permute.xlu0 %3886
        %3888 = vrot.lane.b32.xlu0 %v2714, 32
        %v3889 = vpop.permute.xlu0 %3888
        %3890 = vrot.lane.b32.xlu0 %v3820, 32
        %v3891 = vpop.permute.xlu0 %3890
        %3892 = vrot.lane.b32.xlu0 %v3837, 32
        %v3893 = vpop.permute.xlu0 %3892
        %3894 = vrot.lane.b32.xlu0 %v3845, 32
        %v3895 = vpop.permute.xlu0 %3894
        %vm3921 = vcmask 31744
        %v3922 = vsel %vm3921, %v1156, %v1998
        %v3923 = vsel %vm3921, %v1173, %v2000
        %v3924 = vsel %vm3921, %v1190, %v2002
        %v3925 = vsel %vm3921, %v1207, %v2004
        %v3926 = vsel %vm3921, %v1224, %v2006
        %v3927 = vsel %vm3921, %v1241, %v2008
        %v3928 = vsel %vm3921, %v1258, %v2010
        %v3929 = vsel %vm3921, %v1275, %v2012
        %v3930 = vsel %vm3921, %v1292, %v2014
        %v3931 = vsel %vm3921, %v1309, %v2016
        %v3932 = vsel %vm3921, %v1326, %v2018
        %v3933 = vsel %vm3921, %v1343, %v2020
        %v3934 = vsel %vm3921, %v1360, %v2022
        %v3935 = vsel %vm3921, %v1377, %v2024
        %v3936 = vsel %vm3921, %v1394, %v2026
        %v3937 = vsel %vm3921, %v1411, %v2028
        %v3938 = vsel %vm3921, %v1428, %v2030
        %v3939 = vsel %vm3921, %v1445, %v2032
        %v3940 = vsel %vm3921, %v1462, %v2034
        %v3941 = vsel %vm3921, %v1479, %v2036
        %v3942 = vsel %vm3921, %v1496, %v2038
        %v3943 = vsel %vm3921, %v1513, %v2040
        %v3944 = vsel %vm3921, %v1530, %v2042
        %v3945 = vsel %vm3921, %v1547, %v2044
        %v3946 = vsel %vm3921, %v1555, %v2046
        %vm3947 = vcmask 64512
        %v3948 = vsel %vm3947, %v3922, %v2489
        %v3949 = vsel %vm3947, %v3923, %v2491
        %v3950 = vsel %vm3947, %v3924, %v2493
        %v3951 = vsel %vm3947, %v3925, %v2495
        %v3952 = vsel %vm3947, %v3926, %v2497
        %v3953 = vsel %vm3947, %v3927, %v2499
        %v3954 = vsel %vm3947, %v3928, %v2501
        %v3955 = vsel %vm3947, %v3929, %v2503
        %v3956 = vsel %vm3947, %v3930, %v2505
        %v3957 = vsel %vm3947, %v3931, %v2507
        %v3958 = vsel %vm3947, %v3932, %v2509
        %v3959 = vsel %vm3947, %v3933, %v2511
        %v3960 = vsel %vm3947, %v3934, %v2513
        %v3961 = vsel %vm3947, %v3935, %v2515
        %v3962 = vsel %vm3947, %v3936, %v2517
        %v3963 = vsel %vm3947, %v3937, %v2519
        %v3964 = vsel %vm3947, %v3938, %v2521
        %v3965 = vsel %vm3947, %v3939, %v2523
        %v3966 = vsel %vm3947, %v3940, %v2525
        %v3967 = vsel %vm3947, %v3941, %v2527
        %v3968 = vsel %vm3947, %v3942, %v2529
        %v3969 = vsel %vm3947, %v3943, %v2531
        %v3970 = vsel %vm3947, %v3944, %v2533
        %v3971 = vsel %vm3947, %v3945, %v2535
        %v3972 = vsel %vm3947, %v3946, %v2537
        %vm3973 = vcmask 97280
        %v3974 = vsel %vm3973, %v3948, %v2724
        %v3975 = vsel %vm3973, %v3949, %v2726
        %v3976 = vsel %vm3973, %v3950, %v2728
        %v3977 = vsel %vm3973, %v3951, %v2730
        %v3978 = vsel %vm3973, %v3952, %v2732
        %v3979 = vsel %vm3973, %v3953, %v2734
        %v3980 = vsel %vm3973, %v3954, %v2736
        %v3981 = vsel %vm3973, %v3955, %v2738
        %v3982 = vsel %vm3973, %v3956, %v2740
        %v3983 = vsel %vm3973, %v3957, %v2742
        %v3984 = vsel %vm3973, %v3958, %v2744
        %v3985 = vsel %vm3973, %v3959, %v2746
        %v3986 = vsel %vm3973, %v3960, %v2748
        %v3987 = vsel %vm3973, %v3961, %v2750
        %v3988 = vsel %vm3973, %v3962, %v2752
        %v3989 = vsel %vm3973, %v3963, %v2754
        %v3990 = vsel %vm3973, %v3964, %v2756
        %v3991 = vsel %vm3973, %v3965, %v2758
        %v3992 = vsel %vm3973, %v3966, %v2760
        %v3993 = vsel %vm3973, %v3967, %v2762
        %v3994 = vsel %vm3973, %v3968, %v2764
        %v3995 = vsel %vm3973, %v3969, %v2766
        %v3996 = vsel %vm3973, %v3970, %v2768
        %v3997 = vsel %vm3973, %v3971, %v2770
        %v3998 = vsel %vm3973, %v3972, %v2772
        %vm3999 = vcmask 130048
        %v4000 = vsel %vm3999, %v3974, %v3215
        %v4001 = vsel %vm3999, %v3975, %v3217
        %v4002 = vsel %vm3999, %v3976, %v3219
        %v4003 = vsel %vm3999, %v3977, %v3221
        %v4004 = vsel %vm3999, %v3978, %v3223
        %v4005 = vsel %vm3999, %v3979, %v3225
        %v4006 = vsel %vm3999, %v3980, %v3227
        %v4007 = vsel %vm3999, %v3981, %v3229
        %v4008 = vsel %vm3999, %v3982, %v3231
        %v4009 = vsel %vm3999, %v3983, %v3233
        %v4010 = vsel %vm3999, %v3984, %v3235
        %v4011 = vsel %vm3999, %v3985, %v3237
        %v4012 = vsel %vm3999, %v3986, %v3239
        %v4013 = vsel %vm3999, %v3987, %v3241
        %v4014 = vsel %vm3999, %v3988, %v3243
        %v4015 = vsel %vm3999, %v3989, %v3245
        %v4016 = vsel %vm3999, %v3990, %v3247
        %v4017 = vsel %vm3999, %v3991, %v3249
        %v4018 = vsel %vm3999, %v3992, %v3251
        %v4019 = vsel %vm3999, %v3993, %v3253
        %v4020 = vsel %vm3999, %v3994, %v3255
        %v4021 = vsel %vm3999, %v3995, %v3257
        %v4022 = vsel %vm3999, %v3996, %v3259
        %v4023 = vsel %vm3999, %v3997, %v3261
        %v4024 = vsel %vm3999, %v3998, %v3263
        %vm4025 = vcmask 162816
        %v4026 = vsel %vm4025, %v4000, %v3432
        %v4027 = vsel %vm4025, %v4001, %v3434
        %v4028 = vsel %vm4025, %v4002, %v3436
        %v4029 = vsel %vm4025, %v4003, %v3438
        %v4030 = vsel %vm4025, %v4004, %v3440
        %v4031 = vsel %vm4025, %v4005, %v3442
        %v4032 = vsel %vm4025, %v4006, %v3444
        %v4033 = vsel %vm4025, %v4007, %v3446
        %v4034 = vsel %vm4025, %v4008, %v3448
        %v4035 = vsel %vm4025, %v4009, %v3450
        %v4036 = vsel %vm4025, %v4010, %v3452
        %v4037 = vsel %vm4025, %v4011, %v3454
        %v4038 = vsel %vm4025, %v4012, %v3456
        %v4039 = vsel %vm4025, %v4013, %v3458
        %v4040 = vsel %vm4025, %v4014, %v3460
        %v4041 = vsel %vm4025, %v4015, %v3462
        %v4042 = vsel %vm4025, %v4016, %v3464
        %v4043 = vsel %vm4025, %v4017, %v3466
        %v4044 = vsel %vm4025, %v4018, %v3468
        %v4045 = vsel %vm4025, %v4019, %v3470
        %v4046 = vsel %vm4025, %v4020, %v3472
        %v4047 = vsel %vm4025, %v4021, %v3474
        %v4048 = vsel %vm4025, %v4022, %v3476
        %v4049 = vsel %vm4025, %v4023, %v3478
        %v4050 = vsel %vm4025, %v4024, %v3480
        %vm4051 = vcmask 195584
        %v4052 = vsel %vm4051, %v4026, %v3571
        %v4053 = vsel %vm4051, %v4027, %v3573
        %v4054 = vsel %vm4051, %v4028, %v3575
        %v4055 = vsel %vm4051, %v4029, %v3577
        %v4056 = vsel %vm4051, %v4030, %v3579
        %v4057 = vsel %vm4051, %v4031, %v3581
        %v4058 = vsel %vm4051, %v4032, %v3583
        %v4059 = vsel %vm4051, %v4033, %v3585
        %v4060 = vsel %vm4051, %v4034, %v3587
        %v4061 = vsel %vm4051, %v4035, %v3589
        %v4062 = vsel %vm4051, %v4036, %v3591
        %v4063 = vsel %vm4051, %v4037, %v3593
        %v4064 = vsel %vm4051, %v4038, %v3595
        %v4065 = vsel %vm4051, %v4039, %v3597
        %v4066 = vsel %vm4051, %v4040, %v3599
        %v4067 = vsel %vm4051, %v4041, %v3601
        %v4068 = vsel %vm4051, %v4042, %v3603
        %v4069 = vsel %vm4051, %v4043, %v3605
        %v4070 = vsel %vm4051, %v4044, %v3607
        %v4071 = vsel %vm4051, %v4045, %v3609
        %v4072 = vsel %vm4051, %v4046, %v3611
        %v4073 = vsel %vm4051, %v4047, %v3613
        %v4074 = vsel %vm4051, %v4048, %v3615
        %v4075 = vsel %vm4051, %v4049, %v3617
        %v4076 = vsel %vm4051, %v4050, %v3619
        %vm4077 = vcmask 228352
        %v4078 = vsel %vm4077, %v4052, %v3726
        %v4079 = vsel %vm4077, %v4053, %v3728
        %v4080 = vsel %vm4077, %v4054, %v3730
        %v4081 = vsel %vm4077, %v4055, %v3732
        %v4082 = vsel %vm4077, %v4056, %v3734
        %v4083 = vsel %vm4077, %v4057, %v3736
        %v4084 = vsel %vm4077, %v4058, %v3738
        %v4085 = vsel %vm4077, %v4059, %v3740
        %v4086 = vsel %vm4077, %v4060, %v3742
        %v4087 = vsel %vm4077, %v4061, %v3744
        %v4088 = vsel %vm4077, %v4062, %v3746
        %v4089 = vsel %vm4077, %v4063, %v3748
        %v4090 = vsel %vm4077, %v4064, %v3750
        %v4091 = vsel %vm4077, %v4065, %v3752
        %v4092 = vsel %vm4077, %v4066, %v3754
        %v4093 = vsel %vm4077, %v4067, %v3756
        %v4094 = vsel %vm4077, %v4068, %v3758
        %v4095 = vsel %vm4077, %v4069, %v3760
        %v4096 = vsel %vm4077, %v4070, %v3762
        %v4097 = vsel %vm4077, %v4071, %v3764
        %v4098 = vsel %vm4077, %v4072, %v3766
        %v4099 = vsel %vm4077, %v4073, %v3768
        %v4100 = vsel %vm4077, %v4074, %v3770
        %v4101 = vsel %vm4077, %v4075, %v3772
        %v4102 = vsel %vm4077, %v4076, %v3774
        %vm4103 = vcmask 261120
        %v4104 = vsel %vm4103, %v4078, %v3847
        %v4105 = vsel %vm4103, %v4079, %v3849
        %v4106 = vsel %vm4103, %v4080, %v3851
        %v4107 = vsel %vm4103, %v4081, %v3853
        %v4108 = vsel %vm4103, %v4082, %v3855
        %v4109 = vsel %vm4103, %v4083, %v3857
        %v4110 = vsel %vm4103, %v4084, %v3859
        %v4111 = vsel %vm4103, %v4085, %v3861
        %v4112 = vsel %vm4103, %v4086, %v3863
        %v4113 = vsel %vm4103, %v4087, %v3865
        %v4114 = vsel %vm4103, %v4088, %v3867
        %v4115 = vsel %vm4103, %v4089, %v3869
        %v4116 = vsel %vm4103, %v4090, %v3871
        %v4117 = vsel %vm4103, %v4091, %v3873
        %v4118 = vsel %vm4103, %v4092, %v3875
        %v4119 = vsel %vm4103, %v4093, %v3877
        %v4120 = vsel %vm4103, %v4094, %v3879
        %v4121 = vsel %vm4103, %v4095, %v3881
        %v4122 = vsel %vm4103, %v4096, %v3883
        %v4123 = vsel %vm4103, %v4097, %v3885
        %v4124 = vsel %vm4103, %v4098, %v3887
        %v4125 = vsel %vm4103, %v4099, %v3889
        %v4126 = vsel %vm4103, %v4100, %v3891
        %v4127 = vsel %vm4103, %v4101, %v3893
        %v4128 = vsel %vm4103, %v4102, %v3895
        %4130 = vset.pattern.permute.xlu0 0
        %4131 = vperm.xlu0 %4130, %v171
        %v4132 = vpop.permute.xlu0 %4131
        %4135 = vset.pattern.permute.xlu0 0
        %4136 = vperm.xlu0 %4135, %v172
        %v4137 = vpop.permute.xlu0 %4136
        %vm4139 = vcmask 293888
        %v4141 = vsel %vm4139, %v169, 0
        %v4144 = vsel %vm4139, %v170, 0
        %v4147 = vsel %vm4139, %v4104, 0
        %v4150 = vsel %vm4139, %v4105, 0
        %v4153 = vsel %vm4139, %v4106, 0
        %v4156 = vsel %vm4139, %v4107, 0
        %v4159 = vsel %vm4139, %v4108, 0
        %v4162 = vsel %vm4139, %v4109, 0
        %v4165 = vsel %vm4139, %v4110, 0
        %v4168 = vsel %vm4139, %v4111, 0
        %v4171 = vsel %vm4139, %v4112, 0
        %v4174 = vsel %vm4139, %v4113, 0
        %v4177 = vsel %vm4139, %v4114, 0
        %v4180 = vsel %vm4139, %v4115, 0
        %v4183 = vsel %vm4139, %v4116, 0
        %v4186 = vsel %vm4139, %v4117, 0
        %v4189 = vsel %vm4139, %v4118, 0
        %v4192 = vsel %vm4139, %v4119, 0
        %v4195 = vsel %vm4139, %v4120, 0
        %v4198 = vsel %vm4139, %v4121, 0
        %v4201 = vsel %vm4139, %v4122, 0
        %v4204 = vsel %vm4139, %v4123, 0
        %v4207 = vsel %vm4139, %v4124, 0
        %v4210 = vsel %vm4139, %v4125, 0
        %v4213 = vsel %vm4139, %v4126, 0
        %v4216 = vsel %vm4139, %v4127, 0
        %v4219 = vsel %vm4139, %v4128, 0
        %4221 = vmatprep.subr.mxu0 0.0
        %4222 = vmatpush1.xpose.msra.mxu0 %v4147
        %4223 = vmatprep.subr.mxu0 0.0
        %4224 = vmatpush1.xpose.msra.mxu0 %v4150
        %4225 = vmatprep.subr.mxu0 0.0
        %4226 = vmatpush1.xpose.msra.mxu0 %v4153
        %4227 = vmatprep.subr.mxu0 0.0
        %4228 = vmatpush1.xpose.msra.mxu0 %v4156
        %4229 = vmatprep.subr.mxu0 0.0
        %4230 = vmatpush1.xpose.msra.mxu0 %v4159
        %4231 = vmatprep.subr.mxu0 0.0
        %4232 = vmatpush1.xpose.msra.mxu0 %v4162
        %4233 = vmatprep.subr.mxu0 0.0
        %4234 = vmatpush1.xpose.msra.mxu0 %v4165
        %4235 = vmatprep.subr.mxu0 0.0
        %4236 = vmatpush1.xpose.msra.mxu0 %v4168
        %4237 = vmatprep.subr.mxu0 0.0
        %4238 = vmatpush1.xpose.msra.mxu0 %v4171
        %4239 = vmatprep.subr.mxu0 0.0
        %4240 = vmatpush1.xpose.msra.mxu0 %v4174
        %4241 = vmatprep.subr.mxu0 0.0
        %4242 = vmatpush1.xpose.msra.mxu0 %v4177
        %4243 = vmatprep.subr.mxu0 0.0
        %4244 = vmatpush1.xpose.msra.mxu0 %v4180
        %4245 = vmatprep.subr.mxu0 0.0
        %4246 = vmatpush1.xpose.msra.mxu0 %v4183
        %4247 = vmatprep.subr.mxu0 0.0
        %4248 = vmatpush1.xpose.msra.mxu0 %v4186
        %4249 = vmatprep.subr.mxu0 0.0
        %4250 = vmatpush1.xpose.msra.mxu0 %v4189
        %4251 = vmatprep.subr.mxu0 0.0
        %4252 = vmatpush1.xpose.msra.mxu0 %v4192
        %4253 = vmatprep.subr.mxu0 0.0
        %4254 = vmatpush1.xpose.msra.mxu0 %v4195
        %4255 = vmatprep.subr.mxu0 0.0
        %4256 = vmatpush1.xpose.msra.mxu0 %v4198
        %4257 = vmatprep.subr.mxu0 0.0
        %4258 = vmatpush1.xpose.msra.mxu0 %v4201
        %4259 = vmatprep.subr.mxu0 0.0
        %4260 = vmatpush1.xpose.msra.mxu0 %v4204
        %4261 = vmatprep.subr.mxu0 0.0
        %4262 = vmatpush1.xpose.msra.mxu0 %v4207
        %4263 = vmatprep.subr.mxu0 0.0
        %4264 = vmatpush1.xpose.msra.mxu0 %v4210
        %4265 = vmatprep.subr.mxu0 0.0
        %4266 = vmatpush1.xpose.msra.mxu0 %v4213
        %4267 = vmatprep.subr.mxu0 0.0
        %4268 = vmatpush1.xpose.msra.mxu0 %v4216
        %4269 = vmatprep.subr.mxu0 0.0
        %4270 = vmatpush1.xpose.msra.mxu0 %v4219
        %4271 = vmatprep.subr.mxu0 0.0
        %4272 = vmatpush1.xpose.msra.mxu0 0.0
        %4273 = vmatprep.subr.mxu0 0.0
        %4274 = vmatpush1.xpose.msra.mxu0 0.0
        %4275 = vmatprep.subr.mxu0 0.0
        %4276 = vmatpush1.xpose.msra.mxu0 0.0
        %4277 = vmatprep.subr.mxu0 0.0
        %4278 = vmatpush1.xpose.msra.mxu0 0.0
        %4279 = vmatprep.subr.mxu0 0.0
        %4280 = vmatpush1.xpose.msra.mxu0 0.0
        %4281 = vmatprep.subr.mxu0 0.0
        %4282 = vmatpush1.xpose.msra.mxu0 0.0
        %4283 = vmatprep.subr.mxu0 0.0
        %4284 = vmatpush1.xpose.msra.mxu0 0.0
        %4285 = vmatprep.mubr.f32.mxu0 0.0
        %4286 = vmatmul.mubr.f32.gmra.mrb[0].mxu0 %v4141
        %v4287 = vpop.f32.mrb[0].mxu0
        %v4288 = vadd.f32 %v4132, %v4287
        %v4289 = vpop.f32.mrb[0].mxu0
        %v4290 = vadd.f32 %v4132, %v4289
        %4291 = vmatprep.mubr.f32.mxu0 0.0
        %4292 = vmatmul.mubr.f32.gmra.mrb[0].mxu0 %v4144
        %v4293 = vpop.f32.mrb[0].mxu0
        %v4294 = vadd.f32 %v4137, %v4293
        %v4295 = vpop.f32.mrb[0].mxu0
        %v4296 = vadd.f32 %v4137, %v4295
        %4297 = vdwg.mxu0
        %4298 = vst [vmem:[%s163] sm:$0xff] %v4288
        %vm4299 = vcmask 556032
        %4300 = vst.msk [vmem:[%s163 + $0x8] sm:$0xff] %vm4299, %v4290
        %4301 = vst [vmem:[%s163 + $0x10] sm:$0xff] %v4294
        %4302 = vst.msk [vmem:[%s163 + $0x18] sm:$0xff] %vm4299, %v4296
        %s4303 = sand.u32 %s93, 1
        %s4304 = scalar_lea.sflag [#allocation3], %s4303
        %s4305 = sand.u32 %s93, 1
        %s4306 = smul.addr %s4305, 32
        %s4307 = scalar_lea.vmem [#allocation2], %s4306
        // Predicated region
        $region33: #{tpu_custom_call.1} parent=31 // pred_check
          %p4308 = pneg %p103
        $region34: #{tpu_custom_call.1} parent=31 // pred_check_branch
          %4310 = sbr.rel (%p4308) target = $region36
        $region35: #{tpu_custom_call.1} parent=31 // pred_region
          %s4312 = ssub.s32 512, 512
          %4313 = vsyncadd %s4304, %s4312
          %s4314 = smul.addr %s17, 4
          %s4315 = smul.addr %s4314, 128
          %s4316 = scalar_lea.hbm %s3, %s4315
          %s4317 = sshll.u32 %s4307, 4
          %s4318 = int_to_ptr.vmem [resolvable:$true] %s4317
          %4323 = dma.vmem_to_hbm [thread:$0]  %s4318, 512, %s4316, %s4304, 256, 256, 16
        $region36: #{tpu_custom_call.1} parent=31 // pred_fallthru
          _
      $region32: #{tpu_custom_call.1} parent=5 // pred_fallthru
        _
      %p4324 = scmp.le.s32.totalorder 2, %s12
      // Predicated region
      $region37: #{tpu_custom_call.1} parent=5 // pred_check
        %p4325 = pneg %p4324
      $region38: #{tpu_custom_call.1} parent=5 // pred_check_branch
        %4327 = sbr.rel (%p4325) target = $region40
      $region39: #{tpu_custom_call.1} parent=5 // pred_region
        %s4328 = ssub.s32 %s12, 2
        // Predicated region
        $region41: #{tpu_custom_call.1} parent=39 // pred_check
          %p4329 = pneg %p109
        $region42: #{tpu_custom_call.1} parent=39 // pred_check_branch
          %4331 = sbr.rel (%p4329) target = $region44
        $region43: #{tpu_custom_call.1} parent=39 // pred_region
          %s4332 = sand.u32 %s94, 1
          %s4333 = scalar_lea.sflag [#allocation3], %s4332
          %s4334 = sand.u32 %s94, 1
          %s4335 = smul.addr %s4334, 32
          %s4336 = scalar_lea.vmem [#allocation2], %s4335
          %4337 = dma.done %s4333, 512
        $region44: #{tpu_custom_call.1} parent=39 // pred_fallthru
          _
      $region40: #{tpu_custom_call.1} parent=5 // pred_fallthru
        _
    $region6: #{tpu_custom_call.1} parent=1 // loop_footer
      %s16 = sadd.s32 1, %s12
    $region7: #{tpu_custom_call.1} parent=1 // loop_footer_branch
      %11 = sbr.rel target = $region3
    $region8: #{tpu_custom_call.1} parent=1 // loop_exit
      _
    %4338 = vsyncpa [#allocation3], 1
    %s4339 = scalar_lea.sflag [#allocation3], 1
    %4340 = vsyncpa %s4339, 1

</llo_original>
